<compile_context>
chip_gen: v7x
topology: tpu7x:2x2x1
jax: 0.10.0
libtpu: 0.0.40
codegen_flags: <defaults>
</compile_context>

<pallas_src>
import jax
import jax.numpy as jnp
from jax import lax
from jax.experimental import pallas as pl
from jax.experimental.pallas import tpu as pltpu

# Scoped VMEM budget requested from Mosaic.  32 MiB is <= the scoped default on
# v6e/v7x and well under every generation's physical VMEM; the per-tile
# residency below is sized to stay far inside it (re-derive t_tile per chip).
_VMEM_LIMIT_BYTES = 32 * 1024 * 1024


def _round_up(x, m):
    return (x + m - 1) // m * m


# ----------------------------------------------------------------------------
# Weight preparation: PyTorch GRU tensors -> padded, gate-block (Hp-wide),
# MXU-friendly layouts.  Gate order is PyTorch's [r, z, n].
# ----------------------------------------------------------------------------
def _pad_gate_cols(w_t, H, Hp):
    """(Din, 3H) -> (Din, 3Hp): each gate block widened from H to Hp lanes."""
    Din = w_t.shape[0]
    out = jnp.zeros((Din, 3 * Hp), w_t.dtype)
    for g in range(3):
        out = out.at[:, g * Hp:g * Hp + H].set(w_t[:, g * H:(g + 1) * H])
    return out


def _pad_rows(w, rows):
    return jnp.zeros((rows,) + w.shape[1:], w.dtype).at[:w.shape[0]].set(w)


def _pad_gate_vec(v, H, Hp):
    """(3H,) -> (1, 3Hp) with per-gate Hp-wide blocks."""
    out = jnp.zeros((3 * Hp,), v.dtype)
    for g in range(3):
        out = out.at[g * Hp:g * Hp + H].set(v[g * H:(g + 1) * H])
    return out.reshape(1, 3 * Hp)


def _prep_dir(w_ih, w_hh, b_ih, b_hh, H, Hp, in_splits):
    """One GRU direction -> (per-source W_ih^T list, W_hh^T, fused GI bias, b_hn).

    in_splits: list of (col_start, col_size, padded_rows) describing how the
    layer's input features are split across its source arrays (1 entry for
    layer 0, two Hp-wide entries -- fwd/bwd halves -- for stacked layers).
    """
    w_list = []
    for (start, size, rows) in in_splits:
        w_t = w_ih[:, start:start + size].T                          # (size, 3H)
        w_list.append(_pad_rows(_pad_gate_cols(w_t, H, Hp), rows)
                      .astype(jnp.bfloat16))                         # (rows, 3Hp)
    whh_t = _pad_rows(_pad_gate_cols(w_hh.T, H, Hp), Hp).astype(jnp.bfloat16)
    # Fused GI bias: r,z get (b_i + b_h); n keeps b_in here, b_hn applied per step.
    b_fused = jnp.concatenate([b_ih[:2 * H] + b_hh[:2 * H], b_ih[2 * H:]])
    bgi = _pad_gate_vec(b_fused, H, Hp).astype(jnp.float32)          # (1, 3Hp)
    bhn = jnp.zeros((1, Hp), jnp.float32).at[0, :H].set(b_hh[2 * H:])
    return w_list, whh_t, bgi, bhn


# ----------------------------------------------------------------------------
# Fused bidirectional GRU layer (all layers except the last).
# Grid = T tiles ("arbitrary"): per tile, one MXU input projection per direction
# into VMEM scratch, then the serial recurrence.  fwd step j and bwd step Tt-1-j
# share one loop iteration and a single block-diagonal MXU matmul.
# PyTorch cell (gate order r, z, n):
#   r = sigmoid(GI_r + gh_r); z = sigmoid(GI_z + gh_z)
#   n = tanh(GI_n + r * (gh_n + b_hn));  h' = n + z * (h - n)
# ----------------------------------------------------------------------------
def gru_bidir_layer(xs, wih_f, wih_b, whh_bd, bgi_f, bgi_b, bhn_f, bhn_b,
                    *, T, Bp, Hp, Tt):
    n_src = len(xs)
    nT = T // Tt
    rows = Tt * Bp
    unroll = Tt if Tt <= 8 else 8

    def kernel(*refs):
        xf = refs[0:n_src]
        xb = refs[n_src:2 * n_src]
        wf = refs[2 * n_src:3 * n_src]
        wb = refs[3 * n_src:4 * n_src]
        (whh_ref, bgi_f_ref, bgi_b_ref, bhn_f_ref, bhn_b_ref,
         out_f_ref, out_b_ref, h_ref, gi_f_ref, gi_b_ref) = refs[4 * n_src:]

        @pl.when(pl.program_id(0) == 0)
        def _():
            h_ref[...] = jnp.zeros_like(h_ref)

        # Time-invariant input projection for this T tile (one big MXU matmul
        # per direction; result stays in VMEM -> no GI HBM round trip).
        def proj(x_refs, w_refs, bias_ref):
            acc = None
            for xr, wr in zip(x_refs, w_refs):
                d = jnp.dot(xr[...], wr[...], preferred_element_type=jnp.float32)
                acc = d if acc is None else acc + d
            return acc + bias_ref[...]

        gi_f_ref[...] = proj(xf, wf, bgi_f_ref)
        gi_b_ref[...] = proj(xb, wb, bgi_b_ref)

        whh = whh_ref[...]                                    # (2Hp, 6Hp) bf16
        bf = jnp.broadcast_to(bhn_f_ref[...], (Bp, Hp))       # hoisted broadcasts
        bb = jnp.broadcast_to(bhn_b_ref[...], (Bp, Hp))

        def gates(gi, gh, h, bhn):
            r = jax.nn.sigmoid(gi[:, :Hp] + gh[:, :Hp])
            z = jax.nn.sigmoid(gi[:, Hp:2 * Hp] + gh[:, Hp:2 * Hp])
            n = jnp.tanh(gi[:, 2 * Hp:] + r * (gh[:, 2 * Hp:] + bhn))
            return n + z * (h - n)                            # == (1-z)*n + z*h

        def step(j, h_cat):
            rf = pl.multiple_of(j * Bp, Bp)
            rb = pl.multiple_of((Tt - 1 - j) * Bp, Bp)
            # Single MXU op for both directions: [h_f | h_b] @ blockdiag(W_hh).
            gh = jnp.dot(h_cat.astype(jnp.bfloat16), whh,
                         preferred_element_type=jnp.float32)  # (Bp, 6Hp)
            h_f = gates(gi_f_ref[pl.ds(rf, Bp), :], gh[:, :3 * Hp],
                        h_cat[:, :Hp], bf)
            h_b = gates(gi_b_ref[pl.ds(rb, Bp), :], gh[:, 3 * Hp:],
                        h_cat[:, Hp:], bb)
            out_f_ref[pl.ds(rf, Bp), :] = h_f.astype(out_f_ref.dtype)
            out_b_ref[pl.ds(rb, Bp), :] = h_b.astype(out_b_ref.dtype)
            return jnp.concatenate([h_f, h_b], axis=1)

        h_ref[...] = lax.fori_loop(0, Tt, step, h_ref[...], unroll=unroll)

    src_dims = [int(x.shape[1]) for x in xs]
    full = lambda a: pl.BlockSpec(a.shape, lambda i: (0, 0))
    in_specs = (
        [pl.BlockSpec((rows, d), lambda i: (i, 0)) for d in src_dims] +           # fwd x
        [pl.BlockSpec((rows, d), lambda i: (nT - 1 - i, 0)) for d in src_dims] +  # bwd x
        [full(w) for w in list(wih_f) + list(wih_b)] +
        [full(whh_bd), full(bgi_f), full(bgi_b), full(bhn_f), full(bhn_b)])
    out_specs = (pl.BlockSpec((rows, Hp), lambda i: (i, 0)),
                 pl.BlockSpec((rows, Hp), lambda i: (nT - 1 - i, 0)))
    grid_spec = pltpu.PrefetchScalarGridSpec(
        num_scalar_prefetch=0, grid=(nT,),
        in_specs=in_specs, out_specs=out_specs,
        scratch_shapes=[pltpu.VMEM((Bp, 2 * Hp), jnp.float32),     # h carry [fwd|bwd]
                        pltpu.VMEM((rows, 3 * Hp), jnp.float32),   # GI fwd tile
                        pltpu.VMEM((rows, 3 * Hp), jnp.float32)])  # GI bwd tile
    return pl.pallas_call(
        kernel,
        out_shape=(jax.ShapeDtypeStruct((T * Bp, Hp), jnp.bfloat16),
                   jax.ShapeDtypeStruct((T * Bp, Hp), jnp.bfloat16)),
        grid_spec=grid_spec,
        compiler_params=pltpu.CompilerParams(
            dimension_semantics=("arbitrary",),
            vmem_limit_bytes=_VMEM_LIMIT_BYTES),
    )(*xs, *xs, *wih_f, *wih_b, whh_bd, bgi_f, bgi_b, bhn_f, bhn_b)


# ----------------------------------------------------------------------------
# Last bidirectional layer + fc head, specialized for out[:, -1, :]:
#   * fwd: full T-tiled recurrence, no per-step HBM writeback,
#   * bwd: a single step at t = T-1 from h0 = 0 (so h @ W_hh == 0),
#   * fc (out_features = 1): VPU multiply + lane reduction, fused here.
# ----------------------------------------------------------------------------
def gru_last_fc(xs, wih_f, wih_b, whh_f, bgi_f, bgi_b, bhn_f, bhn_b,
                wfc_f, wfc_b, bfc, *, T, Bp, Hp, Tt):
    n_src = len(xs)
    nT = T // Tt
    rows = Tt * Bp
    unroll = Tt if Tt <= 8 else 8

    def kernel(*refs):
        x = refs[0:n_src]
        wf = refs[n_src:2 * n_src]
        wb = refs[2 * n_src:3 * n_src]
        (whh_ref, bgi_f_ref, bgi_b_ref, bhn_f_ref, bhn_b_ref,
         wfc_f_ref, wfc_b_ref, bfc_ref, y_ref, h_ref, gi_ref) = refs[3 * n_src:]

        i = pl.program_id(0)

        @pl.when(i == 0)
        def _():
            h_ref[...] = jnp.zeros_like(h_ref)

        acc = None
        for xr, wr in zip(x, wf):
            d = jnp.dot(xr[...], wr[...], preferred_element_type=jnp.float32)
            acc = d if acc is None else acc + d
        gi_ref[...] = acc + bgi_f_ref[...]

        whh = whh_ref[...]                                    # (Hp, 3Hp) bf16
        bf = jnp.broadcast_to(bhn_f_ref[...], (Bp, Hp))

        def step(j, h):
            r0 = pl.multiple_of(j * Bp, Bp)
            gi = gi_ref[pl.ds(r0, Bp), :]
            gh = jnp.dot(h.astype(jnp.bfloat16), whh,
                         preferred_element_type=jnp.float32)
            r = jax.nn.sigmoid(gi[:, :Hp] + gh[:, :Hp])
            z = jax.nn.sigmoid(gi[:, Hp:2 * Hp] + gh[:, Hp:2 * Hp])
            n = jnp.tanh(gi[:, 2 * Hp:] + r * (gh[:, 2 * Hp:] + bf))
            return n + z * (h - n)

        h_f = lax.fori_loop(0, Tt, step, h_ref[...], unroll=unroll)
        h_ref[...] = h_f

        @pl.when(i == nT - 1)
        def _():
            # Backward direction: only its first step is needed (t = T-1, h0 = 0).
            # x[T-1] is the last Bp-row block of the current (final) fwd tile.
            accb = None
            for xr, wr in zip(x, wb):
                xl = xr[pl.ds((Tt - 1) * Bp, Bp), :]
                d = jnp.dot(xl, wr[...], preferred_element_type=jnp.float32)
                accb = d if accb is None else accb + d
            gib = accb + bgi_b_ref[...]
            r_b = jax.nn.sigmoid(gib[:, :Hp])
            z_b = jax.nn.sigmoid(gib[:, Hp:2 * Hp])
            n_b = jnp.tanh(gib[:, 2 * Hp:] + r_b * bhn_b_ref[...])
            h_b = n_b - z_b * n_b                              # (1-z)*n with h0=0
            y_ref[...] = (jnp.sum(h_f * wfc_f_ref[...], axis=1, keepdims=True)
                          + jnp.sum(h_b * wfc_b_ref[...], axis=1, keepdims=True)
                          + bfc_ref[...])

    src_dims = [int(x.shape[1]) for x in xs]
    full = lambda a: pl.BlockSpec(a.shape, lambda i: (0, 0))
    in_specs = (
        [pl.BlockSpec((rows, d), lambda i: (i, 0)) for d in src_dims] +
        [full(w) for w in list(wih_f) + list(wih_b)] +
        [full(whh_f), full(bgi_f), full(bgi_b), full(bhn_f), full(bhn_b),
         full(wfc_f), full(wfc_b), full(bfc)])
    grid_spec = pltpu.PrefetchScalarGridSpec(
        num_scalar_prefetch=0, grid=(nT,),
        in_specs=in_specs,
        out_specs=pl.BlockSpec((Bp, 1), lambda i: (0, 0)),
        scratch_shapes=[pltpu.VMEM((Bp, Hp), jnp.float32),         # fwd h carry
                        pltpu.VMEM((rows, 3 * Hp), jnp.float32)])  # GI fwd tile
    return pl.pallas_call(
        kernel,
        out_shape=jax.ShapeDtypeStruct((Bp, 1), jnp.float32),
        grid_spec=grid_spec,
        compiler_params=pltpu.CompilerParams(
            dimension_semantics=("arbitrary",),
            vmem_limit_bytes=_VMEM_LIMIT_BYTES),
    )(*xs, *wih_f, *wih_b, whh_f, bgi_f, bgi_b, bhn_f, bhn_b, wfc_f, wfc_b, bfc)


# ----------------------------------------------------------------------------
# Plain-JAX glue: layout/padding + layer stacking.
# ----------------------------------------------------------------------------
def _pick_t_tile(T, t_tile):
    if t_tile is None:
        t_tile = min(T, 64)
        while T % t_tile:
            t_tile -= 1
    assert T % t_tile == 0, "sequence length must be divisible by the T tile"
    return t_tile


def rnn_model_forward(x, params, num_layers, t_tile=None):
    """Eval-mode forward of RNNModel.  x: (B, T, D) batch_first, returns (B, 1)."""
    B, T, D = x.shape
    H = params["gru"][0]["fwd"][1].shape[1]
    Bp = _round_up(max(B, 16), 16)    # sublane pad (16 = bf16 packed-tile rows)
    Hp = _round_up(H, 128)            # lane pad: gate slices/stores are whole tiles
    Dp = _round_up(D, 128)
    Tt = _pick_t_tile(T, t_tile)

    # batch_first -> time-major, pad (B, D), flatten to lane-dense (T*Bp, Dp) bf16.
    x_tbd = jnp.transpose(x, (1, 0, 2)).astype(jnp.float32)
    x_pad = jnp.zeros((T, Bp, Dp), jnp.float32).at[:, :B, :D].set(x_tbd)
    xs = [x_pad.reshape(T * Bp, Dp).astype(jnp.bfloat16)]

    y = None
    for layer in range(num_layers):
        p = params["gru"][layer]
        in_splits = ([(0, D, Dp)] if layer == 0
                     else [(0, H, Hp), (H, H, Hp)])
        wf, whh_f, bgi_f, bhn_f = _prep_dir(*p["fwd"], H, Hp, in_splits)
        wb, whh_b, bgi_b, bhn_b = _prep_dir(*p["bwd"], H, Hp, in_splits)

        if layer < num_layers - 1:
            # Block-diagonal [fwd | bwd] W_hh -> one MXU op per recurrence step.
            whh_bd = (jnp.zeros((2 * Hp, 6 * Hp), jnp.bfloat16)
                      .at[:Hp, :3 * Hp].set(whh_f)
                      .at[Hp:, 3 * Hp:].set(whh_b))
            out_f, out_b = gru_bidir_layer(
                xs, wf, wb, whh_bd, bgi_f, bgi_b, bhn_f, bhn_b,
                T=T, Bp=Bp, Hp=Hp, Tt=Tt)
            # TODO(synk): inter-layer dropout (training mode) not implemented; eval identity.
            xs = [out_f, out_b]
        else:
            fc_w = params["fc_w"].astype(jnp.float32)                 # (1, 2H)
            wfc_f = jnp.zeros((1, Hp), jnp.float32).at[0, :H].set(fc_w[0, :H])
            wfc_b = jnp.zeros((1, Hp), jnp.float32).at[0, :H].set(fc_w[0, H:])
            bfc = params["fc_b"].reshape(1, 1).astype(jnp.float32)
            # TODO(synk): output dropout (training mode) not implemented; eval identity.
            y_pad = gru_last_fc(
                xs, wf, wb, whh_f, bgi_f, bgi_b, bhn_f, bhn_b,
                wfc_f, wfc_b, bfc, T=T, Bp=Bp, Hp=Hp, Tt=Tt)
            y = y_pad[:B]
    return y


# ----------------------------------------------------------------------------
# Pure-JAX f32 reference (PyTorch nn.GRU / nn.Linear semantics, eval mode).
# ----------------------------------------------------------------------------
def gru_reference(x, params, num_layers):
    B, T, _ = x.shape

    def cell(x_t, h, w_ih, w_hh, b_ih, b_hh):
        H = w_hh.shape[1]
        gi = x_t @ w_ih.T + b_ih
        gh = h @ w_hh.T + b_hh
        r = jax.nn.sigmoid(gi[:, :H] + gh[:, :H])
        z = jax.nn.sigmoid(gi[:, H:2 * H] + gh[:, H:2 * H])
        n = jnp.tanh(gi[:, 2 * H:] + r * gh[:, 2 * H:])
        return (1.0 - z) * n + z * h

    out = x.astype(jnp.float32)
    for layer in range(num_layers):
        p = params["gru"][layer]
        H = p["fwd"][1].shape[1]
        h_f = jnp.zeros((B, H), jnp.float32)
        h_b = jnp.zeros((B, H), jnp.float32)
        fwd, bwd = [], []
        for t in range(T):
            h_f = cell(out[:, t], h_f, *p["fwd"])
            fwd.append(h_f)
        for t in range(T - 1, -1, -1):
            h_b = cell(out[:, t], h_b, *p["bwd"])
            bwd.append(h_b)
        bwd = bwd[::-1]
        out = jnp.stack([jnp.concatenate([f, b], axis=-1)
                         for f, b in zip(fwd, bwd)], axis=1)          # (B, T, 2H)
    return out[:, -1, :] @ params["fc_w"].T + params["fc_b"]


# ----------------------------------------------------------------------------
# Deterministic parameter initialization (shapes match nn.GRU / nn.Linear).
# ----------------------------------------------------------------------------
def init_params(key, input_dim, hidden_dim, num_layers):
    bound = 1.0 / (hidden_dim ** 0.5)

    def uni(k, shape, b):
        return jax.random.uniform(k, shape, jnp.float32, -b, b)

    params = {"gru": []}
    for layer in range(num_layers):
        in_dim = input_dim if layer == 0 else 2 * hidden_dim
        layer_p = {}
        for d in ("fwd", "bwd"):
            key, k1, k2, k3, k4 = jax.random.split(key, 5)
            layer_p[d] = (
                uni(k1, (3 * hidden_dim, in_dim), bound),      # W_ih
                uni(k2, (3 * hidden_dim, hidden_dim), bound),  # W_hh
                uni(k3, (3 * hidden_dim,), bound),             # b_ih
                uni(k4, (3 * hidden_dim,), bound),             # b_hh
            )
        params["gru"].append(layer_p)

    key, kw, kb = jax.random.split(key, 3)
    fc_bound = 1.0 / ((2 * hidden_dim) ** 0.5)
    params["fc_w"] = uni(kw, (1, 2 * hidden_dim), fc_bound)
    params["fc_b"] = uni(kb, (1,), fc_bound)
    return params


if __name__ == "__main__":
    BATCH, SEQ, INPUT_DIM = 2, 8, 4
    HIDDEN_DIM, NUM_LAYERS = 32, 2

    key = jax.random.PRNGKey(0)
    key, kx, kp = jax.random.split(key, 3)
    x = jax.random.normal(kx, (BATCH, SEQ, INPUT_DIM), jnp.float32)
    params = init_params(kp, INPUT_DIM, HIDDEN_DIM, NUM_LAYERS)

    forward = jax.jit(rnn_model_forward, static_argnums=(2, 3))
    # t_tile=4 -> 2-step T grid, exercising the pipelined h-carry and the
    # reversed backward-direction block indexing even at this tiny sequence.
    y = forward(x, params, NUM_LAYERS, 4)
    y = jax.block_until_ready(y)
    assert y.shape == (BATCH, 1)

    y_ref = gru_reference(x, params, NUM_LAYERS)
    err = float(jnp.max(jnp.abs(y - y_ref)))
    assert err < 4e-2, f"kernel/reference mismatch: max abs err = {err}"
    print("KERNEL_OK")
</pallas_src>

<mosaic_0001>
module attributes {stable_mosaic.version = 11 : i64} {
  func.func @kernel(%arg0: i32, %arg1: memref<64x128xbf16, #tpu.memory_space<vmem>>, %arg2: memref<64x128xbf16, #tpu.memory_space<vmem>>, %arg3: memref<128x384xbf16, #tpu.memory_space<vmem>>, %arg4: memref<128x384xbf16, #tpu.memory_space<vmem>>, %arg5: memref<256x768xbf16, #tpu.memory_space<vmem>>, %arg6: memref<1x384xf32, #tpu.memory_space<vmem>>, %arg7: memref<1x384xf32, #tpu.memory_space<vmem>>, %arg8: memref<1x128xf32, #tpu.memory_space<vmem>>, %arg9: memref<1x128xf32, #tpu.memory_space<vmem>>, %arg10: memref<64x128xbf16, #tpu.memory_space<vmem>>, %arg11: memref<64x128xbf16, #tpu.memory_space<vmem>>, %arg12: memref<16x256xf32, #tpu.memory_space<vmem>>, %arg13: memref<64x384xf32, #tpu.memory_space<vmem>>, %arg14: memref<64x384xf32, #tpu.memory_space<vmem>>) attributes {dimension_semantics = [#tpu.dimension_semantics<arbitrary>], iteration_bounds = array<i64: 2>, scalar_prefetch = 0 : i64, scratch_operands = 3 : i64, tpu.core_type = #tpu.core_type<tc>, window_params = [{transform_indices = @transform_0, window_bounds = array<i64: 64, 128>}, {transform_indices = @transform_1, window_bounds = array<i64: 64, 128>}, {pipeline_mode = #tpu.pipeline_mode<synchronous>, transform_indices = @transform_2, window_bounds = array<i64: 128, 384>}, {pipeline_mode = #tpu.pipeline_mode<synchronous>, transform_indices = @transform_3, window_bounds = array<i64: 128, 384>}, {pipeline_mode = #tpu.pipeline_mode<synchronous>, transform_indices = @transform_4, window_bounds = array<i64: 256, 768>}, {pipeline_mode = #tpu.pipeline_mode<synchronous>, transform_indices = @transform_5, window_bounds = array<i64: 1, 384>}, {pipeline_mode = #tpu.pipeline_mode<synchronous>, transform_indices = @transform_6, window_bounds = array<i64: 1, 384>}, {pipeline_mode = #tpu.pipeline_mode<synchronous>, transform_indices = @transform_7, window_bounds = array<i64: 1, 128>}, {pipeline_mode = #tpu.pipeline_mode<synchronous>, transform_indices = @transform_8, window_bounds = array<i64: 1, 128>}, {transform_indices = @transform_9, window_bounds = array<i64: 64, 128>}, {transform_indices = @transform_10, window_bounds = array<i64: 64, 128>}]} {
    %c0_i32 = arith.constant 0 : i32
    %0 = arith.cmpi eq, %arg0, %c0_i32 : i32
    %1 = arith.extui %0 : i1 to i32
    %c0_i32_0 = arith.constant 0 : i32
    %2 = arith.cmpi ne, %1, %c0_i32_0 : i32
    scf.if %2 {
      %cst_75 = arith.constant 0.000000e+00 : f32
      %314 = vector.broadcast %cst_75 : f32 to vector<16x256xf32>
      %c0_76 = arith.constant 0 : index
      %c0_77 = arith.constant 0 : index
      %315 = vector.load %arg12[%c0_76, %c0_77] : memref<16x256xf32, #tpu.memory_space<vmem>>, vector<16x256xf32>
      tpu.vector_store %arg12[%c0_76, %c0_77], %314 {strides = array<i32>} : memref<16x256xf32, #tpu.memory_space<vmem>>, vector<16x256xf32>,
    } else {
    }
    %c0 = arith.constant 0 : index
    %c0_1 = arith.constant 0 : index
    %3 = vector.load %arg1[%c0, %c0_1] : memref<64x128xbf16, #tpu.memory_space<vmem>>, vector<64x128xbf16>
    %c0_2 = arith.constant 0 : index
    %c0_3 = arith.constant 0 : index
    %4 = vector.load %arg3[%c0_2, %c0_3] : memref<128x384xbf16, #tpu.memory_space<vmem>>, vector<128x384xbf16>
    %cst = arith.constant dense<0.000000e+00> : vector<64x384xf32>
    %5 = tpu.matmul %3, %4, %cst {dimension_numbers = #tpu.dot_dimension_numbers<[1], [0], [0], [1], [0, 0, 1, 1], [], []>} : vector<64x128xbf16>, vector<128x384xbf16>, vector<64x384xf32> -> vector<64x384xf32>
    %c0_4 = arith.constant 0 : index
    %c0_5 = arith.constant 0 : index
    %6 = vector.load %arg6[%c0_4, %c0_5] : memref<1x384xf32, #tpu.memory_space<vmem>>, vector<1x384xf32>
    %7 = vector.broadcast %6 : vector<1x384xf32> to vector<64x384xf32>
    %8 = arith.addf %5, %7 : vector<64x384xf32>
    %c0_6 = arith.constant 0 : index
    %c0_7 = arith.constant 0 : index
    %9 = vector.load %arg13[%c0_6, %c0_7] : memref<64x384xf32, #tpu.memory_space<vmem>>, vector<64x384xf32>
    tpu.vector_store %arg13[%c0_6, %c0_7], %8 {strides = array<i32>} : memref<64x384xf32, #tpu.memory_space<vmem>>, vector<64x384xf32>,
    %c0_8 = arith.constant 0 : index
    %c0_9 = arith.constant 0 : index
    %10 = vector.load %arg2[%c0_8, %c0_9] : memref<64x128xbf16, #tpu.memory_space<vmem>>, vector<64x128xbf16>
    %c0_10 = arith.constant 0 : index
    %c0_11 = arith.constant 0 : index
    %11 = vector.load %arg4[%c0_10, %c0_11] : memref<128x384xbf16, #tpu.memory_space<vmem>>, vector<128x384xbf16>
    %cst_12 = arith.constant dense<0.000000e+00> : vector<64x384xf32>
    %12 = tpu.matmul %10, %11, %cst_12 {dimension_numbers = #tpu.dot_dimension_numbers<[1], [0], [0], [1], [0, 0, 1, 1], [], []>} : vector<64x128xbf16>, vector<128x384xbf16>, vector<64x384xf32> -> vector<64x384xf32>
    %c0_13 = arith.constant 0 : index
    %c0_14 = arith.constant 0 : index
    %13 = vector.load %arg7[%c0_13, %c0_14] : memref<1x384xf32, #tpu.memory_space<vmem>>, vector<1x384xf32>
    %14 = vector.broadcast %13 : vector<1x384xf32> to vector<64x384xf32>
    %15 = arith.addf %12, %14 : vector<64x384xf32>
    %c0_15 = arith.constant 0 : index
    %c0_16 = arith.constant 0 : index
    %16 = vector.load %arg14[%c0_15, %c0_16] : memref<64x384xf32, #tpu.memory_space<vmem>>, vector<64x384xf32>
    tpu.vector_store %arg14[%c0_15, %c0_16], %15 {strides = array<i32>} : memref<64x384xf32, #tpu.memory_space<vmem>>, vector<64x384xf32>,
    %c0_17 = arith.constant 0 : index
    %c0_18 = arith.constant 0 : index
    %17 = vector.load %arg5[%c0_17, %c0_18] : memref<256x768xbf16, #tpu.memory_space<vmem>>, vector<256x768xbf16>
    %c0_19 = arith.constant 0 : index
    %c0_20 = arith.constant 0 : index
    %18 = vector.load %arg8[%c0_19, %c0_20] : memref<1x128xf32, #tpu.memory_space<vmem>>, vector<1x128xf32>
    %19 = vector.shape_cast %18 : vector<1x128xf32> to vector<1x128xf32>
    %20 = vector.broadcast %19 : vector<1x128xf32> to vector<16x128xf32>
    %c0_21 = arith.constant 0 : index
    %c0_22 = arith.constant 0 : index
    %21 = vector.load %arg9[%c0_21, %c0_22] : memref<1x128xf32, #tpu.memory_space<vmem>>, vector<1x128xf32>
    %22 = vector.shape_cast %21 : vector<1x128xf32> to vector<1x128xf32>
    %23 = vector.broadcast %22 : vector<1x128xf32> to vector<16x128xf32>
    %c0_23 = arith.constant 0 : index
    %c0_24 = arith.constant 0 : index
    %24 = vector.load %arg12[%c0_23, %c0_24] : memref<16x256xf32, #tpu.memory_space<vmem>>, vector<16x256xf32>
    %c0_i32_25 = arith.constant 0 : i32
    %c16_i32 = arith.constant 16 : i32
    %25 = arith.muli %c0_i32_25, %c16_i32 : i32
    %26 = tpu.assume_multiple %25, 16 : i32
    %c3_i32 = arith.constant 3 : i32
    %27 = arith.subi %c3_i32, %c0_i32_25 : i32
    %c16_i32_26 = arith.constant 16 : i32
    %28 = arith.muli %27, %c16_i32_26 : i32
    %29 = tpu.assume_multiple %28, 16 : i32
    %30 = arith.truncf %24 : vector<16x256xf32> to vector<16x256xbf16>
    %cst_27 = arith.constant dense<0.000000e+00> : vector<16x768xf32>
    %31 = tpu.matmul %30, %17, %cst_27 {dimension_numbers = #tpu.dot_dimension_numbers<[1], [0], [0], [1], [0, 0, 1, 1], [], []>} : vector<16x256xbf16>, vector<256x768xbf16>, vector<16x768xf32> -> vector<16x768xf32>
    %32 = arith.index_cast %26 : i32 to index
    %c0_28 = arith.constant 0 : index
    %33 = vector.load %arg13[%32, %c0_28] : memref<64x384xf32, #tpu.memory_space<vmem>>, vector<16x384xf32>
    %34 = vector.extract_strided_slice %31 {offsets = [0, 0], sizes = [16, 384], strides = [1, 1]} : vector<16x768xf32> to vector<16x384xf32>
    %35 = vector.extract_strided_slice %24 {offsets = [0, 0], sizes = [16, 128], strides = [1, 1]} : vector<16x256xf32> to vector<16x128xf32>
    %36 = vector.extract_strided_slice %33 {offsets = [0, 0], sizes = [16, 128], strides = [1, 1]} : vector<16x384xf32> to vector<16x128xf32>
    %37 = vector.extract_strided_slice %34 {offsets = [0, 0], sizes = [16, 128], strides = [1, 1]} : vector<16x384xf32> to vector<16x128xf32>
    %38 = arith.addf %36, %37 : vector<16x128xf32>
    %39 = arith.negf %38 : vector<16x128xf32>
    %40 = math.exp %39 : vector<16x128xf32>
    %cst_29 = arith.constant 1.000000e+00 : f32
    %41 = vector.broadcast %cst_29 : f32 to vector<16x128xf32>
    %42 = arith.addf %41, %40 : vector<16x128xf32>
    %43 = arith.divf %41, %42 : vector<16x128xf32>
    %44 = vector.extract_strided_slice %33 {offsets = [0, 128], sizes = [16, 128], strides = [1, 1]} : vector<16x384xf32> to vector<16x128xf32>
    %45 = vector.extract_strided_slice %34 {offsets = [0, 128], sizes = [16, 128], strides = [1, 1]} : vector<16x384xf32> to vector<16x128xf32>
    %46 = arith.addf %44, %45 : vector<16x128xf32>
    %47 = arith.negf %46 : vector<16x128xf32>
    %48 = math.exp %47 : vector<16x128xf32>
    %cst_30 = arith.constant 1.000000e+00 : f32
    %49 = vector.broadcast %cst_30 : f32 to vector<16x128xf32>
    %50 = arith.addf %49, %48 : vector<16x128xf32>
    %51 = arith.divf %49, %50 : vector<16x128xf32>
    %52 = vector.extract_strided_slice %33 {offsets = [0, 256], sizes = [16, 128], strides = [1, 1]} : vector<16x384xf32> to vector<16x128xf32>
    %53 = vector.extract_strided_slice %34 {offsets = [0, 256], sizes = [16, 128], strides = [1, 1]} : vector<16x384xf32> to vector<16x128xf32>
    %54 = arith.addf %53, %20 : vector<16x128xf32>
    %55 = arith.mulf %43, %54 : vector<16x128xf32>
    %56 = arith.addf %52, %55 : vector<16x128xf32>
    %57 = math.tanh %56 : vector<16x128xf32>
    %58 = arith.subf %35, %57 : vector<16x128xf32>
    %59 = arith.mulf %51, %58 : vector<16x128xf32>
    %60 = arith.addf %57, %59 : vector<16x128xf32>
    %61 = arith.index_cast %29 : i32 to index
    %c0_31 = arith.constant 0 : index
    %62 = vector.load %arg14[%61, %c0_31] : memref<64x384xf32, #tpu.memory_space<vmem>>, vector<16x384xf32>
    %63 = vector.extract_strided_slice %31 {offsets = [0, 384], sizes = [16, 384], strides = [1, 1]} : vector<16x768xf32> to vector<16x384xf32>
    %64 = vector.extract_strided_slice %24 {offsets = [0, 128], sizes = [16, 128], strides = [1, 1]} : vector<16x256xf32> to vector<16x128xf32>
    %65 = vector.extract_strided_slice %62 {offsets = [0, 0], sizes = [16, 128], strides = [1, 1]} : vector<16x384xf32> to vector<16x128xf32>
    %66 = vector.extract_strided_slice %63 {offsets = [0, 0], sizes = [16, 128], strides = [1, 1]} : vector<16x384xf32> to vector<16x128xf32>
    %67 = arith.addf %65, %66 : vector<16x128xf32>
    %68 = arith.negf %67 : vector<16x128xf32>
    %69 = math.exp %68 : vector<16x128xf32>
    %cst_32 = arith.constant 1.000000e+00 : f32
    %70 = vector.broadcast %cst_32 : f32 to vector<16x128xf32>
    %71 = arith.addf %70, %69 : vector<16x128xf32>
    %72 = arith.divf %70, %71 : vector<16x128xf32>
    %73 = vector.extract_strided_slice %62 {offsets = [0, 128], sizes = [16, 128], strides = [1, 1]} : vector<16x384xf32> to vector<16x128xf32>
    %74 = vector.extract_strided_slice %63 {offsets = [0, 128], sizes = [16, 128], strides = [1, 1]} : vector<16x384xf32> to vector<16x128xf32>
    %75 = arith.addf %73, %74 : vector<16x128xf32>
    %76 = arith.negf %75 : vector<16x128xf32>
    %77 = math.exp %76 : vector<16x128xf32>
    %cst_33 = arith.constant 1.000000e+00 : f32
    %78 = vector.broadcast %cst_33 : f32 to vector<16x128xf32>
    %79 = arith.addf %78, %77 : vector<16x128xf32>
    %80 = arith.divf %78, %79 : vector<16x128xf32>
    %81 = vector.extract_strided_slice %62 {offsets = [0, 256], sizes = [16, 128], strides = [1, 1]} : vector<16x384xf32> to vector<16x128xf32>
    %82 = vector.extract_strided_slice %63 {offsets = [0, 256], sizes = [16, 128], strides = [1, 1]} : vector<16x384xf32> to vector<16x128xf32>
    %83 = arith.addf %82, %23 : vector<16x128xf32>
    %84 = arith.mulf %72, %83 : vector<16x128xf32>
    %85 = arith.addf %81, %84 : vector<16x128xf32>
    %86 = math.tanh %85 : vector<16x128xf32>
    %87 = arith.subf %64, %86 : vector<16x128xf32>
    %88 = arith.mulf %80, %87 : vector<16x128xf32>
    %89 = arith.addf %86, %88 : vector<16x128xf32>
    %90 = arith.truncf %60 : vector<16x128xf32> to vector<16x128xbf16>
    %91 = arith.index_cast %26 : i32 to index
    %c0_34 = arith.constant 0 : index
    %92 = vector.load %arg10[%91, %c0_34] : memref<64x128xbf16, #tpu.memory_space<vmem>>, vector<16x128xbf16>
    tpu.vector_store %arg10[%91, %c0_34], %90 {strides = array<i32>} : memref<64x128xbf16, #tpu.memory_space<vmem>>, vector<16x128xbf16>,
    %93 = arith.truncf %89 : vector<16x128xf32> to vector<16x128xbf16>
    %94 = arith.index_cast %29 : i32 to index
    %c0_35 = arith.constant 0 : index
    %95 = vector.load %arg11[%94, %c0_35] : memref<64x128xbf16, #tpu.memory_space<vmem>>, vector<16x128xbf16>
    tpu.vector_store %arg11[%94, %c0_35], %93 {strides = array<i32>} : memref<64x128xbf16, #tpu.memory_space<vmem>>, vector<16x128xbf16>,
    %96 = tpu.concatenate %60, %89 in 1 : vector<16x128xf32>, vector<16x128xf32> -> vector<16x256xf32>
    %c1_i32 = arith.constant 1 : i32
    %c16_i32_36 = arith.constant 16 : i32
    %97 = arith.muli %c1_i32, %c16_i32_36 : i32
    %98 = tpu.assume_multiple %97, 16 : i32
    %c3_i32_37 = arith.constant 3 : i32
    %99 = arith.subi %c3_i32_37, %c1_i32 : i32
    %c16_i32_38 = arith.constant 16 : i32
    %100 = arith.muli %99, %c16_i32_38 : i32
    %101 = tpu.assume_multiple %100, 16 : i32
    %102 = arith.truncf %96 : vector<16x256xf32> to vector<16x256xbf16>
    %cst_39 = arith.constant dense<0.000000e+00> : vector<16x768xf32>
    %103 = tpu.matmul %102, %17, %cst_39 {dimension_numbers = #tpu.dot_dimension_numbers<[1], [0], [0], [1], [0, 0, 1, 1], [], []>} : vector<16x256xbf16>, vector<256x768xbf16>, vector<16x768xf32> -> vector<16x768xf32>
    %104 = arith.index_cast %98 : i32 to index
    %c0_40 = arith.constant 0 : index
    %105 = vector.load %arg13[%104, %c0_40] : memref<64x384xf32, #tpu.memory_space<vmem>>, vector<16x384xf32>
    %106 = vector.extract_strided_slice %103 {offsets = [0, 0], sizes = [16, 384], strides = [1, 1]} : vector<16x768xf32> to vector<16x384xf32>
    %107 = vector.extract_strided_slice %96 {offsets = [0, 0], sizes = [16, 128], strides = [1, 1]} : vector<16x256xf32> to vector<16x128xf32>
    %108 = vector.extract_strided_slice %105 {offsets = [0, 0], sizes = [16, 128], strides = [1, 1]} : vector<16x384xf32> to vector<16x128xf32>
    %109 = vector.extract_strided_slice %106 {offsets = [0, 0], sizes = [16, 128], strides = [1, 1]} : vector<16x384xf32> to vector<16x128xf32>
    %110 = arith.addf %108, %109 : vector<16x128xf32>
    %111 = arith.negf %110 : vector<16x128xf32>
    %112 = math.exp %111 : vector<16x128xf32>
    %cst_41 = arith.constant 1.000000e+00 : f32
    %113 = vector.broadcast %cst_41 : f32 to vector<16x128xf32>
    %114 = arith.addf %113, %112 : vector<16x128xf32>
    %115 = arith.divf %113, %114 : vector<16x128xf32>
    %116 = vector.extract_strided_slice %105 {offsets = [0, 128], sizes = [16, 128], strides = [1, 1]} : vector<16x384xf32> to vector<16x128xf32>
    %117 = vector.extract_strided_slice %106 {offsets = [0, 128], sizes = [16, 128], strides = [1, 1]} : vector<16x384xf32> to vector<16x128xf32>
    %118 = arith.addf %116, %117 : vector<16x128xf32>
    %119 = arith.negf %118 : vector<16x128xf32>
    %120 = math.exp %119 : vector<16x128xf32>
    %cst_42 = arith.constant 1.000000e+00 : f32
    %121 = vector.broadcast %cst_42 : f32 to vector<16x128xf32>
    %122 = arith.addf %121, %120 : vector<16x128xf32>
    %123 = arith.divf %121, %122 : vector<16x128xf32>
    %124 = vector.extract_strided_slice %105 {offsets = [0, 256], sizes = [16, 128], strides = [1, 1]} : vector<16x384xf32> to vector<16x128xf32>
    %125 = vector.extract_strided_slice %106 {offsets = [0, 256], sizes = [16, 128], strides = [1, 1]} : vector<16x384xf32> to vector<16x128xf32>
    %126 = arith.addf %125, %20 : vector<16x128xf32>
    %127 = arith.mulf %115, %126 : vector<16x128xf32>
    %128 = arith.addf %124, %127 : vector<16x128xf32>
    %129 = math.tanh %128 : vector<16x128xf32>
    %130 = arith.subf %107, %129 : vector<16x128xf32>
    %131 = arith.mulf %123, %130 : vector<16x128xf32>
    %132 = arith.addf %129, %131 : vector<16x128xf32>
    %133 = arith.index_cast %101 : i32 to index
    %c0_43 = arith.constant 0 : index
    %134 = vector.load %arg14[%133, %c0_43] : memref<64x384xf32, #tpu.memory_space<vmem>>, vector<16x384xf32>
    %135 = vector.extract_strided_slice %103 {offsets = [0, 384], sizes = [16, 384], strides = [1, 1]} : vector<16x768xf32> to vector<16x384xf32>
    %136 = vector.extract_strided_slice %96 {offsets = [0, 128], sizes = [16, 128], strides = [1, 1]} : vector<16x256xf32> to vector<16x128xf32>
    %137 = vector.extract_strided_slice %134 {offsets = [0, 0], sizes = [16, 128], strides = [1, 1]} : vector<16x384xf32> to vector<16x128xf32>
    %138 = vector.extract_strided_slice %135 {offsets = [0, 0], sizes = [16, 128], strides = [1, 1]} : vector<16x384xf32> to vector<16x128xf32>
    %139 = arith.addf %137, %138 : vector<16x128xf32>
    %140 = arith.negf %139 : vector<16x128xf32>
    %141 = math.exp %140 : vector<16x128xf32>
    %cst_44 = arith.constant 1.000000e+00 : f32
    %142 = vector.broadcast %cst_44 : f32 to vector<16x128xf32>
    %143 = arith.addf %142, %141 : vector<16x128xf32>
    %144 = arith.divf %142, %143 : vector<16x128xf32>
    %145 = vector.extract_strided_slice %134 {offsets = [0, 128], sizes = [16, 128], strides = [1, 1]} : vector<16x384xf32> to vector<16x128xf32>
    %146 = vector.extract_strided_slice %135 {offsets = [0, 128], sizes = [16, 128], strides = [1, 1]} : vector<16x384xf32> to vector<16x128xf32>
    %147 = arith.addf %145, %146 : vector<16x128xf32>
    %148 = arith.negf %147 : vector<16x128xf32>
    %149 = math.exp %148 : vector<16x128xf32>
    %cst_45 = arith.constant 1.000000e+00 : f32
    %150 = vector.broadcast %cst_45 : f32 to vector<16x128xf32>
    %151 = arith.addf %150, %149 : vector<16x128xf32>
    %152 = arith.divf %150, %151 : vector<16x128xf32>
    %153 = vector.extract_strided_slice %134 {offsets = [0, 256], sizes = [16, 128], strides = [1, 1]} : vector<16x384xf32> to vector<16x128xf32>
    %154 = vector.extract_strided_slice %135 {offsets = [0, 256], sizes = [16, 128], strides = [1, 1]} : vector<16x384xf32> to vector<16x128xf32>
    %155 = arith.addf %154, %23 : vector<16x128xf32>
    %156 = arith.mulf %144, %155 : vector<16x128xf32>
    %157 = arith.addf %153, %156 : vector<16x128xf32>
    %158 = math.tanh %157 : vector<16x128xf32>
    %159 = arith.subf %136, %158 : vector<16x128xf32>
    %160 = arith.mulf %152, %159 : vector<16x128xf32>
    %161 = arith.addf %158, %160 : vector<16x128xf32>
    %162 = arith.truncf %132 : vector<16x128xf32> to vector<16x128xbf16>
    %163 = arith.index_cast %98 : i32 to index
    %c0_46 = arith.constant 0 : index
    %164 = vector.load %arg10[%163, %c0_46] : memref<64x128xbf16, #tpu.memory_space<vmem>>, vector<16x128xbf16>
    tpu.vector_store %arg10[%163, %c0_46], %162 {strides = array<i32>} : memref<64x128xbf16, #tpu.memory_space<vmem>>, vector<16x128xbf16>,
    %165 = arith.truncf %161 : vector<16x128xf32> to vector<16x128xbf16>
    %166 = arith.index_cast %101 : i32 to index
    %c0_47 = arith.constant 0 : index
    %167 = vector.load %arg11[%166, %c0_47] : memref<64x128xbf16, #tpu.memory_space<vmem>>, vector<16x128xbf16>
    tpu.vector_store %arg11[%166, %c0_47], %165 {strides = array<i32>} : memref<64x128xbf16, #tpu.memory_space<vmem>>, vector<16x128xbf16>,
    %168 = tpu.concatenate %132, %161 in 1 : vector<16x128xf32>, vector<16x128xf32> -> vector<16x256xf32>
    %c2_i32 = arith.constant 2 : i32
    %c16_i32_48 = arith.constant 16 : i32
    %169 = arith.muli %c2_i32, %c16_i32_48 : i32
    %170 = tpu.assume_multiple %169, 16 : i32
    %c3_i32_49 = arith.constant 3 : i32
    %171 = arith.subi %c3_i32_49, %c2_i32 : i32
    %c16_i32_50 = arith.constant 16 : i32
    %172 = arith.muli %171, %c16_i32_50 : i32
    %173 = tpu.assume_multiple %172, 16 : i32
    %174 = arith.truncf %168 : vector<16x256xf32> to vector<16x256xbf16>
    %cst_51 = arith.constant dense<0.000000e+00> : vector<16x768xf32>
    %175 = tpu.matmul %174, %17, %cst_51 {dimension_numbers = #tpu.dot_dimension_numbers<[1], [0], [0], [1], [0, 0, 1, 1], [], []>} : vector<16x256xbf16>, vector<256x768xbf16>, vector<16x768xf32> -> vector<16x768xf32>
    %176 = arith.index_cast %170 : i32 to index
    %c0_52 = arith.constant 0 : index
    %177 = vector.load %arg13[%176, %c0_52] : memref<64x384xf32, #tpu.memory_space<vmem>>, vector<16x384xf32>
    %178 = vector.extract_strided_slice %175 {offsets = [0, 0], sizes = [16, 384], strides = [1, 1]} : vector<16x768xf32> to vector<16x384xf32>
    %179 = vector.extract_strided_slice %168 {offsets = [0, 0], sizes = [16, 128], strides = [1, 1]} : vector<16x256xf32> to vector<16x128xf32>
    %180 = vector.extract_strided_slice %177 {offsets = [0, 0], sizes = [16, 128], strides = [1, 1]} : vector<16x384xf32> to vector<16x128xf32>
    %181 = vector.extract_strided_slice %178 {offsets = [0, 0], sizes = [16, 128], strides = [1, 1]} : vector<16x384xf32> to vector<16x128xf32>
    %182 = arith.addf %180, %181 : vector<16x128xf32>
    %183 = arith.negf %182 : vector<16x128xf32>
    %184 = math.exp %183 : vector<16x128xf32>
    %cst_53 = arith.constant 1.000000e+00 : f32
    %185 = vector.broadcast %cst_53 : f32 to vector<16x128xf32>
    %186 = arith.addf %185, %184 : vector<16x128xf32>
    %187 = arith.divf %185, %186 : vector<16x128xf32>
    %188 = vector.extract_strided_slice %177 {offsets = [0, 128], sizes = [16, 128], strides = [1, 1]} : vector<16x384xf32> to vector<16x128xf32>
    %189 = vector.extract_strided_slice %178 {offsets = [0, 128], sizes = [16, 128], strides = [1, 1]} : vector<16x384xf32> to vector<16x128xf32>
    %190 = arith.addf %188, %189 : vector<16x128xf32>
    %191 = arith.negf %190 : vector<16x128xf32>
    %192 = math.exp %191 : vector<16x128xf32>
    %cst_54 = arith.constant 1.000000e+00 : f32
    %193 = vector.broadcast %cst_54 : f32 to vector<16x128xf32>
    %194 = arith.addf %193, %192 : vector<16x128xf32>
    %195 = arith.divf %193, %194 : vector<16x128xf32>
    %196 = vector.extract_strided_slice %177 {offsets = [0, 256], sizes = [16, 128], strides = [1, 1]} : vector<16x384xf32> to vector<16x128xf32>
    %197 = vector.extract_strided_slice %178 {offsets = [0, 256], sizes = [16, 128], strides = [1, 1]} : vector<16x384xf32> to vector<16x128xf32>
    %198 = arith.addf %197, %20 : vector<16x128xf32>
    %199 = arith.mulf %187, %198 : vector<16x128xf32>
    %200 = arith.addf %196, %199 : vector<16x128xf32>
    %201 = math.tanh %200 : vector<16x128xf32>
    %202 = arith.subf %179, %201 : vector<16x128xf32>
    %203 = arith.mulf %195, %202 : vector<16x128xf32>
    %204 = arith.addf %201, %203 : vector<16x128xf32>
    %205 = arith.index_cast %173 : i32 to index
    %c0_55 = arith.constant 0 : index
    %206 = vector.load %arg14[%205, %c0_55] : memref<64x384xf32, #tpu.memory_space<vmem>>, vector<16x384xf32>
    %207 = vector.extract_strided_slice %175 {offsets = [0, 384], sizes = [16, 384], strides = [1, 1]} : vector<16x768xf32> to vector<16x384xf32>
    %208 = vector.extract_strided_slice %168 {offsets = [0, 128], sizes = [16, 128], strides = [1, 1]} : vector<16x256xf32> to vector<16x128xf32>
    %209 = vector.extract_strided_slice %206 {offsets = [0, 0], sizes = [16, 128], strides = [1, 1]} : vector<16x384xf32> to vector<16x128xf32>
    %210 = vector.extract_strided_slice %207 {offsets = [0, 0], sizes = [16, 128], strides = [1, 1]} : vector<16x384xf32> to vector<16x128xf32>
    %211 = arith.addf %209, %210 : vector<16x128xf32>
    %212 = arith.negf %211 : vector<16x128xf32>
    %213 = math.exp %212 : vector<16x128xf32>
    %cst_56 = arith.constant 1.000000e+00 : f32
    %214 = vector.broadcast %cst_56 : f32 to vector<16x128xf32>
    %215 = arith.addf %214, %213 : vector<16x128xf32>
    %216 = arith.divf %214, %215 : vector<16x128xf32>
    %217 = vector.extract_strided_slice %206 {offsets = [0, 128], sizes = [16, 128], strides = [1, 1]} : vector<16x384xf32> to vector<16x128xf32>
    %218 = vector.extract_strided_slice %207 {offsets = [0, 128], sizes = [16, 128], strides = [1, 1]} : vector<16x384xf32> to vector<16x128xf32>
    %219 = arith.addf %217, %218 : vector<16x128xf32>
    %220 = arith.negf %219 : vector<16x128xf32>
    %221 = math.exp %220 : vector<16x128xf32>
    %cst_57 = arith.constant 1.000000e+00 : f32
    %222 = vector.broadcast %cst_57 : f32 to vector<16x128xf32>
    %223 = arith.addf %222, %221 : vector<16x128xf32>
    %224 = arith.divf %222, %223 : vector<16x128xf32>
    %225 = vector.extract_strided_slice %206 {offsets = [0, 256], sizes = [16, 128], strides = [1, 1]} : vector<16x384xf32> to vector<16x128xf32>
    %226 = vector.extract_strided_slice %207 {offsets = [0, 256], sizes = [16, 128], strides = [1, 1]} : vector<16x384xf32> to vector<16x128xf32>
    %227 = arith.addf %226, %23 : vector<16x128xf32>
    %228 = arith.mulf %216, %227 : vector<16x128xf32>
    %229 = arith.addf %225, %228 : vector<16x128xf32>
    %230 = math.tanh %229 : vector<16x128xf32>
    %231 = arith.subf %208, %230 : vector<16x128xf32>
    %232 = arith.mulf %224, %231 : vector<16x128xf32>
    %233 = arith.addf %230, %232 : vector<16x128xf32>
    %234 = arith.truncf %204 : vector<16x128xf32> to vector<16x128xbf16>
    %235 = arith.index_cast %170 : i32 to index
    %c0_58 = arith.constant 0 : index
    %236 = vector.load %arg10[%235, %c0_58] : memref<64x128xbf16, #tpu.memory_space<vmem>>, vector<16x128xbf16>
    tpu.vector_store %arg10[%235, %c0_58], %234 {strides = array<i32>} : memref<64x128xbf16, #tpu.memory_space<vmem>>, vector<16x128xbf16>,
    %237 = arith.truncf %233 : vector<16x128xf32> to vector<16x128xbf16>
    %238 = arith.index_cast %173 : i32 to index
    %c0_59 = arith.constant 0 : index
    %239 = vector.load %arg11[%238, %c0_59] : memref<64x128xbf16, #tpu.memory_space<vmem>>, vector<16x128xbf16>
    tpu.vector_store %arg11[%238, %c0_59], %237 {strides = array<i32>} : memref<64x128xbf16, #tpu.memory_space<vmem>>, vector<16x128xbf16>,
    %240 = tpu.concatenate %204, %233 in 1 : vector<16x128xf32>, vector<16x128xf32> -> vector<16x256xf32>
    %c3_i32_60 = arith.constant 3 : i32
    %c16_i32_61 = arith.constant 16 : i32
    %241 = arith.muli %c3_i32_60, %c16_i32_61 : i32
    %242 = tpu.assume_multiple %241, 16 : i32
    %c3_i32_62 = arith.constant 3 : i32
    %243 = arith.subi %c3_i32_62, %c3_i32_60 : i32
    %c16_i32_63 = arith.constant 16 : i32
    %244 = arith.muli %243, %c16_i32_63 : i32
    %245 = tpu.assume_multiple %244, 16 : i32
    %246 = arith.truncf %240 : vector<16x256xf32> to vector<16x256xbf16>
    %cst_64 = arith.constant dense<0.000000e+00> : vector<16x768xf32>
    %247 = tpu.matmul %246, %17, %cst_64 {dimension_numbers = #tpu.dot_dimension_numbers<[1], [0], [0], [1], [0, 0, 1, 1], [], []>} : vector<16x256xbf16>, vector<256x768xbf16>, vector<16x768xf32> -> vector<16x768xf32>
    %248 = arith.index_cast %242 : i32 to index
    %c0_65 = arith.constant 0 : index
    %249 = vector.load %arg13[%248, %c0_65] : memref<64x384xf32, #tpu.memory_space<vmem>>, vector<16x384xf32>
    %250 = vector.extract_strided_slice %247 {offsets = [0, 0], sizes = [16, 384], strides = [1, 1]} : vector<16x768xf32> to vector<16x384xf32>
    %251 = vector.extract_strided_slice %240 {offsets = [0, 0], sizes = [16, 128], strides = [1, 1]} : vector<16x256xf32> to vector<16x128xf32>
    %252 = vector.extract_strided_slice %249 {offsets = [0, 0], sizes = [16, 128], strides = [1, 1]} : vector<16x384xf32> to vector<16x128xf32>
    %253 = vector.extract_strided_slice %250 {offsets = [0, 0], sizes = [16, 128], strides = [1, 1]} : vector<16x384xf32> to vector<16x128xf32>
    %254 = arith.addf %252, %253 : vector<16x128xf32>
    %255 = arith.negf %254 : vector<16x128xf32>
    %256 = math.exp %255 : vector<16x128xf32>
    %cst_66 = arith.constant 1.000000e+00 : f32
    %257 = vector.broadcast %cst_66 : f32 to vector<16x128xf32>
    %258 = arith.addf %257, %256 : vector<16x128xf32>
    %259 = arith.divf %257, %258 : vector<16x128xf32>
    %260 = vector.extract_strided_slice %249 {offsets = [0, 128], sizes = [16, 128], strides = [1, 1]} : vector<16x384xf32> to vector<16x128xf32>
    %261 = vector.extract_strided_slice %250 {offsets = [0, 128], sizes = [16, 128], strides = [1, 1]} : vector<16x384xf32> to vector<16x128xf32>
    %262 = arith.addf %260, %261 : vector<16x128xf32>
    %263 = arith.negf %262 : vector<16x128xf32>
    %264 = math.exp %263 : vector<16x128xf32>
    %cst_67 = arith.constant 1.000000e+00 : f32
    %265 = vector.broadcast %cst_67 : f32 to vector<16x128xf32>
    %266 = arith.addf %265, %264 : vector<16x128xf32>
    %267 = arith.divf %265, %266 : vector<16x128xf32>
    %268 = vector.extract_strided_slice %249 {offsets = [0, 256], sizes = [16, 128], strides = [1, 1]} : vector<16x384xf32> to vector<16x128xf32>
    %269 = vector.extract_strided_slice %250 {offsets = [0, 256], sizes = [16, 128], strides = [1, 1]} : vector<16x384xf32> to vector<16x128xf32>
    %270 = arith.addf %269, %20 : vector<16x128xf32>
    %271 = arith.mulf %259, %270 : vector<16x128xf32>
    %272 = arith.addf %268, %271 : vector<16x128xf32>
    %273 = math.tanh %272 : vector<16x128xf32>
    %274 = arith.subf %251, %273 : vector<16x128xf32>
    %275 = arith.mulf %267, %274 : vector<16x128xf32>
    %276 = arith.addf %273, %275 : vector<16x128xf32>
    %277 = arith.index_cast %245 : i32 to index
    %c0_68 = arith.constant 0 : index
    %278 = vector.load %arg14[%277, %c0_68] : memref<64x384xf32, #tpu.memory_space<vmem>>, vector<16x384xf32>
    %279 = vector.extract_strided_slice %247 {offsets = [0, 384], sizes = [16, 384], strides = [1, 1]} : vector<16x768xf32> to vector<16x384xf32>
    %280 = vector.extract_strided_slice %240 {offsets = [0, 128], sizes = [16, 128], strides = [1, 1]} : vector<16x256xf32> to vector<16x128xf32>
    %281 = vector.extract_strided_slice %278 {offsets = [0, 0], sizes = [16, 128], strides = [1, 1]} : vector<16x384xf32> to vector<16x128xf32>
    %282 = vector.extract_strided_slice %279 {offsets = [0, 0], sizes = [16, 128], strides = [1, 1]} : vector<16x384xf32> to vector<16x128xf32>
    %283 = arith.addf %281, %282 : vector<16x128xf32>
    %284 = arith.negf %283 : vector<16x128xf32>
    %285 = math.exp %284 : vector<16x128xf32>
    %cst_69 = arith.constant 1.000000e+00 : f32
    %286 = vector.broadcast %cst_69 : f32 to vector<16x128xf32>
    %287 = arith.addf %286, %285 : vector<16x128xf32>
    %288 = arith.divf %286, %287 : vector<16x128xf32>
    %289 = vector.extract_strided_slice %278 {offsets = [0, 128], sizes = [16, 128], strides = [1, 1]} : vector<16x384xf32> to vector<16x128xf32>
    %290 = vector.extract_strided_slice %279 {offsets = [0, 128], sizes = [16, 128], strides = [1, 1]} : vector<16x384xf32> to vector<16x128xf32>
    %291 = arith.addf %289, %290 : vector<16x128xf32>
    %292 = arith.negf %291 : vector<16x128xf32>
    %293 = math.exp %292 : vector<16x128xf32>
    %cst_70 = arith.constant 1.000000e+00 : f32
    %294 = vector.broadcast %cst_70 : f32 to vector<16x128xf32>
    %295 = arith.addf %294, %293 : vector<16x128xf32>
    %296 = arith.divf %294, %295 : vector<16x128xf32>
    %297 = vector.extract_strided_slice %278 {offsets = [0, 256], sizes = [16, 128], strides = [1, 1]} : vector<16x384xf32> to vector<16x128xf32>
    %298 = vector.extract_strided_slice %279 {offsets = [0, 256], sizes = [16, 128], strides = [1, 1]} : vector<16x384xf32> to vector<16x128xf32>
    %299 = arith.addf %298, %23 : vector<16x128xf32>
    %300 = arith.mulf %288, %299 : vector<16x128xf32>
    %301 = arith.addf %297, %300 : vector<16x128xf32>
    %302 = math.tanh %301 : vector<16x128xf32>
    %303 = arith.subf %280, %302 : vector<16x128xf32>
    %304 = arith.mulf %296, %303 : vector<16x128xf32>
    %305 = arith.addf %302, %304 : vector<16x128xf32>
    %306 = arith.truncf %276 : vector<16x128xf32> to vector<16x128xbf16>
    %307 = arith.index_cast %242 : i32 to index
    %c0_71 = arith.constant 0 : index
    %308 = vector.load %arg10[%307, %c0_71] : memref<64x128xbf16, #tpu.memory_space<vmem>>, vector<16x128xbf16>
    tpu.vector_store %arg10[%307, %c0_71], %306 {strides = array<i32>} : memref<64x128xbf16, #tpu.memory_space<vmem>>, vector<16x128xbf16>,
    %309 = arith.truncf %305 : vector<16x128xf32> to vector<16x128xbf16>
    %310 = arith.index_cast %245 : i32 to index
    %c0_72 = arith.constant 0 : index
    %311 = vector.load %arg11[%310, %c0_72] : memref<64x128xbf16, #tpu.memory_space<vmem>>, vector<16x128xbf16>
    tpu.vector_store %arg11[%310, %c0_72], %309 {strides = array<i32>} : memref<64x128xbf16, #tpu.memory_space<vmem>>, vector<16x128xbf16>,
    %312 = tpu.concatenate %276, %305 in 1 : vector<16x128xf32>, vector<16x128xf32> -> vector<16x256xf32>
    %c4_i32 = arith.constant 4 : i32
    %c0_73 = arith.constant 0 : index
    %c0_74 = arith.constant 0 : index
    %313 = vector.load %arg12[%c0_73, %c0_74] : memref<16x256xf32, #tpu.memory_space<vmem>>, vector<16x256xf32>
    tpu.vector_store %arg12[%c0_73, %c0_74], %312 {strides = array<i32>} : memref<16x256xf32, #tpu.memory_space<vmem>>, vector<16x256xf32>,
    return
  }
  func.func @transform_0(%arg0: i32) -> (i32, i32) {
    %c0_i32 = arith.constant 0 : i32
    %c0_i32_0 = arith.constant 0 : i32
    return %arg0, %c0_i32 : i32, i32
  }
  func.func @transform_1(%arg0: i32) -> (i32, i32) {
    %c1_i32 = arith.constant 1 : i32
    %0 = arith.subi %c1_i32, %arg0 : i32
    %c0_i32 = arith.constant 0 : i32
    %c0_i32_0 = arith.constant 0 : i32
    return %0, %c0_i32 : i32, i32
  }
  func.func @transform_2(%arg0: i32) -> (i32, i32) {
    %c0_i32 = arith.constant 0 : i32
    %c0_i32_0 = arith.constant 0 : i32
    %c0_i32_1 = arith.constant 0 : i32
    return %c0_i32, %c0_i32_0 : i32, i32
  }
  func.func @transform_3(%arg0: i32) -> (i32, i32) {
    %c0_i32 = arith.constant 0 : i32
    %c0_i32_0 = arith.constant 0 : i32
    %c0_i32_1 = arith.constant 0 : i32
    return %c0_i32, %c0_i32_0 : i32, i32
  }
  func.func @transform_4(%arg0: i32) -> (i32, i32) {
    %c0_i32 = arith.constant 0 : i32
    %c0_i32_0 = arith.constant 0 : i32
    %c0_i32_1 = arith.constant 0 : i32
    return %c0_i32, %c0_i32_0 : i32, i32
  }
  func.func @transform_5(%arg0: i32) -> (i32, i32) {
    %c0_i32 = arith.constant 0 : i32
    %c0_i32_0 = arith.constant 0 : i32
    %c0_i32_1 = arith.constant 0 : i32
    return %c0_i32, %c0_i32_0 : i32, i32
  }
  func.func @transform_6(%arg0: i32) -> (i32, i32) {
    %c0_i32 = arith.constant 0 : i32
    %c0_i32_0 = arith.constant 0 : i32
    %c0_i32_1 = arith.constant 0 : i32
    return %c0_i32, %c0_i32_0 : i32, i32
  }
  func.func @transform_7(%arg0: i32) -> (i32, i32) {
    %c0_i32 = arith.constant 0 : i32
    %c0_i32_0 = arith.constant 0 : i32
    %c0_i32_1 = arith.constant 0 : i32
    return %c0_i32, %c0_i32_0 : i32, i32
  }
  func.func @transform_8(%arg0: i32) -> (i32, i32) {
    %c0_i32 = arith.constant 0 : i32
    %c0_i32_0 = arith.constant 0 : i32
    %c0_i32_1 = arith.constant 0 : i32
    return %c0_i32, %c0_i32_0 : i32, i32
  }
  func.func @transform_9(%arg0: i32) -> (i32, i32) {
    %c0_i32 = arith.constant 0 : i32
    %c0_i32_0 = arith.constant 0 : i32
    return %arg0, %c0_i32 : i32, i32
  }
  func.func @transform_10(%arg0: i32) -> (i32, i32) {
    %c1_i32 = arith.constant 1 : i32
    %0 = arith.subi %c1_i32, %arg0 : i32
    %c0_i32 = arith.constant 0 : i32
    %c0_i32_0 = arith.constant 0 : i32
    return %0, %c0_i32 : i32, i32
  }
}

module attributes {stable_mosaic.version = 11 : i64} {
  func.func @kernel(%arg0: i32, %arg1: memref<64x128xbf16, #tpu.memory_space<vmem>>, %arg2: memref<64x128xbf16, #tpu.memory_space<vmem>>, %arg3: memref<128x384xbf16, #tpu.memory_space<vmem>>, %arg4: memref<128x384xbf16, #tpu.memory_space<vmem>>, %arg5: memref<128x384xbf16, #tpu.memory_space<vmem>>, %arg6: memref<128x384xbf16, #tpu.memory_space<vmem>>, %arg7: memref<128x384xbf16, #tpu.memory_space<vmem>>, %arg8: memref<1x384xf32, #tpu.memory_space<vmem>>, %arg9: memref<1x384xf32, #tpu.memory_space<vmem>>, %arg10: memref<1x128xf32, #tpu.memory_space<vmem>>, %arg11: memref<1x128xf32, #tpu.memory_space<vmem>>, %arg12: memref<1x128xf32, #tpu.memory_space<vmem>>, %arg13: memref<1x128xf32, #tpu.memory_space<vmem>>, %arg14: memref<1x1xf32, #tpu.memory_space<vmem>>, %arg15: memref<16x1xf32, #tpu.memory_space<vmem>>, %arg16: memref<16x128xf32, #tpu.memory_space<vmem>>, %arg17: memref<64x384xf32, #tpu.memory_space<vmem>>) attributes {dimension_semantics = [#tpu.dimension_semantics<arbitrary>], iteration_bounds = array<i64: 2>, scalar_prefetch = 0 : i64, scratch_operands = 2 : i64, tpu.core_type = #tpu.core_type<tc>, window_params = [{transform_indices = @transform_0, window_bounds = array<i64: 64, 128>}, {transform_indices = @transform_1, window_bounds = array<i64: 64, 128>}, {pipeline_mode = #tpu.pipeline_mode<synchronous>, transform_indices = @transform_2, window_bounds = array<i64: 128, 384>}, {pipeline_mode = #tpu.pipeline_mode<synchronous>, transform_indices = @transform_3, window_bounds = array<i64: 128, 384>}, {pipeline_mode = #tpu.pipeline_mode<synchronous>, transform_indices = @transform_4, window_bounds = array<i64: 128, 384>}, {pipeline_mode = #tpu.pipeline_mode<synchronous>, transform_indices = @transform_5, window_bounds = array<i64: 128, 384>}, {pipeline_mode = #tpu.pipeline_mode<synchronous>, transform_indices = @transform_6, window_bounds = array<i64: 128, 384>}, {pipeline_mode = #tpu.pipeline_mode<synchronous>, transform_indices = @transform_7, window_bounds = array<i64: 1, 384>}, {pipeline_mode = #tpu.pipeline_mode<synchronous>, transform_indices = @transform_8, window_bounds = array<i64: 1, 384>}, {pipeline_mode = #tpu.pipeline_mode<synchronous>, transform_indices = @transform_9, window_bounds = array<i64: 1, 128>}, {pipeline_mode = #tpu.pipeline_mode<synchronous>, transform_indices = @transform_10, window_bounds = array<i64: 1, 128>}, {pipeline_mode = #tpu.pipeline_mode<synchronous>, transform_indices = @transform_11, window_bounds = array<i64: 1, 128>}, {pipeline_mode = #tpu.pipeline_mode<synchronous>, transform_indices = @transform_12, window_bounds = array<i64: 1, 128>}, {pipeline_mode = #tpu.pipeline_mode<synchronous>, transform_indices = @transform_13, window_bounds = array<i64: 1, 1>}, {pipeline_mode = #tpu.pipeline_mode<synchronous>, transform_indices = @transform_14, window_bounds = array<i64: 16, 1>}]} {
    %c0_i32 = arith.constant 0 : i32
    %0 = arith.cmpi eq, %arg0, %c0_i32 : i32
    %1 = arith.extui %0 : i1 to i32
    %c0_i32_0 = arith.constant 0 : i32
    %2 = arith.cmpi ne, %1, %c0_i32_0 : i32
    scf.if %2 {
      %cst_43 = arith.constant 0.000000e+00 : f32
      %147 = vector.broadcast %cst_43 : f32 to vector<16x128xf32>
      %c0_44 = arith.constant 0 : index
      %c0_45 = arith.constant 0 : index
      %148 = vector.load %arg16[%c0_44, %c0_45] : memref<16x128xf32, #tpu.memory_space<vmem>>, vector<16x128xf32>
      tpu.vector_store %arg16[%c0_44, %c0_45], %147 {strides = array<i32>} : memref<16x128xf32, #tpu.memory_space<vmem>>, vector<16x128xf32>,
    } else {
    }
    %c0 = arith.constant 0 : index
    %c0_1 = arith.constant 0 : index
    %3 = vector.load %arg1[%c0, %c0_1] : memref<64x128xbf16, #tpu.memory_space<vmem>>, vector<64x128xbf16>
    %c0_2 = arith.constant 0 : index
    %c0_3 = arith.constant 0 : index
    %4 = vector.load %arg3[%c0_2, %c0_3] : memref<128x384xbf16, #tpu.memory_space<vmem>>, vector<128x384xbf16>
    %cst = arith.constant dense<0.000000e+00> : vector<64x384xf32>
    %5 = tpu.matmul %3, %4, %cst {dimension_numbers = #tpu.dot_dimension_numbers<[1], [0], [0], [1], [0, 0, 1, 1], [], []>} : vector<64x128xbf16>, vector<128x384xbf16>, vector<64x384xf32> -> vector<64x384xf32>
    %c0_4 = arith.constant 0 : index
    %c0_5 = arith.constant 0 : index
    %6 = vector.load %arg2[%c0_4, %c0_5] : memref<64x128xbf16, #tpu.memory_space<vmem>>, vector<64x128xbf16>
    %c0_6 = arith.constant 0 : index
    %c0_7 = arith.constant 0 : index
    %7 = vector.load %arg4[%c0_6, %c0_7] : memref<128x384xbf16, #tpu.memory_space<vmem>>, vector<128x384xbf16>
    %cst_8 = arith.constant dense<0.000000e+00> : vector<64x384xf32>
    %8 = tpu.matmul %6, %7, %cst_8 {dimension_numbers = #tpu.dot_dimension_numbers<[1], [0], [0], [1], [0, 0, 1, 1], [], []>} : vector<64x128xbf16>, vector<128x384xbf16>, vector<64x384xf32> -> vector<64x384xf32>
    %9 = arith.addf %5, %8 : vector<64x384xf32>
    %c0_9 = arith.constant 0 : index
    %c0_10 = arith.constant 0 : index
    %10 = vector.load %arg8[%c0_9, %c0_10] : memref<1x384xf32, #tpu.memory_space<vmem>>, vector<1x384xf32>
    %11 = vector.broadcast %10 : vector<1x384xf32> to vector<64x384xf32>
    %12 = arith.addf %9, %11 : vector<64x384xf32>
    %c0_11 = arith.constant 0 : index
    %c0_12 = arith.constant 0 : index
    %13 = vector.load %arg17[%c0_11, %c0_12] : memref<64x384xf32, #tpu.memory_space<vmem>>, vector<64x384xf32>
    tpu.vector_store %arg17[%c0_11, %c0_12], %12 {strides = array<i32>} : memref<64x384xf32, #tpu.memory_space<vmem>>, vector<64x384xf32>,
    %c0_13 = arith.constant 0 : index
    %c0_14 = arith.constant 0 : index
    %14 = vector.load %arg7[%c0_13, %c0_14] : memref<128x384xbf16, #tpu.memory_space<vmem>>, vector<128x384xbf16>
    %c0_15 = arith.constant 0 : index
    %c0_16 = arith.constant 0 : index
    %15 = vector.load %arg10[%c0_15, %c0_16] : memref<1x128xf32, #tpu.memory_space<vmem>>, vector<1x128xf32>
    %16 = vector.shape_cast %15 : vector<1x128xf32> to vector<1x128xf32>
    %17 = vector.broadcast %16 : vector<1x128xf32> to vector<16x128xf32>
    %c0_17 = arith.constant 0 : index
    %c0_18 = arith.constant 0 : index
    %18 = vector.load %arg16[%c0_17, %c0_18] : memref<16x128xf32, #tpu.memory_space<vmem>>, vector<16x128xf32>
    %c0_i32_19 = arith.constant 0 : i32
    %c16_i32 = arith.constant 16 : i32
    %19 = arith.muli %c0_i32_19, %c16_i32 : i32
    %20 = tpu.assume_multiple %19, 16 : i32
    %21 = arith.index_cast %20 : i32 to index
    %c0_20 = arith.constant 0 : index
    %22 = vector.load %arg17[%21, %c0_20] : memref<64x384xf32, #tpu.memory_space<vmem>>, vector<16x384xf32>
    %23 = arith.truncf %18 : vector<16x128xf32> to vector<16x128xbf16>
    %cst_21 = arith.constant dense<0.000000e+00> : vector<16x384xf32>
    %24 = tpu.matmul %23, %14, %cst_21 {dimension_numbers = #tpu.dot_dimension_numbers<[1], [0], [0], [1], [0, 0, 1, 1], [], []>} : vector<16x128xbf16>, vector<128x384xbf16>, vector<16x384xf32> -> vector<16x384xf32>
    %25 = vector.extract_strided_slice %22 {offsets = [0, 0], sizes = [16, 128], strides = [1, 1]} : vector<16x384xf32> to vector<16x128xf32>
    %26 = vector.extract_strided_slice %24 {offsets = [0, 0], sizes = [16, 128], strides = [1, 1]} : vector<16x384xf32> to vector<16x128xf32>
    %27 = arith.addf %25, %26 : vector<16x128xf32>
    %28 = arith.negf %27 : vector<16x128xf32>
    %29 = math.exp %28 : vector<16x128xf32>
    %cst_22 = arith.constant 1.000000e+00 : f32
    %30 = vector.broadcast %cst_22 : f32 to vector<16x128xf32>
    %31 = arith.addf %30, %29 : vector<16x128xf32>
    %32 = arith.divf %30, %31 : vector<16x128xf32>
    %33 = vector.extract_strided_slice %22 {offsets = [0, 128], sizes = [16, 128], strides = [1, 1]} : vector<16x384xf32> to vector<16x128xf32>
    %34 = vector.extract_strided_slice %24 {offsets = [0, 128], sizes = [16, 128], strides = [1, 1]} : vector<16x384xf32> to vector<16x128xf32>
    %35 = arith.addf %33, %34 : vector<16x128xf32>
    %36 = arith.negf %35 : vector<16x128xf32>
    %37 = math.exp %36 : vector<16x128xf32>
    %cst_23 = arith.constant 1.000000e+00 : f32
    %38 = vector.broadcast %cst_23 : f32 to vector<16x128xf32>
    %39 = arith.addf %38, %37 : vector<16x128xf32>
    %40 = arith.divf %38, %39 : vector<16x128xf32>
    %41 = vector.extract_strided_slice %22 {offsets = [0, 256], sizes = [16, 128], strides = [1, 1]} : vector<16x384xf32> to vector<16x128xf32>
    %42 = vector.extract_strided_slice %24 {offsets = [0, 256], sizes = [16, 128], strides = [1, 1]} : vector<16x384xf32> to vector<16x128xf32>
    %43 = arith.addf %42, %17 : vector<16x128xf32>
    %44 = arith.mulf %32, %43 : vector<16x128xf32>
    %45 = arith.addf %41, %44 : vector<16x128xf32>
    %46 = math.tanh %45 : vector<16x128xf32>
    %47 = arith.subf %18, %46 : vector<16x128xf32>
    %48 = arith.mulf %40, %47 : vector<16x128xf32>
    %49 = arith.addf %46, %48 : vector<16x128xf32>
    %c1_i32 = arith.constant 1 : i32
    %c16_i32_24 = arith.constant 16 : i32
    %50 = arith.muli %c1_i32, %c16_i32_24 : i32
    %51 = tpu.assume_multiple %50, 16 : i32
    %52 = arith.index_cast %51 : i32 to index
    %c0_25 = arith.constant 0 : index
    %53 = vector.load %arg17[%52, %c0_25] : memref<64x384xf32, #tpu.memory_space<vmem>>, vector<16x384xf32>
    %54 = arith.truncf %49 : vector<16x128xf32> to vector<16x128xbf16>
    %cst_26 = arith.constant dense<0.000000e+00> : vector<16x384xf32>
    %55 = tpu.matmul %54, %14, %cst_26 {dimension_numbers = #tpu.dot_dimension_numbers<[1], [0], [0], [1], [0, 0, 1, 1], [], []>} : vector<16x128xbf16>, vector<128x384xbf16>, vector<16x384xf32> -> vector<16x384xf32>
    %56 = vector.extract_strided_slice %53 {offsets = [0, 0], sizes = [16, 128], strides = [1, 1]} : vector<16x384xf32> to vector<16x128xf32>
    %57 = vector.extract_strided_slice %55 {offsets = [0, 0], sizes = [16, 128], strides = [1, 1]} : vector<16x384xf32> to vector<16x128xf32>
    %58 = arith.addf %56, %57 : vector<16x128xf32>
    %59 = arith.negf %58 : vector<16x128xf32>
    %60 = math.exp %59 : vector<16x128xf32>
    %cst_27 = arith.constant 1.000000e+00 : f32
    %61 = vector.broadcast %cst_27 : f32 to vector<16x128xf32>
    %62 = arith.addf %61, %60 : vector<16x128xf32>
    %63 = arith.divf %61, %62 : vector<16x128xf32>
    %64 = vector.extract_strided_slice %53 {offsets = [0, 128], sizes = [16, 128], strides = [1, 1]} : vector<16x384xf32> to vector<16x128xf32>
    %65 = vector.extract_strided_slice %55 {offsets = [0, 128], sizes = [16, 128], strides = [1, 1]} : vector<16x384xf32> to vector<16x128xf32>
    %66 = arith.addf %64, %65 : vector<16x128xf32>
    %67 = arith.negf %66 : vector<16x128xf32>
    %68 = math.exp %67 : vector<16x128xf32>
    %cst_28 = arith.constant 1.000000e+00 : f32
    %69 = vector.broadcast %cst_28 : f32 to vector<16x128xf32>
    %70 = arith.addf %69, %68 : vector<16x128xf32>
    %71 = arith.divf %69, %70 : vector<16x128xf32>
    %72 = vector.extract_strided_slice %53 {offsets = [0, 256], sizes = [16, 128], strides = [1, 1]} : vector<16x384xf32> to vector<16x128xf32>
    %73 = vector.extract_strided_slice %55 {offsets = [0, 256], sizes = [16, 128], strides = [1, 1]} : vector<16x384xf32> to vector<16x128xf32>
    %74 = arith.addf %73, %17 : vector<16x128xf32>
    %75 = arith.mulf %63, %74 : vector<16x128xf32>
    %76 = arith.addf %72, %75 : vector<16x128xf32>
    %77 = math.tanh %76 : vector<16x128xf32>
    %78 = arith.subf %49, %77 : vector<16x128xf32>
    %79 = arith.mulf %71, %78 : vector<16x128xf32>
    %80 = arith.addf %77, %79 : vector<16x128xf32>
    %c2_i32 = arith.constant 2 : i32
    %c16_i32_29 = arith.constant 16 : i32
    %81 = arith.muli %c2_i32, %c16_i32_29 : i32
    %82 = tpu.assume_multiple %81, 16 : i32
    %83 = arith.index_cast %82 : i32 to index
    %c0_30 = arith.constant 0 : index
    %84 = vector.load %arg17[%83, %c0_30] : memref<64x384xf32, #tpu.memory_space<vmem>>, vector<16x384xf32>
    %85 = arith.truncf %80 : vector<16x128xf32> to vector<16x128xbf16>
    %cst_31 = arith.constant dense<0.000000e+00> : vector<16x384xf32>
    %86 = tpu.matmul %85, %14, %cst_31 {dimension_numbers = #tpu.dot_dimension_numbers<[1], [0], [0], [1], [0, 0, 1, 1], [], []>} : vector<16x128xbf16>, vector<128x384xbf16>, vector<16x384xf32> -> vector<16x384xf32>
    %87 = vector.extract_strided_slice %84 {offsets = [0, 0], sizes = [16, 128], strides = [1, 1]} : vector<16x384xf32> to vector<16x128xf32>
    %88 = vector.extract_strided_slice %86 {offsets = [0, 0], sizes = [16, 128], strides = [1, 1]} : vector<16x384xf32> to vector<16x128xf32>
    %89 = arith.addf %87, %88 : vector<16x128xf32>
    %90 = arith.negf %89 : vector<16x128xf32>
    %91 = math.exp %90 : vector<16x128xf32>
    %cst_32 = arith.constant 1.000000e+00 : f32
    %92 = vector.broadcast %cst_32 : f32 to vector<16x128xf32>
    %93 = arith.addf %92, %91 : vector<16x128xf32>
    %94 = arith.divf %92, %93 : vector<16x128xf32>
    %95 = vector.extract_strided_slice %84 {offsets = [0, 128], sizes = [16, 128], strides = [1, 1]} : vector<16x384xf32> to vector<16x128xf32>
    %96 = vector.extract_strided_slice %86 {offsets = [0, 128], sizes = [16, 128], strides = [1, 1]} : vector<16x384xf32> to vector<16x128xf32>
    %97 = arith.addf %95, %96 : vector<16x128xf32>
    %98 = arith.negf %97 : vector<16x128xf32>
    %99 = math.exp %98 : vector<16x128xf32>
    %cst_33 = arith.constant 1.000000e+00 : f32
    %100 = vector.broadcast %cst_33 : f32 to vector<16x128xf32>
    %101 = arith.addf %100, %99 : vector<16x128xf32>
    %102 = arith.divf %100, %101 : vector<16x128xf32>
    %103 = vector.extract_strided_slice %84 {offsets = [0, 256], sizes = [16, 128], strides = [1, 1]} : vector<16x384xf32> to vector<16x128xf32>
    %104 = vector.extract_strided_slice %86 {offsets = [0, 256], sizes = [16, 128], strides = [1, 1]} : vector<16x384xf32> to vector<16x128xf32>
    %105 = arith.addf %104, %17 : vector<16x128xf32>
    %106 = arith.mulf %94, %105 : vector<16x128xf32>
    %107 = arith.addf %103, %106 : vector<16x128xf32>
    %108 = math.tanh %107 : vector<16x128xf32>
    %109 = arith.subf %80, %108 : vector<16x128xf32>
    %110 = arith.mulf %102, %109 : vector<16x128xf32>
    %111 = arith.addf %108, %110 : vector<16x128xf32>
    %c3_i32 = arith.constant 3 : i32
    %c16_i32_34 = arith.constant 16 : i32
    %112 = arith.muli %c3_i32, %c16_i32_34 : i32
    %113 = tpu.assume_multiple %112, 16 : i32
    %114 = arith.index_cast %113 : i32 to index
    %c0_35 = arith.constant 0 : index
    %115 = vector.load %arg17[%114, %c0_35] : memref<64x384xf32, #tpu.memory_space<vmem>>, vector<16x384xf32>
    %116 = arith.truncf %111 : vector<16x128xf32> to vector<16x128xbf16>
    %cst_36 = arith.constant dense<0.000000e+00> : vector<16x384xf32>
    %117 = tpu.matmul %116, %14, %cst_36 {dimension_numbers = #tpu.dot_dimension_numbers<[1], [0], [0], [1], [0, 0, 1, 1], [], []>} : vector<16x128xbf16>, vector<128x384xbf16>, vector<16x384xf32> -> vector<16x384xf32>
    %118 = vector.extract_strided_slice %115 {offsets = [0, 0], sizes = [16, 128], strides = [1, 1]} : vector<16x384xf32> to vector<16x128xf32>
    %119 = vector.extract_strided_slice %117 {offsets = [0, 0], sizes = [16, 128], strides = [1, 1]} : vector<16x384xf32> to vector<16x128xf32>
    %120 = arith.addf %118, %119 : vector<16x128xf32>
    %121 = arith.negf %120 : vector<16x128xf32>
    %122 = math.exp %121 : vector<16x128xf32>
    %cst_37 = arith.constant 1.000000e+00 : f32
    %123 = vector.broadcast %cst_37 : f32 to vector<16x128xf32>
    %124 = arith.addf %123, %122 : vector<16x128xf32>
    %125 = arith.divf %123, %124 : vector<16x128xf32>
    %126 = vector.extract_strided_slice %115 {offsets = [0, 128], sizes = [16, 128], strides = [1, 1]} : vector<16x384xf32> to vector<16x128xf32>
    %127 = vector.extract_strided_slice %117 {offsets = [0, 128], sizes = [16, 128], strides = [1, 1]} : vector<16x384xf32> to vector<16x128xf32>
    %128 = arith.addf %126, %127 : vector<16x128xf32>
    %129 = arith.negf %128 : vector<16x128xf32>
    %130 = math.exp %129 : vector<16x128xf32>
    %cst_38 = arith.constant 1.000000e+00 : f32
    %131 = vector.broadcast %cst_38 : f32 to vector<16x128xf32>
    %132 = arith.addf %131, %130 : vector<16x128xf32>
    %133 = arith.divf %131, %132 : vector<16x128xf32>
    %134 = vector.extract_strided_slice %115 {offsets = [0, 256], sizes = [16, 128], strides = [1, 1]} : vector<16x384xf32> to vector<16x128xf32>
    %135 = vector.extract_strided_slice %117 {offsets = [0, 256], sizes = [16, 128], strides = [1, 1]} : vector<16x384xf32> to vector<16x128xf32>
    %136 = arith.addf %135, %17 : vector<16x128xf32>
    %137 = arith.mulf %125, %136 : vector<16x128xf32>
    %138 = arith.addf %134, %137 : vector<16x128xf32>
    %139 = math.tanh %138 : vector<16x128xf32>
    %140 = arith.subf %111, %139 : vector<16x128xf32>
    %141 = arith.mulf %133, %140 : vector<16x128xf32>
    %142 = arith.addf %139, %141 : vector<16x128xf32>
    %c4_i32 = arith.constant 4 : i32
    %c0_39 = arith.constant 0 : index
    %c0_40 = arith.constant 0 : index
    %143 = vector.load %arg16[%c0_39, %c0_40] : memref<16x128xf32, #tpu.memory_space<vmem>>, vector<16x128xf32>
    tpu.vector_store %arg16[%c0_39, %c0_40], %142 {strides = array<i32>} : memref<16x128xf32, #tpu.memory_space<vmem>>, vector<16x128xf32>,
    %c1_i32_41 = arith.constant 1 : i32
    %144 = arith.cmpi eq, %arg0, %c1_i32_41 : i32
    %145 = arith.extui %144 : i1 to i32
    %c0_i32_42 = arith.constant 0 : i32
    %146 = arith.cmpi ne, %145, %c0_i32_42 : i32
    scf.if %146 {
      %c48 = arith.constant 48 : index
      %c0_43 = arith.constant 0 : index
      %147 = vector.load %arg1[%c48, %c0_43] : memref<64x128xbf16, #tpu.memory_space<vmem>>, vector<16x128xbf16>
      %c0_44 = arith.constant 0 : index
      %c0_45 = arith.constant 0 : index
      %148 = vector.load %arg5[%c0_44, %c0_45] : memref<128x384xbf16, #tpu.memory_space<vmem>>, vector<128x384xbf16>
      %cst_46 = arith.constant dense<0.000000e+00> : vector<16x384xf32>
      %149 = tpu.matmul %147, %148, %cst_46 {dimension_numbers = #tpu.dot_dimension_numbers<[1], [0], [0], [1], [0, 0, 1, 1], [], []>} : vector<16x128xbf16>, vector<128x384xbf16>, vector<16x384xf32> -> vector<16x384xf32>
      %c48_47 = arith.constant 48 : index
      %c0_48 = arith.constant 0 : index
      %150 = vector.load %arg2[%c48_47, %c0_48] : memref<64x128xbf16, #tpu.memory_space<vmem>>, vector<16x128xbf16>
      %c0_49 = arith.constant 0 : index
      %c0_50 = arith.constant 0 : index
      %151 = vector.load %arg6[%c0_49, %c0_50] : memref<128x384xbf16, #tpu.memory_space<vmem>>, vector<128x384xbf16>
      %cst_51 = arith.constant dense<0.000000e+00> : vector<16x384xf32>
      %152 = tpu.matmul %150, %151, %cst_51 {dimension_numbers = #tpu.dot_dimension_numbers<[1], [0], [0], [1], [0, 0, 1, 1], [], []>} : vector<16x128xbf16>, vector<128x384xbf16>, vector<16x384xf32> -> vector<16x384xf32>
      %153 = arith.addf %149, %152 : vector<16x384xf32>
      %c0_52 = arith.constant 0 : index
      %c0_53 = arith.constant 0 : index
      %154 = vector.load %arg9[%c0_52, %c0_53] : memref<1x384xf32, #tpu.memory_space<vmem>>, vector<1x384xf32>
      %155 = vector.broadcast %154 : vector<1x384xf32> to vector<16x384xf32>
      %156 = arith.addf %153, %155 : vector<16x384xf32>
      %157 = vector.extract_strided_slice %156 {offsets = [0, 0], sizes = [16, 128], strides = [1, 1]} : vector<16x384xf32> to vector<16x128xf32>
      %158 = arith.negf %157 : vector<16x128xf32>
      %159 = math.exp %158 : vector<16x128xf32>
      %cst_54 = arith.constant 1.000000e+00 : f32
      %160 = vector.broadcast %cst_54 : f32 to vector<16x128xf32>
      %161 = arith.addf %160, %159 : vector<16x128xf32>
      %162 = arith.divf %160, %161 : vector<16x128xf32>
      %163 = vector.extract_strided_slice %156 {offsets = [0, 128], sizes = [16, 128], strides = [1, 1]} : vector<16x384xf32> to vector<16x128xf32>
      %164 = arith.negf %163 : vector<16x128xf32>
      %165 = math.exp %164 : vector<16x128xf32>
      %cst_55 = arith.constant 1.000000e+00 : f32
      %166 = vector.broadcast %cst_55 : f32 to vector<16x128xf32>
      %167 = arith.addf %166, %165 : vector<16x128xf32>
      %168 = arith.divf %166, %167 : vector<16x128xf32>
      %169 = vector.extract_strided_slice %156 {offsets = [0, 256], sizes = [16, 128], strides = [1, 1]} : vector<16x384xf32> to vector<16x128xf32>
      %c0_56 = arith.constant 0 : index
      %c0_57 = arith.constant 0 : index
      %170 = vector.load %arg11[%c0_56, %c0_57] : memref<1x128xf32, #tpu.memory_space<vmem>>, vector<1x128xf32>
      %171 = vector.broadcast %170 : vector<1x128xf32> to vector<16x128xf32>
      %172 = arith.mulf %162, %171 : vector<16x128xf32>
      %173 = arith.addf %169, %172 : vector<16x128xf32>
      %174 = math.tanh %173 : vector<16x128xf32>
      %175 = arith.mulf %168, %174 : vector<16x128xf32>
      %176 = arith.subf %174, %175 : vector<16x128xf32>
      %c0_58 = arith.constant 0 : index
      %c0_59 = arith.constant 0 : index
      %177 = vector.load %arg12[%c0_58, %c0_59] : memref<1x128xf32, #tpu.memory_space<vmem>>, vector<1x128xf32>
      %178 = vector.broadcast %177 : vector<1x128xf32> to vector<16x128xf32>
      %179 = arith.mulf %142, %178 : vector<16x128xf32>
      %cst_60 = arith.constant dense<0.000000e+00> : vector<16xf32>
      %180 = vector.multi_reduction <add>, %179, %cst_60 [1] : vector<16x128xf32> to vector<16xf32>
      %181 = vector.shape_cast %180 : vector<16xf32> to vector<16x1xf32>
      %c0_61 = arith.constant 0 : index
      %c0_62 = arith.constant 0 : index
      %182 = vector.load %arg13[%c0_61, %c0_62] : memref<1x128xf32, #tpu.memory_space<vmem>>, vector<1x128xf32>
      %183 = vector.broadcast %182 : vector<1x128xf32> to vector<16x128xf32>
      %184 = arith.mulf %176, %183 : vector<16x128xf32>
      %cst_63 = arith.constant dense<0.000000e+00> : vector<16xf32>
      %185 = vector.multi_reduction <add>, %184, %cst_63 [1] : vector<16x128xf32> to vector<16xf32>
      %186 = vector.shape_cast %185 : vector<16xf32> to vector<16x1xf32>
      %187 = arith.addf %181, %186 : vector<16x1xf32>
      %c0_64 = arith.constant 0 : index
      %c0_65 = arith.constant 0 : index
      %188 = vector.load %arg14[%c0_64, %c0_65] : memref<1x1xf32, #tpu.memory_space<vmem>>, vector<1x1xf32>
      %189 = vector.broadcast %188 : vector<1x1xf32> to vector<16x1xf32>
      %190 = arith.addf %187, %189 : vector<16x1xf32>
      %c0_66 = arith.constant 0 : index
      %c0_67 = arith.constant 0 : index
      %191 = vector.load %arg15[%c0_66, %c0_67] : memref<16x1xf32, #tpu.memory_space<vmem>>, vector<16x1xf32>
      tpu.vector_store %arg15[%c0_66, %c0_67], %190 {strides = array<i32>} : memref<16x1xf32, #tpu.memory_space<vmem>>, vector<16x1xf32>,
    } else {
    }
    return
  }
  func.func @transform_0(%arg0: i32) -> (i32, i32) {
    %c0_i32 = arith.constant 0 : i32
    %c0_i32_0 = arith.constant 0 : i32
    return %arg0, %c0_i32 : i32, i32
  }
  func.func @transform_1(%arg0: i32) -> (i32, i32) {
    %c0_i32 = arith.constant 0 : i32
    %c0_i32_0 = arith.constant 0 : i32
    return %arg0, %c0_i32 : i32, i32
  }
  func.func @transform_2(%arg0: i32) -> (i32, i32) {
    %c0_i32 = arith.constant 0 : i32
    %c0_i32_0 = arith.constant 0 : i32
    %c0_i32_1 = arith.constant 0 : i32
    return %c0_i32, %c0_i32_0 : i32, i32
  }
  func.func @transform_3(%arg0: i32) -> (i32, i32) {
    %c0_i32 = arith.constant 0 : i32
    %c0_i32_0 = arith.constant 0 : i32
    %c0_i32_1 = arith.constant 0 : i32
    return %c0_i32, %c0_i32_0 : i32, i32
  }
  func.func @transform_4(%arg0: i32) -> (i32, i32) {
    %c0_i32 = arith.constant 0 : i32
    %c0_i32_0 = arith.constant 0 : i32
    %c0_i32_1 = arith.constant 0 : i32
    return %c0_i32, %c0_i32_0 : i32, i32
  }
  func.func @transform_5(%arg0: i32) -> (i32, i32) {
    %c0_i32 = arith.constant 0 : i32
    %c0_i32_0 = arith.constant 0 : i32
    %c0_i32_1 = arith.constant 0 : i32
    return %c0_i32, %c0_i32_0 : i32, i32
  }
  func.func @transform_6(%arg0: i32) -> (i32, i32) {
    %c0_i32 = arith.constant 0 : i32
    %c0_i32_0 = arith.constant 0 : i32
    %c0_i32_1 = arith.constant 0 : i32
    return %c0_i32, %c0_i32_0 : i32, i32
  }
  func.func @transform_7(%arg0: i32) -> (i32, i32) {
    %c0_i32 = arith.constant 0 : i32
    %c0_i32_0 = arith.constant 0 : i32
    %c0_i32_1 = arith.constant 0 : i32
    return %c0_i32, %c0_i32_0 : i32, i32
  }
  func.func @transform_8(%arg0: i32) -> (i32, i32) {
    %c0_i32 = arith.constant 0 : i32
    %c0_i32_0 = arith.constant 0 : i32
    %c0_i32_1 = arith.constant 0 : i32
    return %c0_i32, %c0_i32_0 : i32, i32
  }
  func.func @transform_9(%arg0: i32) -> (i32, i32) {
    %c0_i32 = arith.constant 0 : i32
    %c0_i32_0 = arith.constant 0 : i32
    %c0_i32_1 = arith.constant 0 : i32
    return %c0_i32, %c0_i32_0 : i32, i32
  }
  func.func @transform_10(%arg0: i32) -> (i32, i32) {
    %c0_i32 = arith.constant 0 : i32
    %c0_i32_0 = arith.constant 0 : i32
    %c0_i32_1 = arith.constant 0 : i32
    return %c0_i32, %c0_i32_0 : i32, i32
  }
  func.func @transform_11(%arg0: i32) -> (i32, i32) {
    %c0_i32 = arith.constant 0 : i32
    %c0_i32_0 = arith.constant 0 : i32
    %c0_i32_1 = arith.constant 0 : i32
    return %c0_i32, %c0_i32_0 : i32, i32
  }
  func.func @transform_12(%arg0: i32) -> (i32, i32) {
    %c0_i32 = arith.constant 0 : i32
    %c0_i32_0 = arith.constant 0 : i32
    %c0_i32_1 = arith.constant 0 : i32
    return %c0_i32, %c0_i32_0 : i32, i32
  }
  func.func @transform_13(%arg0: i32) -> (i32, i32) {
    %c0_i32 = arith.constant 0 : i32
    %c0_i32_0 = arith.constant 0 : i32
    %c0_i32_1 = arith.constant 0 : i32
    return %c0_i32, %c0_i32_0 : i32, i32
  }
  func.func @transform_14(%arg0: i32) -> (i32, i32) {
    %c0_i32 = arith.constant 0 : i32
    %c0_i32_0 = arith.constant 0 : i32
    %c0_i32_1 = arith.constant 0 : i32
    return %c0_i32, %c0_i32_0 : i32, i32
  }
}

</mosaic_0001>

<llo_original>
// kernel: rnn_model_forward.3
$region0: #{rnn_model_forward.3}
  #allocation0 [shape = 'u32[]', space=smem, size = 0x4, offset = 0x4, fixed_abs, tag = 'smem constant byte address 0x4 - core index']
  #allocation1 [shape = 'u32[144,128]{1,0:T(1,128)}', space=vmem, size = 0x12000, scoped, tag = 'internal scratch']
  #allocation2 [shape = 'f32[16,128]{1,0:T(8,128)}', space=vmem, size = 0x2000, scoped, tag = 'scratch operand']
  #allocation3 [shape = 'f32[64,384]{1,0:T(8,128)}', space=vmem, size = 0x18000, scoped, tag = 'scratch operand']
  #allocation4 [shape = 'f32[1,1]{1,0:T(1,128)S(1)}', space=vmem, size = 0x200, scoped, tag = 'scoped memory for rnn_model_forward.3']
  %s0 = inlined_call_operand.vmem [shape: bf16[128,128], index: 0, kind: input, shape index: {}]
  %s1 = inlined_call_operand.vmem [shape: bf16[128,128], index: 1, kind: input, shape index: {}]
  %s2 = inlined_call_operand.vmem [shape: bf16[128,384], index: 2, kind: input, shape index: {}]
  %s3 = inlined_call_operand.vmem [shape: bf16[128,384], index: 3, kind: input, shape index: {}]
  %s4 = inlined_call_operand.vmem [shape: bf16[128,384], index: 4, kind: input, shape index: {}]
  %s5 = inlined_call_operand.vmem [shape: bf16[128,384], index: 5, kind: input, shape index: {}]
  %s6 = inlined_call_operand.vmem [shape: bf16[128,384], index: 6, kind: input, shape index: {}]
  %s7 = inlined_call_operand.vmem [shape: f32[1,384], index: 7, kind: input, shape index: {}]
  %s8 = inlined_call_operand.vmem [shape: f32[1,384], index: 8, kind: input, shape index: {}]
  %s9 = inlined_call_operand.vmem [shape: f32[1,128], index: 9, kind: input, shape index: {}]
  %s10 = inlined_call_operand.vmem [shape: f32[1,128], index: 10, kind: input, shape index: {}]
  %s11 = inlined_call_operand.vmem [shape: f32[1,128], index: 11, kind: input, shape index: {}]
  %s12 = inlined_call_operand.vmem [shape: f32[1,128], index: 12, kind: input, shape index: {}]
  %s13 = inlined_call_operand.<no memory space> [shape: f32[1,1], index: 13, kind: input, shape index: {}]
  %s14 = inlined_call_operand.vmem [shape: f32[16,1], index: 14, kind: output, shape index: {}]
  %s15 = sld [smem:[#allocation0]]
  $region97: #{rnn_model_forward.3} parent=0
    _
  %s17 = ssub.s32 1, %s15
  %s18 = scalar_select 0, %s17, %s15
  %v19 = vstv %s13
  %20 = vst [vmem:[#allocation4] sm:$0x1] %v19
  loop: start=0, step=1, limit=4
  $region2: #{rnn_model_forward.3} parent=0 // loop_pre_header
    _
  $region3: #{rnn_model_forward.3} parent=0 // loop_header
    %s22 = sphi 0, %s26
    %p23 = scmp.ge.s32.totalorder %s22, 4
    %s32 = sphi 0, %s34
    %s35 = sphi 0, %s32
    %s36 = sphi 0, %s35
    %s52 = sphi 0, %s36
    %s58 = sphi 0, %s60
    %s61 = sphi 0, %s58
    %s62 = sphi 0, %s61
    %s78 = sphi 0, %s62
    %s82 = sphi 0, %s82
    %s84 = sphi 0, %s82
    %s85 = sphi 0, %s84
    %s99 = sphi 0, %s85
    %s103 = sphi 0, %s103
    %s105 = sphi 0, %s103
    %s106 = sphi 0, %s105
    %s120 = sphi 0, %s106
    %s124 = sphi 0, %s124
    %s126 = sphi 0, %s124
    %s127 = sphi 0, %s126
    %s141 = sphi 0, %s127
    %s145 = sphi 0, %s145
    %s147 = sphi 0, %s145
    %s148 = sphi 0, %s147
    %s162 = sphi 0, %s148
    %s166 = sphi 0, %s166
    %s168 = sphi 0, %s166
    %s169 = sphi 0, %s168
    %s183 = sphi 0, %s169
    %s187 = sphi 0, %s187
    %s189 = sphi 0, %s187
    %s190 = sphi 0, %s189
    %s204 = sphi 0, %s190
    %s208 = sphi 0, %s208
    %s210 = sphi 0, %s208
    %s211 = sphi 0, %s210
    %s225 = sphi 0, %s211
    %s229 = sphi 0, %s229
    %s231 = sphi 0, %s229
    %s232 = sphi 0, %s231
    %s246 = sphi 0, %s232
    %s250 = sphi 0, %s250
    %s252 = sphi 0, %s250
    %s253 = sphi 0, %s252
    %s267 = sphi 0, %s253
    %s271 = sphi 0, %s271
    %s273 = sphi 0, %s271
    %s274 = sphi 0, %s273
    %s288 = sphi 0, %s274
    %s292 = sphi 0, %s292
    %s294 = sphi 0, %s292
    %s295 = sphi 0, %s294
    %s309 = sphi 0, %s295
    %s313 = sphi 0, %s313
    %s315 = sphi 0, %s313
    %s316 = sphi 0, %s315
    %s330 = sphi 0, %s316
    %s334 = sphi 0, %s334
    %s336 = sphi 0, %s334
    %s337 = sphi 0, %s336
    %s351 = sphi 0, %s337
  $region4: #{rnn_model_forward.3} parent=0 // loop_header_branch
    %25 = sbr.rel (%p23) target = $region8
  $region5: #{rnn_model_forward.3} parent=0 // loop_body
    %s27 = ssub.s32 %s22, 1
    %s28 = ssub.s32 %s22, 2
    %s29 = sadd.s32 %s22, 1
    %s30 = ssub.s32 %s22, %s29
    %p31 = scmp.eq.s32.totalorder %s30, 0
    %s33 = sadd.s32 %s32, 1
    %s34 = scalar_select %p31, %s32, %s33
    %p37 = pneg %p31
    %p38 = scmp.eq.s32.totalorder %s22, 1
    %p39 = por %p37, %p38
    %p40 = scmp.ne.s32.totalorder %s32, %s35
    %p41 = scmp.eq.s32.totalorder %s22, 0
    %p42 = por %p40, %p41
    %p43 = scmp.ne.s32.totalorder %s32, %s35
    %p44 = scmp.eq.s32.totalorder %s27, 1
    %p45 = por %p43, %p44
    %p46 = scmp.ne.s32.totalorder %s35, %s36
    %p47 = scmp.eq.s32.totalorder %s27, 0
    %p48 = por %p46, %p47
    %p49 = scmp.ne.s32.totalorder %s35, %s36
    %p50 = scmp.eq.s32.totalorder %s28, 1
    %p51 = por %p49, %p50
    %p53 = scmp.ne.s32.totalorder %s36, %s52
    %p54 = scmp.eq.s32.totalorder %s28, 0
    %p55 = por %p53, %p54
    %s56 = ssub.s32 %s22, %s29
    %p57 = scmp.eq.s32.totalorder %s56, 0
    %s59 = sadd.s32 %s58, 1
    %s60 = scalar_select %p57, %s58, %s59
    %p63 = pneg %p57
    %p64 = scmp.eq.s32.totalorder %s22, 1
    %p65 = por %p63, %p64
    %p66 = scmp.ne.s32.totalorder %s58, %s61
    %p67 = scmp.eq.s32.totalorder %s22, 0
    %p68 = por %p66, %p67
    %p69 = scmp.ne.s32.totalorder %s58, %s61
    %p70 = scmp.eq.s32.totalorder %s27, 1
    %p71 = por %p69, %p70
    %p72 = scmp.ne.s32.totalorder %s61, %s62
    %p73 = scmp.eq.s32.totalorder %s27, 0
    %p74 = por %p72, %p73
    %p75 = scmp.ne.s32.totalorder %s61, %s62
    %p76 = scmp.eq.s32.totalorder %s28, 1
    %p77 = por %p75, %p76
    %p79 = scmp.ne.s32.totalorder %s62, %s78
    %p80 = scmp.eq.s32.totalorder %s28, 0
    %p81 = por %p79, %p80
    %s83 = sadd.s32 %s82, 1
    %p86 = scmp.eq.s32.totalorder %s22, 1
    %p87 = scmp.ne.s32.totalorder %s82, %s84
    %p88 = scmp.eq.s32.totalorder %s22, 0
    %p89 = por %p87, %p88
    %p90 = scmp.ne.s32.totalorder %s82, %s84
    %p91 = scmp.eq.s32.totalorder %s27, 1
    %p92 = por %p90, %p91
    %p93 = scmp.ne.s32.totalorder %s84, %s85
    %p94 = scmp.eq.s32.totalorder %s27, 0
    %p95 = por %p93, %p94
    %p96 = scmp.ne.s32.totalorder %s84, %s85
    %p97 = scmp.eq.s32.totalorder %s28, 1
    %p98 = por %p96, %p97
    %p100 = scmp.ne.s32.totalorder %s85, %s99
    %p101 = scmp.eq.s32.totalorder %s28, 0
    %p102 = por %p100, %p101
    %s104 = sadd.s32 %s103, 1
    %p107 = scmp.eq.s32.totalorder %s22, 1
    %p108 = scmp.ne.s32.totalorder %s103, %s105
    %p109 = scmp.eq.s32.totalorder %s22, 0
    %p110 = por %p108, %p109
    %p111 = scmp.ne.s32.totalorder %s103, %s105
    %p112 = scmp.eq.s32.totalorder %s27, 1
    %p113 = por %p111, %p112
    %p114 = scmp.ne.s32.totalorder %s105, %s106
    %p115 = scmp.eq.s32.totalorder %s27, 0
    %p116 = por %p114, %p115
    %p117 = scmp.ne.s32.totalorder %s105, %s106
    %p118 = scmp.eq.s32.totalorder %s28, 1
    %p119 = por %p117, %p118
    %p121 = scmp.ne.s32.totalorder %s106, %s120
    %p122 = scmp.eq.s32.totalorder %s28, 0
    %p123 = por %p121, %p122
    %s125 = sadd.s32 %s124, 1
    %p128 = scmp.eq.s32.totalorder %s22, 1
    %p129 = scmp.ne.s32.totalorder %s124, %s126
    %p130 = scmp.eq.s32.totalorder %s22, 0
    %p131 = por %p129, %p130
    %p132 = scmp.ne.s32.totalorder %s124, %s126
    %p133 = scmp.eq.s32.totalorder %s27, 1
    %p134 = por %p132, %p133
    %p135 = scmp.ne.s32.totalorder %s126, %s127
    %p136 = scmp.eq.s32.totalorder %s27, 0
    %p137 = por %p135, %p136
    %p138 = scmp.ne.s32.totalorder %s126, %s127
    %p139 = scmp.eq.s32.totalorder %s28, 1
    %p140 = por %p138, %p139
    %p142 = scmp.ne.s32.totalorder %s127, %s141
    %p143 = scmp.eq.s32.totalorder %s28, 0
    %p144 = por %p142, %p143
    %s146 = sadd.s32 %s145, 1
    %p149 = scmp.eq.s32.totalorder %s22, 1
    %p150 = scmp.ne.s32.totalorder %s145, %s147
    %p151 = scmp.eq.s32.totalorder %s22, 0
    %p152 = por %p150, %p151
    %p153 = scmp.ne.s32.totalorder %s145, %s147
    %p154 = scmp.eq.s32.totalorder %s27, 1
    %p155 = por %p153, %p154
    %p156 = scmp.ne.s32.totalorder %s147, %s148
    %p157 = scmp.eq.s32.totalorder %s27, 0
    %p158 = por %p156, %p157
    %p159 = scmp.ne.s32.totalorder %s147, %s148
    %p160 = scmp.eq.s32.totalorder %s28, 1
    %p161 = por %p159, %p160
    %p163 = scmp.ne.s32.totalorder %s148, %s162
    %p164 = scmp.eq.s32.totalorder %s28, 0
    %p165 = por %p163, %p164
    %s167 = sadd.s32 %s166, 1
    %p170 = scmp.eq.s32.totalorder %s22, 1
    %p171 = scmp.ne.s32.totalorder %s166, %s168
    %p172 = scmp.eq.s32.totalorder %s22, 0
    %p173 = por %p171, %p172
    %p174 = scmp.ne.s32.totalorder %s166, %s168
    %p175 = scmp.eq.s32.totalorder %s27, 1
    %p176 = por %p174, %p175
    %p177 = scmp.ne.s32.totalorder %s168, %s169
    %p178 = scmp.eq.s32.totalorder %s27, 0
    %p179 = por %p177, %p178
    %p180 = scmp.ne.s32.totalorder %s168, %s169
    %p181 = scmp.eq.s32.totalorder %s28, 1
    %p182 = por %p180, %p181
    %p184 = scmp.ne.s32.totalorder %s169, %s183
    %p185 = scmp.eq.s32.totalorder %s28, 0
    %p186 = por %p184, %p185
    %s188 = sadd.s32 %s187, 1
    %p191 = scmp.eq.s32.totalorder %s22, 1
    %p192 = scmp.ne.s32.totalorder %s187, %s189
    %p193 = scmp.eq.s32.totalorder %s22, 0
    %p194 = por %p192, %p193
    %p195 = scmp.ne.s32.totalorder %s187, %s189
    %p196 = scmp.eq.s32.totalorder %s27, 1
    %p197 = por %p195, %p196
    %p198 = scmp.ne.s32.totalorder %s189, %s190
    %p199 = scmp.eq.s32.totalorder %s27, 0
    %p200 = por %p198, %p199
    %p201 = scmp.ne.s32.totalorder %s189, %s190
    %p202 = scmp.eq.s32.totalorder %s28, 1
    %p203 = por %p201, %p202
    %p205 = scmp.ne.s32.totalorder %s190, %s204
    %p206 = scmp.eq.s32.totalorder %s28, 0
    %p207 = por %p205, %p206
    %s209 = sadd.s32 %s208, 1
    %p212 = scmp.eq.s32.totalorder %s22, 1
    %p213 = scmp.ne.s32.totalorder %s208, %s210
    %p214 = scmp.eq.s32.totalorder %s22, 0
    %p215 = por %p213, %p214
    %p216 = scmp.ne.s32.totalorder %s208, %s210
    %p217 = scmp.eq.s32.totalorder %s27, 1
    %p218 = por %p216, %p217
    %p219 = scmp.ne.s32.totalorder %s210, %s211
    %p220 = scmp.eq.s32.totalorder %s27, 0
    %p221 = por %p219, %p220
    %p222 = scmp.ne.s32.totalorder %s210, %s211
    %p223 = scmp.eq.s32.totalorder %s28, 1
    %p224 = por %p222, %p223
    %p226 = scmp.ne.s32.totalorder %s211, %s225
    %p227 = scmp.eq.s32.totalorder %s28, 0
    %p228 = por %p226, %p227
    %s230 = sadd.s32 %s229, 1
    %p233 = scmp.eq.s32.totalorder %s22, 1
    %p234 = scmp.ne.s32.totalorder %s229, %s231
    %p235 = scmp.eq.s32.totalorder %s22, 0
    %p236 = por %p234, %p235
    %p237 = scmp.ne.s32.totalorder %s229, %s231
    %p238 = scmp.eq.s32.totalorder %s27, 1
    %p239 = por %p237, %p238
    %p240 = scmp.ne.s32.totalorder %s231, %s232
    %p241 = scmp.eq.s32.totalorder %s27, 0
    %p242 = por %p240, %p241
    %p243 = scmp.ne.s32.totalorder %s231, %s232
    %p244 = scmp.eq.s32.totalorder %s28, 1
    %p245 = por %p243, %p244
    %p247 = scmp.ne.s32.totalorder %s232, %s246
    %p248 = scmp.eq.s32.totalorder %s28, 0
    %p249 = por %p247, %p248
    %s251 = sadd.s32 %s250, 1
    %p254 = scmp.eq.s32.totalorder %s22, 1
    %p255 = scmp.ne.s32.totalorder %s250, %s252
    %p256 = scmp.eq.s32.totalorder %s22, 0
    %p257 = por %p255, %p256
    %p258 = scmp.ne.s32.totalorder %s250, %s252
    %p259 = scmp.eq.s32.totalorder %s27, 1
    %p260 = por %p258, %p259
    %p261 = scmp.ne.s32.totalorder %s252, %s253
    %p262 = scmp.eq.s32.totalorder %s27, 0
    %p263 = por %p261, %p262
    %p264 = scmp.ne.s32.totalorder %s252, %s253
    %p265 = scmp.eq.s32.totalorder %s28, 1
    %p266 = por %p264, %p265
    %p268 = scmp.ne.s32.totalorder %s253, %s267
    %p269 = scmp.eq.s32.totalorder %s28, 0
    %p270 = por %p268, %p269
    %s272 = sadd.s32 %s271, 1
    %p275 = scmp.eq.s32.totalorder %s22, 1
    %p276 = scmp.ne.s32.totalorder %s271, %s273
    %p277 = scmp.eq.s32.totalorder %s22, 0
    %p278 = por %p276, %p277
    %p279 = scmp.ne.s32.totalorder %s271, %s273
    %p280 = scmp.eq.s32.totalorder %s27, 1
    %p281 = por %p279, %p280
    %p282 = scmp.ne.s32.totalorder %s273, %s274
    %p283 = scmp.eq.s32.totalorder %s27, 0
    %p284 = por %p282, %p283
    %p285 = scmp.ne.s32.totalorder %s273, %s274
    %p286 = scmp.eq.s32.totalorder %s28, 1
    %p287 = por %p285, %p286
    %p289 = scmp.ne.s32.totalorder %s274, %s288
    %p290 = scmp.eq.s32.totalorder %s28, 0
    %p291 = por %p289, %p290
    %s293 = sadd.s32 %s292, 1
    %p296 = scmp.eq.s32.totalorder %s22, 1
    %p297 = scmp.ne.s32.totalorder %s292, %s294
    %p298 = scmp.eq.s32.totalorder %s22, 0
    %p299 = por %p297, %p298
    %p300 = scmp.ne.s32.totalorder %s292, %s294
    %p301 = scmp.eq.s32.totalorder %s27, 1
    %p302 = por %p300, %p301
    %p303 = scmp.ne.s32.totalorder %s294, %s295
    %p304 = scmp.eq.s32.totalorder %s27, 0
    %p305 = por %p303, %p304
    %p306 = scmp.ne.s32.totalorder %s294, %s295
    %p307 = scmp.eq.s32.totalorder %s28, 1
    %p308 = por %p306, %p307
    %p310 = scmp.ne.s32.totalorder %s295, %s309
    %p311 = scmp.eq.s32.totalorder %s28, 0
    %p312 = por %p310, %p311
    %s314 = sadd.s32 %s313, 1
    %p317 = scmp.eq.s32.totalorder %s22, 1
    %p318 = scmp.ne.s32.totalorder %s313, %s315
    %p319 = scmp.eq.s32.totalorder %s22, 0
    %p320 = por %p318, %p319
    %p321 = scmp.ne.s32.totalorder %s313, %s315
    %p322 = scmp.eq.s32.totalorder %s27, 1
    %p323 = por %p321, %p322
    %p324 = scmp.ne.s32.totalorder %s315, %s316
    %p325 = scmp.eq.s32.totalorder %s27, 0
    %p326 = por %p324, %p325
    %p327 = scmp.ne.s32.totalorder %s315, %s316
    %p328 = scmp.eq.s32.totalorder %s28, 1
    %p329 = por %p327, %p328
    %p331 = scmp.ne.s32.totalorder %s316, %s330
    %p332 = scmp.eq.s32.totalorder %s28, 0
    %p333 = por %p331, %p332
    %s335 = sadd.s32 %s334, 1
    %p338 = scmp.eq.s32.totalorder %s22, 1
    %p339 = scmp.ne.s32.totalorder %s334, %s336
    %p340 = scmp.eq.s32.totalorder %s22, 0
    %p341 = por %p339, %p340
    %p342 = scmp.ne.s32.totalorder %s334, %s336
    %p343 = scmp.eq.s32.totalorder %s27, 1
    %p344 = por %p342, %p343
    %p345 = scmp.ne.s32.totalorder %s336, %s337
    %p346 = scmp.eq.s32.totalorder %s27, 0
    %p347 = por %p345, %p346
    %p348 = scmp.ne.s32.totalorder %s336, %s337
    %p349 = scmp.eq.s32.totalorder %s28, 1
    %p350 = por %p348, %p349
    %p352 = scmp.ne.s32.totalorder %s337, %s351
    %p353 = scmp.eq.s32.totalorder %s28, 0
    %p354 = por %p352, %p353
    %p355 = scmp.le.s32.totalorder 1, %s22
    %p356 = scmp.lt.s32.totalorder %s22, 3
    %p357 = pnand %p355, %p356
    %p358 = pneg %p357
    // Predicated region
    $region9: #{rnn_model_forward.3} parent=5 // pred_check
      _
    $region10: #{rnn_model_forward.3} parent=5 // pred_check_branch
      %360 = sbr.rel (%p357) target = $region12
    $region11: #{rnn_model_forward.3} parent=5 // pred_region
      %s361 = ssub.s32 %s22, 1
      // Predicated region
      $region13: #{rnn_model_forward.3} parent=11 // pred_check
        %p362 = pneg %p95
      $region14: #{rnn_model_forward.3} parent=11 // pred_check_branch
        %364 = sbr.rel (%p362) target = $region16
      $region15: #{rnn_model_forward.3} parent=11 // pred_region
        _
      $region16: #{rnn_model_forward.3} parent=11 // pred_fallthru
        _
      // Predicated region
      $region17: #{rnn_model_forward.3} parent=11 // pred_check
        %p365 = pneg %p116
      $region18: #{rnn_model_forward.3} parent=11 // pred_check_branch
        %367 = sbr.rel (%p365) target = $region20
      $region19: #{rnn_model_forward.3} parent=11 // pred_region
        _
      $region20: #{rnn_model_forward.3} parent=11 // pred_fallthru
        _
      // Predicated region
      $region21: #{rnn_model_forward.3} parent=11 // pred_check
        %p368 = pneg %p137
      $region22: #{rnn_model_forward.3} parent=11 // pred_check_branch
        %370 = sbr.rel (%p368) target = $region24
      $region23: #{rnn_model_forward.3} parent=11 // pred_region
        _
      $region24: #{rnn_model_forward.3} parent=11 // pred_fallthru
        _
      // Predicated region
      $region25: #{rnn_model_forward.3} parent=11 // pred_check
        %p371 = pneg %p158
      $region26: #{rnn_model_forward.3} parent=11 // pred_check_branch
        %373 = sbr.rel (%p371) target = $region28
      $region27: #{rnn_model_forward.3} parent=11 // pred_region
        _
      $region28: #{rnn_model_forward.3} parent=11 // pred_fallthru
        _
      // Predicated region
      $region29: #{rnn_model_forward.3} parent=11 // pred_check
        %p374 = pneg %p179
      $region30: #{rnn_model_forward.3} parent=11 // pred_check_branch
        %376 = sbr.rel (%p374) target = $region32
      $region31: #{rnn_model_forward.3} parent=11 // pred_region
        _
      $region32: #{rnn_model_forward.3} parent=11 // pred_fallthru
        _
      // Predicated region
      $region33: #{rnn_model_forward.3} parent=11 // pred_check
        %p377 = pneg %p200
      $region34: #{rnn_model_forward.3} parent=11 // pred_check_branch
        %379 = sbr.rel (%p377) target = $region36
      $region35: #{rnn_model_forward.3} parent=11 // pred_region
        _
      $region36: #{rnn_model_forward.3} parent=11 // pred_fallthru
        _
      // Predicated region
      $region37: #{rnn_model_forward.3} parent=11 // pred_check
        %p380 = pneg %p221
      $region38: #{rnn_model_forward.3} parent=11 // pred_check_branch
        %382 = sbr.rel (%p380) target = $region40
      $region39: #{rnn_model_forward.3} parent=11 // pred_region
        _
      $region40: #{rnn_model_forward.3} parent=11 // pred_fallthru
        _
      // Predicated region
      $region41: #{rnn_model_forward.3} parent=11 // pred_check
        %p383 = pneg %p242
      $region42: #{rnn_model_forward.3} parent=11 // pred_check_branch
        %385 = sbr.rel (%p383) target = $region44
      $region43: #{rnn_model_forward.3} parent=11 // pred_region
        _
      $region44: #{rnn_model_forward.3} parent=11 // pred_fallthru
        _
      // Predicated region
      $region45: #{rnn_model_forward.3} parent=11 // pred_check
        %p386 = pneg %p263
      $region46: #{rnn_model_forward.3} parent=11 // pred_check_branch
        %388 = sbr.rel (%p386) target = $region48
      $region47: #{rnn_model_forward.3} parent=11 // pred_region
        _
      $region48: #{rnn_model_forward.3} parent=11 // pred_fallthru
        _
      // Predicated region
      $region49: #{rnn_model_forward.3} parent=11 // pred_check
        %p389 = pneg %p284
      $region50: #{rnn_model_forward.3} parent=11 // pred_check_branch
        %391 = sbr.rel (%p389) target = $region52
      $region51: #{rnn_model_forward.3} parent=11 // pred_region
        _
      $region52: #{rnn_model_forward.3} parent=11 // pred_fallthru
        _
      // Predicated region
      $region53: #{rnn_model_forward.3} parent=11 // pred_check
        %p392 = pneg %p305
      $region54: #{rnn_model_forward.3} parent=11 // pred_check_branch
        %394 = sbr.rel (%p392) target = $region56
      $region55: #{rnn_model_forward.3} parent=11 // pred_region
        _
      $region56: #{rnn_model_forward.3} parent=11 // pred_fallthru
        _
      // Predicated region
      $region57: #{rnn_model_forward.3} parent=11 // pred_check
        %p395 = pneg %p326
      $region58: #{rnn_model_forward.3} parent=11 // pred_check_branch
        %397 = sbr.rel (%p395) target = $region60
      $region59: #{rnn_model_forward.3} parent=11 // pred_region
        _
      $region60: #{rnn_model_forward.3} parent=11 // pred_fallthru
        _
    $region12: #{rnn_model_forward.3} parent=5 // pred_fallthru
      _
    %p398 = scmp.lt.s32.totalorder %s22, 2
    // Predicated region
    $region61: #{rnn_model_forward.3} parent=5 // pred_check
      %p399 = pneg %p398
    $region62: #{rnn_model_forward.3} parent=5 // pred_check_branch
      %401 = sbr.rel (%p399) target = $region64
    $region63: #{rnn_model_forward.3} parent=5 // pred_region
      // Predicated region
      $region65: #{rnn_model_forward.3} parent=63 // pred_check
        %p402 = pneg %p42
      $region66: #{rnn_model_forward.3} parent=63 // pred_check_branch
        %404 = sbr.rel (%p402) target = $region68
      $region67: #{rnn_model_forward.3} parent=63 // pred_region
        %s405 = smul.u32 8, %s22
        %p406 = scmp.lt.s32.totalorder %s405, 15
        %s407 = scalar_select %p406, %s405, 15
        %s408 = smul.addr %s407, 4
        %s409 = scalar_lea.vmem %s0, %s408
        %s410 = smul.u32 8, %s22
      $region68: #{rnn_model_forward.3} parent=63 // pred_fallthru
        _
      // Predicated region
      $region69: #{rnn_model_forward.3} parent=63 // pred_check
        %p411 = pneg %p68
      $region70: #{rnn_model_forward.3} parent=63 // pred_check_branch
        %413 = sbr.rel (%p411) target = $region72
      $region71: #{rnn_model_forward.3} parent=63 // pred_region
        %s414 = smul.u32 8, %s22
        %p415 = scmp.lt.s32.totalorder %s414, 15
        %s416 = scalar_select %p415, %s414, 15
        %s417 = smul.addr %s416, 4
        %s418 = scalar_lea.vmem %s1, %s417
        %s419 = smul.u32 8, %s22
      $region72: #{rnn_model_forward.3} parent=63 // pred_fallthru
        _
    $region64: #{rnn_model_forward.3} parent=5 // pred_fallthru
      _
    %p420 = scmp.le.s32.totalorder 1, %s22
    %p421 = scmp.lt.s32.totalorder %s22, 3
    %p422 = pnand %p420, %p421
    %p423 = pneg %p422
    // Predicated region
    $region73: #{rnn_model_forward.3} parent=5 // pred_check
      _
    $region74: #{rnn_model_forward.3} parent=5 // pred_check_branch
      %425 = sbr.rel (%p422) target = $region76
    $region75: #{rnn_model_forward.3} parent=5 // pred_region
      %s426 = ssub.s32 %s22, 1
      %s427 = smul.u32 8, %s27
      %p428 = scmp.lt.s32.totalorder %s427, 15
      %s429 = scalar_select %p428, %s427, 15
      %s430 = smul.addr %s429, 4
      %s431 = scalar_lea.vmem %s0, %s430
      %p432 = pneg %p48
      %p433 = pneg %p45
      %s434 = smul.u32 8, %s27
      %p435 = scmp.lt.s32.totalorder %s434, 15
      %s436 = scalar_select %p435, %s434, 15
      %s437 = smul.addr %s436, 4
      %s438 = scalar_lea.vmem %s1, %s437
      %p439 = pneg %p74
      %p440 = pneg %p71
      %p441 = pneg %p95
      %p442 = pneg %p92
      %p443 = pneg %p116
      %p444 = pneg %p113
      %p445 = pneg %p137
      %p446 = pneg %p134
      %p447 = pneg %p158
      %p448 = pneg %p155
      %p449 = pneg %p179
      %p450 = pneg %p176
      %p451 = pneg %p200
      %p452 = pneg %p197
      %p453 = pneg %p221
      %p454 = pneg %p218
      %p455 = pneg %p242
      %p456 = pneg %p239
      %p457 = pneg %p263
      %p458 = pneg %p260
      %p459 = pneg %p284
      %p460 = pneg %p281
      %p461 = pneg %p305
      %p462 = pneg %p302
      %p463 = pneg %p326
      %p464 = pneg %p323
      %p465 = pneg %p347
      %p466 = pneg %p344
      %s467 = smul.u32 8, %s27
      %p468 = scmp.lt.s32.totalorder %s467, 15
      %s469 = scalar_select %p468, %s467, 15
      %s470 = smul.addr %s469, 4
      %s471 = scalar_lea.vmem %s0, %s470
      %s472 = smul.u32 8, %s27
      %s473 = smul.u32 8, %s27
      %p474 = scmp.lt.s32.totalorder %s473, 15
      %s475 = scalar_select %p474, %s473, 15
      %s476 = smul.addr %s475, 4
      %s477 = scalar_lea.vmem %s1, %s476
      %s478 = smul.u32 8, %s27
      %p480 = scmp.eq.s32.totalorder %s27, 0
      // Predicated region
      $region77: #{rnn_model_forward.3} parent=75 // pred_check
        %p481 = pneg %p480
      $region78: #{rnn_model_forward.3} parent=75 // pred_check_branch
        %483 = sbr.rel (%p481) target = $region80
      $region79: #{rnn_model_forward.3} parent=75 // pred_region
        %484 = vst [vmem:[#allocation2] sm:$0xff] 0.0
        %485 = vst [vmem:[#allocation2 + $0x8] sm:$0xff] 0.0
      $region80: #{rnn_model_forward.3} parent=75 // pred_fallthru
        _
      %v486 = vld [vmem:[%s471] sm:$0xf]
      %v487 = vld [vmem:[%s471 + $0x4] sm:$0xf]
      %v488 = vld [vmem:[%s471 + $0x8] sm:$0xf]
      %v489 = vld [vmem:[%s471 + $0xc] sm:$0xf]
      %v490 = vld [vmem:[%s471 + $0x10] sm:$0xf]
      %v491 = vld [vmem:[%s471 + $0x14] sm:$0xf]
      %v492 = vld [vmem:[%s471 + $0x18] sm:$0xf]
      %v493 = vld [vmem:[%s471 + $0x1c] sm:$0xf]
      %v494 = vld [vmem:[%s2] sm:$0xff]
      %v495 = vld [vmem:[%s2 + $0x8] sm:$0xf]
      %v496 = vld [vmem:[%s2 + $0xc] sm:$0xff]
      %v497 = vld [vmem:[%s2 + $0x14] sm:$0xf]
      %v498 = vld [vmem:[%s2 + $0x18] sm:$0xff]
      %v499 = vld [vmem:[%s2 + $0x20] sm:$0xf]
      %v500 = vld [vmem:[%s2 + $0x24] sm:$0xff]
      %v501 = vld [vmem:[%s2 + $0x2c] sm:$0xf]
      %v502 = vld [vmem:[%s2 + $0x30] sm:$0xff]
      %v503 = vld [vmem:[%s2 + $0x38] sm:$0xf]
      %v504 = vld [vmem:[%s2 + $0x3c] sm:$0xff]
      %v505 = vld [vmem:[%s2 + $0x44] sm:$0xf]
      %v506 = vld [vmem:[%s2 + $0x48] sm:$0xff]
      %v507 = vld [vmem:[%s2 + $0x50] sm:$0xf]
      %v508 = vld [vmem:[%s2 + $0x54] sm:$0xff]
      %v509 = vld [vmem:[%s2 + $0x5c] sm:$0xf]
      %v510 = vld [vmem:[%s2 + $0x60] sm:$0xff]
      %v511 = vld [vmem:[%s2 + $0x68] sm:$0xf]
      %v512 = vld [vmem:[%s2 + $0x6c] sm:$0xff]
      %v513 = vld [vmem:[%s2 + $0x74] sm:$0xf]
      %v514 = vld [vmem:[%s2 + $0x78] sm:$0xff]
      %v515 = vld [vmem:[%s2 + $0x80] sm:$0xf]
      %v516 = vld [vmem:[%s2 + $0x84] sm:$0xff]
      %v517 = vld [vmem:[%s2 + $0x8c] sm:$0xf]
      %v518 = vld [vmem:[%s2 + $0x90] sm:$0xff]
      %v519 = vld [vmem:[%s2 + $0x98] sm:$0xf]
      %v520 = vld [vmem:[%s2 + $0x9c] sm:$0xff]
      %v521 = vld [vmem:[%s2 + $0xa4] sm:$0xf]
      %v522 = vld [vmem:[%s2 + $0xa8] sm:$0xff]
      %v523 = vld [vmem:[%s2 + $0xb0] sm:$0xf]
      %v524 = vld [vmem:[%s2 + $0xb4] sm:$0xff]
      %v525 = vld [vmem:[%s2 + $0xbc] sm:$0xf]
      %v526 = vld [vmem:[%s477] sm:$0xf]
      %v527 = vld [vmem:[%s477 + $0x4] sm:$0xf]
      %v528 = vld [vmem:[%s477 + $0x8] sm:$0xf]
      %v529 = vld [vmem:[%s477 + $0xc] sm:$0xf]
      %v530 = vld [vmem:[%s477 + $0x10] sm:$0xf]
      %v531 = vld [vmem:[%s477 + $0x14] sm:$0xf]
      %v532 = vld [vmem:[%s477 + $0x18] sm:$0xf]
      %v533 = vld [vmem:[%s477 + $0x1c] sm:$0xf]
      %v534 = vld [vmem:[%s3] sm:$0xff]
      %v535 = vld [vmem:[%s3 + $0x8] sm:$0xf]
      %v536 = vld [vmem:[%s3 + $0xc] sm:$0xff]
      %v537 = vld [vmem:[%s3 + $0x14] sm:$0xf]
      %v538 = vld [vmem:[%s3 + $0x18] sm:$0xff]
      %v539 = vld [vmem:[%s3 + $0x20] sm:$0xf]
      %v540 = vld [vmem:[%s3 + $0x24] sm:$0xff]
      %v541 = vld [vmem:[%s3 + $0x2c] sm:$0xf]
      %v542 = vld [vmem:[%s3 + $0x30] sm:$0xff]
      %v543 = vld [vmem:[%s3 + $0x38] sm:$0xf]
      %v544 = vld [vmem:[%s3 + $0x3c] sm:$0xff]
      %v545 = vld [vmem:[%s3 + $0x44] sm:$0xf]
      %v546 = vld [vmem:[%s3 + $0x48] sm:$0xff]
      %v547 = vld [vmem:[%s3 + $0x50] sm:$0xf]
      %v548 = vld [vmem:[%s3 + $0x54] sm:$0xff]
      %v549 = vld [vmem:[%s3 + $0x5c] sm:$0xf]
      %v550 = vld [vmem:[%s3 + $0x60] sm:$0xff]
      %v551 = vld [vmem:[%s3 + $0x68] sm:$0xf]
      %v552 = vld [vmem:[%s3 + $0x6c] sm:$0xff]
      %v553 = vld [vmem:[%s3 + $0x74] sm:$0xf]
      %v554 = vld [vmem:[%s3 + $0x78] sm:$0xff]
      %v555 = vld [vmem:[%s3 + $0x80] sm:$0xf]
      %v556 = vld [vmem:[%s3 + $0x84] sm:$0xff]
      %v557 = vld [vmem:[%s3 + $0x8c] sm:$0xf]
      %v558 = vld [vmem:[%s3 + $0x90] sm:$0xff]
      %v559 = vld [vmem:[%s3 + $0x98] sm:$0xf]
      %v560 = vld [vmem:[%s3 + $0x9c] sm:$0xff]
      %v561 = vld [vmem:[%s3 + $0xa4] sm:$0xf]
      %v562 = vld [vmem:[%s3 + $0xa8] sm:$0xff]
      %v563 = vld [vmem:[%s3 + $0xb0] sm:$0xf]
      %v564 = vld [vmem:[%s3 + $0xb4] sm:$0xff]
      %v565 = vld [vmem:[%s3 + $0xbc] sm:$0xf]
      %v574 = vunpack.c.l.b16 %v526
      %v575 = vunpack.c.l.b16 %v527
      %v576 = vunpack.c.l.b16 %v528
      %v577 = vunpack.c.l.b16 %v529
      %v578 = vunpack.c.l.b16 %v530
      %v579 = vunpack.c.l.b16 %v531
      %v580 = vunpack.c.l.b16 %v532
      %v581 = vunpack.c.l.b16 %v533
      %v582 = vpack.c.b16 %v575, %v574
      %v583 = vpack.c.b16 %v577, %v576
      %v584 = vpack.c.b16 %v579, %v578
      %v585 = vpack.c.b16 %v581, %v580
      %v622 = vunpack.c.l.b16 %v534
      %v623 = vunpack.c.h.b16 %v534
      %v624 = vunpack.c.l.b16 %v535
      %v625 = vunpack.c.l.b16 %v536
      %v626 = vunpack.c.h.b16 %v536
      %v627 = vunpack.c.l.b16 %v537
      %v628 = vunpack.c.l.b16 %v538
      %v629 = vunpack.c.h.b16 %v538
      %v630 = vunpack.c.l.b16 %v539
      %v631 = vunpack.c.l.b16 %v540
      %v632 = vunpack.c.h.b16 %v540
      %v633 = vunpack.c.l.b16 %v541
      %v634 = vunpack.c.l.b16 %v542
      %v635 = vunpack.c.h.b16 %v542
      %v636 = vunpack.c.l.b16 %v543
      %v637 = vunpack.c.l.b16 %v544
      %v638 = vunpack.c.h.b16 %v544
      %v639 = vunpack.c.l.b16 %v545
      %v640 = vunpack.c.l.b16 %v546
      %v641 = vunpack.c.h.b16 %v546
      %v642 = vunpack.c.l.b16 %v547
      %v643 = vunpack.c.l.b16 %v548
      %v644 = vunpack.c.h.b16 %v548
      %v645 = vunpack.c.l.b16 %v549
      %v646 = vunpack.c.l.b16 %v550
      %v647 = vunpack.c.h.b16 %v550
      %v648 = vunpack.c.l.b16 %v551
      %v649 = vunpack.c.l.b16 %v552
      %v650 = vunpack.c.h.b16 %v552
      %v651 = vunpack.c.l.b16 %v553
      %v652 = vunpack.c.l.b16 %v554
      %v653 = vunpack.c.h.b16 %v554
      %v654 = vunpack.c.l.b16 %v555
      %v655 = vunpack.c.l.b16 %v556
      %v656 = vunpack.c.h.b16 %v556
      %v657 = vunpack.c.l.b16 %v557
      %v658 = vunpack.c.l.b16 %v558
      %v659 = vunpack.c.h.b16 %v558
      %v660 = vunpack.c.l.b16 %v559
      %v661 = vunpack.c.l.b16 %v560
      %v662 = vunpack.c.h.b16 %v560
      %v663 = vunpack.c.l.b16 %v561
      %v664 = vunpack.c.l.b16 %v562
      %v665 = vunpack.c.h.b16 %v562
      %v666 = vunpack.c.l.b16 %v563
      %v667 = vunpack.c.l.b16 %v564
      %v668 = vunpack.c.h.b16 %v564
      %v669 = vunpack.c.l.b16 %v565
      %v670 = vpack.c.b16 %v625, %v622
      %v671 = vpack.c.b16 %v626, %v623
      %v672 = vpack.c.b16 %v627, %v624
      %v673 = vpack.c.b16 %v631, %v628
      %v674 = vpack.c.b16 %v632, %v629
      %v675 = vpack.c.b16 %v633, %v630
      %v676 = vpack.c.b16 %v637, %v634
      %v677 = vpack.c.b16 %v638, %v635
      %v678 = vpack.c.b16 %v639, %v636
      %v679 = vpack.c.b16 %v643, %v640
      %v680 = vpack.c.b16 %v644, %v641
      %v681 = vpack.c.b16 %v645, %v642
      %v682 = vpack.c.b16 %v649, %v646
      %v683 = vpack.c.b16 %v650, %v647
      %v684 = vpack.c.b16 %v651, %v648
      %v685 = vpack.c.b16 %v655, %v652
      %v686 = vpack.c.b16 %v656, %v653
      %v687 = vpack.c.b16 %v657, %v654
      %v688 = vpack.c.b16 %v661, %v658
      %v689 = vpack.c.b16 %v662, %v659
      %v690 = vpack.c.b16 %v663, %v660
      %v691 = vpack.c.b16 %v667, %v664
      %v692 = vpack.c.b16 %v668, %v665
      %v693 = vpack.c.b16 %v669, %v666
      %718 = vmatprep.subr.bf16.mxu0 %v671
      %719 = vmatpush1.bf16.msra.mxu0 %v670
      %720 = vmatprep.subr.bf16.mxu0 %v674
      %721 = vmatpush1.bf16.msra.mxu0 %v673
      %722 = vmatprep.subr.bf16.mxu0 %v677
      %723 = vmatpush1.bf16.msra.mxu0 %v676
      %724 = vmatprep.subr.bf16.mxu0 %v680
      %725 = vmatpush1.bf16.msra.mxu0 %v679
      %726 = vmatprep.subr.bf16.mxu0 %v683
      %727 = vmatpush1.bf16.msra.mxu0 %v682
      %728 = vmatprep.subr.bf16.mxu0 %v686
      %729 = vmatpush1.bf16.msra.mxu0 %v685
      %730 = vmatprep.subr.bf16.mxu0 %v689
      %731 = vmatpush1.bf16.msra.mxu0 %v688
      %732 = vmatprep.subr.bf16.mxu0 %v692
      %733 = vmatpush1.bf16.msra.mxu0 %v691
      %734 = vmatprep.subr.bf16.mxu0 0
      %735 = vmatpush1.bf16.msra.mxu0 0
      %736 = vmatprep.subr.bf16.mxu0 0
      %737 = vmatpush1.bf16.msra.mxu0 0
      %738 = vmatprep.subr.bf16.mxu0 0
      %739 = vmatpush1.bf16.msra.mxu0 0
      %740 = vmatprep.subr.bf16.mxu0 0
      %741 = vmatpush1.bf16.msra.mxu0 0
      %742 = vmatprep.subr.bf16.mxu0 0
      %743 = vmatpush1.bf16.msra.mxu0 0
      %744 = vmatprep.subr.bf16.mxu0 0
      %745 = vmatpush1.bf16.msra.mxu0 0
      %746 = vmatprep.subr.bf16.mxu0 0
      %747 = vmatpush1.bf16.msra.mxu0 0
      %748 = vmatprep.subr.bf16.mxu0 0
      %749 = vmatpush1.bf16.msra.mxu0 0
      %750 = vmatprep.mubr.bf16.mxu0 0
      %751 = vmatmul.mubr.bf16.gmra.mrb[0].mxu0 %v582
      %v752 = vpop.f32.mrb[0].mxu0
      %v753 = vadd.f32 0.0, %v752
      %v754 = vpop.f32.mrb[0].mxu0
      %v755 = vadd.f32 0.0, %v754
      %v756 = vpop.f32.mrb[0].mxu0
      %v757 = vadd.f32 0.0, %v756
      %v758 = vpop.f32.mrb[0].mxu0
      %v759 = vadd.f32 0.0, %v758
      %760 = vmatprep.mubr.bf16.mxu0 0
      %761 = vmatmul.mubr.bf16.gmra.mrb[0].mxu0 %v583
      %v762 = vpop.f32.mrb[0].mxu0
      %v763 = vadd.f32 0.0, %v762
      %v764 = vpop.f32.mrb[0].mxu0
      %v765 = vadd.f32 0.0, %v764
      %v766 = vpop.f32.mrb[0].mxu0
      %v767 = vadd.f32 0.0, %v766
      %v768 = vpop.f32.mrb[0].mxu0
      %v769 = vadd.f32 0.0, %v768
      %770 = vmatprep.mubr.bf16.mxu0 0
      %771 = vmatmul.mubr.bf16.gmra.mrb[0].mxu0 %v584
      %v772 = vpop.f32.mrb[0].mxu0
      %v773 = vadd.f32 0.0, %v772
      %v774 = vpop.f32.mrb[0].mxu0
      %v775 = vadd.f32 0.0, %v774
      %v776 = vpop.f32.mrb[0].mxu0
      %v777 = vadd.f32 0.0, %v776
      %v778 = vpop.f32.mrb[0].mxu0
      %v779 = vadd.f32 0.0, %v778
      %780 = vmatprep.mubr.bf16.mxu0 0
      %781 = vmatmul.mubr.bf16.gmra.mrb[0].mxu0 %v585
      %v782 = vpop.f32.mrb[0].mxu0
      %v783 = vadd.f32 0.0, %v782
      %v784 = vpop.f32.mrb[0].mxu0
      %v785 = vadd.f32 0.0, %v784
      %v786 = vpop.f32.mrb[0].mxu0
      %v787 = vadd.f32 0.0, %v786
      %v788 = vpop.f32.mrb[0].mxu0
      %v789 = vadd.f32 0.0, %v788
      %790 = vdwg.mxu0
      %791 = vmatprep.subr.bf16.mxu0 0
      %792 = vmatpush1.bf16.msra.mxu0 %v672
      %793 = vmatprep.subr.bf16.mxu0 0
      %794 = vmatpush1.bf16.msra.mxu0 %v675
      %795 = vmatprep.subr.bf16.mxu0 0
      %796 = vmatpush1.bf16.msra.mxu0 %v678
      %797 = vmatprep.subr.bf16.mxu0 0
      %798 = vmatpush1.bf16.msra.mxu0 %v681
      %799 = vmatprep.subr.bf16.mxu0 0
      %800 = vmatpush1.bf16.msra.mxu0 %v684
      %801 = vmatprep.subr.bf16.mxu0 0
      %802 = vmatpush1.bf16.msra.mxu0 %v687
      %803 = vmatprep.subr.bf16.mxu0 0
      %804 = vmatpush1.bf16.msra.mxu0 %v690
      %805 = vmatprep.subr.bf16.mxu0 0
      %806 = vmatpush1.bf16.msra.mxu0 %v693
      %807 = vmatprep.subr.bf16.mxu0 0
      %808 = vmatpush1.bf16.msra.mxu0 0
      %809 = vmatprep.subr.bf16.mxu0 0
      %810 = vmatpush1.bf16.msra.mxu0 0
      %811 = vmatprep.subr.bf16.mxu0 0
      %812 = vmatpush1.bf16.msra.mxu0 0
      %813 = vmatprep.subr.bf16.mxu0 0
      %814 = vmatpush1.bf16.msra.mxu0 0
      %815 = vmatprep.subr.bf16.mxu0 0
      %816 = vmatpush1.bf16.msra.mxu0 0
      %817 = vmatprep.subr.bf16.mxu0 0
      %818 = vmatpush1.bf16.msra.mxu0 0
      %819 = vmatprep.subr.bf16.mxu0 0
      %820 = vmatpush1.bf16.msra.mxu0 0
      %821 = vmatprep.subr.bf16.mxu0 0
      %822 = vmatpush1.bf16.msra.mxu0 0
      %823 = vmatprep.mubr.bf16.mxu0 0
      %824 = vmatmul.mubr.bf16.gmra.mrb[0].mxu0 %v582
      %v825 = vpop.f32.mrb[0].mxu0
      %v826 = vadd.f32 0.0, %v825
      %v827 = vpop.f32.mrb[0].mxu0
      %v828 = vpop.f32.mrb[0].mxu0
      %v829 = vadd.f32 0.0, %v828
      %v830 = vpop.f32.mrb[0].mxu0
      %831 = vmatprep.mubr.bf16.mxu0 0
      %832 = vmatmul.mubr.bf16.gmra.mrb[0].mxu0 %v583
      %v833 = vpop.f32.mrb[0].mxu0
      %v834 = vadd.f32 0.0, %v833
      %v835 = vpop.f32.mrb[0].mxu0
      %v836 = vpop.f32.mrb[0].mxu0
      %v837 = vadd.f32 0.0, %v836
      %v838 = vpop.f32.mrb[0].mxu0
      %839 = vmatprep.mubr.bf16.mxu0 0
      %840 = vmatmul.mubr.bf16.gmra.mrb[0].mxu0 %v584
      %v841 = vpop.f32.mrb[0].mxu0
      %v842 = vadd.f32 0.0, %v841
      %v843 = vpop.f32.mrb[0].mxu0
      %v844 = vpop.f32.mrb[0].mxu0
      %v845 = vadd.f32 0.0, %v844
      %v846 = vpop.f32.mrb[0].mxu0
      %847 = vmatprep.mubr.bf16.mxu0 0
      %848 = vmatmul.mubr.bf16.gmra.mrb[0].mxu0 %v585
      %v849 = vpop.f32.mrb[0].mxu0
      %v850 = vadd.f32 0.0, %v849
      %v851 = vpop.f32.mrb[0].mxu0
      %v852 = vpop.f32.mrb[0].mxu0
      %v853 = vadd.f32 0.0, %v852
      %v854 = vpop.f32.mrb[0].mxu0
      %855 = vdwg.mxu0
      %v864 = vunpack.c.l.b16 %v486
      %v865 = vunpack.c.l.b16 %v487
      %v866 = vunpack.c.l.b16 %v488
      %v867 = vunpack.c.l.b16 %v489
      %v868 = vunpack.c.l.b16 %v490
      %v869 = vunpack.c.l.b16 %v491
      %v870 = vunpack.c.l.b16 %v492
      %v871 = vunpack.c.l.b16 %v493
      %v872 = vpack.c.b16 %v865, %v864
      %v873 = vpack.c.b16 %v867, %v866
      %v874 = vpack.c.b16 %v869, %v868
      %v875 = vpack.c.b16 %v871, %v870
      %v912 = vunpack.c.l.b16 %v494
      %v913 = vunpack.c.h.b16 %v494
      %v914 = vunpack.c.l.b16 %v495
      %v915 = vunpack.c.l.b16 %v496
      %v916 = vunpack.c.h.b16 %v496
      %v917 = vunpack.c.l.b16 %v497
      %v918 = vunpack.c.l.b16 %v498
      %v919 = vunpack.c.h.b16 %v498
      %v920 = vunpack.c.l.b16 %v499
      %v921 = vunpack.c.l.b16 %v500
      %v922 = vunpack.c.h.b16 %v500
      %v923 = vunpack.c.l.b16 %v501
      %v924 = vunpack.c.l.b16 %v502
      %v925 = vunpack.c.h.b16 %v502
      %v926 = vunpack.c.l.b16 %v503
      %v927 = vunpack.c.l.b16 %v504
      %v928 = vunpack.c.h.b16 %v504
      %v929 = vunpack.c.l.b16 %v505
      %v930 = vunpack.c.l.b16 %v506
      %v931 = vunpack.c.h.b16 %v506
      %v932 = vunpack.c.l.b16 %v507
      %v933 = vunpack.c.l.b16 %v508
      %v934 = vunpack.c.h.b16 %v508
      %v935 = vunpack.c.l.b16 %v509
      %v936 = vunpack.c.l.b16 %v510
      %v937 = vunpack.c.h.b16 %v510
      %v938 = vunpack.c.l.b16 %v511
      %v939 = vunpack.c.l.b16 %v512
      %v940 = vunpack.c.h.b16 %v512
      %v941 = vunpack.c.l.b16 %v513
      %v942 = vunpack.c.l.b16 %v514
      %v943 = vunpack.c.h.b16 %v514
      %v944 = vunpack.c.l.b16 %v515
      %v945 = vunpack.c.l.b16 %v516
      %v946 = vunpack.c.h.b16 %v516
      %v947 = vunpack.c.l.b16 %v517
      %v948 = vunpack.c.l.b16 %v518
      %v949 = vunpack.c.h.b16 %v518
      %v950 = vunpack.c.l.b16 %v519
      %v951 = vunpack.c.l.b16 %v520
      %v952 = vunpack.c.h.b16 %v520
      %v953 = vunpack.c.l.b16 %v521
      %v954 = vunpack.c.l.b16 %v522
      %v955 = vunpack.c.h.b16 %v522
      %v956 = vunpack.c.l.b16 %v523
      %v957 = vunpack.c.l.b16 %v524
      %v958 = vunpack.c.h.b16 %v524
      %v959 = vunpack.c.l.b16 %v525
      %v960 = vpack.c.b16 %v915, %v912
      %v961 = vpack.c.b16 %v916, %v913
      %v962 = vpack.c.b16 %v917, %v914
      %v963 = vpack.c.b16 %v921, %v918
      %v964 = vpack.c.b16 %v922, %v919
      %v965 = vpack.c.b16 %v923, %v920
      %v966 = vpack.c.b16 %v927, %v924
      %v967 = vpack.c.b16 %v928, %v925
      %v968 = vpack.c.b16 %v929, %v926
      %v969 = vpack.c.b16 %v933, %v930
      %v970 = vpack.c.b16 %v934, %v931
      %v971 = vpack.c.b16 %v935, %v932
      %v972 = vpack.c.b16 %v939, %v936
      %v973 = vpack.c.b16 %v940, %v937
      %v974 = vpack.c.b16 %v941, %v938
      %v975 = vpack.c.b16 %v945, %v942
      %v976 = vpack.c.b16 %v946, %v943
      %v977 = vpack.c.b16 %v947, %v944
      %v978 = vpack.c.b16 %v951, %v948
      %v979 = vpack.c.b16 %v952, %v949
      %v980 = vpack.c.b16 %v953, %v950
      %v981 = vpack.c.b16 %v957, %v954
      %v982 = vpack.c.b16 %v958, %v955
      %v983 = vpack.c.b16 %v959, %v956
      %1008 = vmatprep.subr.bf16.mxu0 %v961
      %1009 = vmatpush1.bf16.msra.mxu0 %v960
      %1010 = vmatprep.subr.bf16.mxu0 %v964
      %1011 = vmatpush1.bf16.msra.mxu0 %v963
      %1012 = vmatprep.subr.bf16.mxu0 %v967
      %1013 = vmatpush1.bf16.msra.mxu0 %v966
      %1014 = vmatprep.subr.bf16.mxu0 %v970
      %1015 = vmatpush1.bf16.msra.mxu0 %v969
      %1016 = vmatprep.subr.bf16.mxu0 %v973
      %1017 = vmatpush1.bf16.msra.mxu0 %v972
      %1018 = vmatprep.subr.bf16.mxu0 %v976
      %1019 = vmatpush1.bf16.msra.mxu0 %v975
      %1020 = vmatprep.subr.bf16.mxu0 %v979
      %1021 = vmatpush1.bf16.msra.mxu0 %v978
      %1022 = vmatprep.subr.bf16.mxu0 %v982
      %1023 = vmatpush1.bf16.msra.mxu0 %v981
      %1024 = vmatprep.subr.bf16.mxu0 0
      %1025 = vmatpush1.bf16.msra.mxu0 0
      %1026 = vmatprep.subr.bf16.mxu0 0
      %1027 = vmatpush1.bf16.msra.mxu0 0
      %1028 = vmatprep.subr.bf16.mxu0 0
      %1029 = vmatpush1.bf16.msra.mxu0 0
      %1030 = vmatprep.subr.bf16.mxu0 0
      %1031 = vmatpush1.bf16.msra.mxu0 0
      %1032 = vmatprep.subr.bf16.mxu0 0
      %1033 = vmatpush1.bf16.msra.mxu0 0
      %1034 = vmatprep.subr.bf16.mxu0 0
      %1035 = vmatpush1.bf16.msra.mxu0 0
      %1036 = vmatprep.subr.bf16.mxu0 0
      %1037 = vmatpush1.bf16.msra.mxu0 0
      %1038 = vmatprep.subr.bf16.mxu0 0
      %1039 = vmatpush1.bf16.msra.mxu0 0
      %1040 = vmatprep.mubr.bf16.mxu0 0
      %1041 = vmatmul.mubr.bf16.gmra.mrb[0].mxu0 %v872
      %v1042 = vpop.f32.mrb[0].mxu0
      %v1043 = vadd.f32 %v753, %v1042
      %v1044 = vpop.f32.mrb[0].mxu0
      %v1045 = vadd.f32 %v755, %v1044
      %v1046 = vpop.f32.mrb[0].mxu0
      %v1047 = vadd.f32 %v757, %v1046
      %v1048 = vpop.f32.mrb[0].mxu0
      %v1049 = vadd.f32 %v759, %v1048
      %1050 = vmatprep.mubr.bf16.mxu0 0
      %1051 = vmatmul.mubr.bf16.gmra.mrb[0].mxu0 %v873
      %v1052 = vpop.f32.mrb[0].mxu0
      %v1053 = vadd.f32 %v763, %v1052
      %v1054 = vpop.f32.mrb[0].mxu0
      %v1055 = vadd.f32 %v765, %v1054
      %v1056 = vpop.f32.mrb[0].mxu0
      %v1057 = vadd.f32 %v767, %v1056
      %v1058 = vpop.f32.mrb[0].mxu0
      %v1059 = vadd.f32 %v769, %v1058
      %1060 = vmatprep.mubr.bf16.mxu0 0
      %1061 = vmatmul.mubr.bf16.gmra.mrb[0].mxu0 %v874
      %v1062 = vpop.f32.mrb[0].mxu0
      %v1063 = vadd.f32 %v773, %v1062
      %v1064 = vpop.f32.mrb[0].mxu0
      %v1065 = vadd.f32 %v775, %v1064
      %v1066 = vpop.f32.mrb[0].mxu0
      %v1067 = vadd.f32 %v777, %v1066
      %v1068 = vpop.f32.mrb[0].mxu0
      %v1069 = vadd.f32 %v779, %v1068
      %1070 = vmatprep.mubr.bf16.mxu0 0
      %1071 = vmatmul.mubr.bf16.gmra.mrb[0].mxu0 %v875
      %v1072 = vpop.f32.mrb[0].mxu0
      %v1073 = vadd.f32 %v783, %v1072
      %v1074 = vpop.f32.mrb[0].mxu0
      %v1075 = vadd.f32 %v785, %v1074
      %v1076 = vpop.f32.mrb[0].mxu0
      %v1077 = vadd.f32 %v787, %v1076
      %v1078 = vpop.f32.mrb[0].mxu0
      %v1079 = vadd.f32 %v789, %v1078
      %1080 = vdwg.mxu0
      %1081 = vmatprep.subr.bf16.mxu0 0
      %1082 = vmatpush1.bf16.msra.mxu0 %v962
      %1083 = vmatprep.subr.bf16.mxu0 0
      %1084 = vmatpush1.bf16.msra.mxu0 %v965
      %1085 = vmatprep.subr.bf16.mxu0 0
      %1086 = vmatpush1.bf16.msra.mxu0 %v968
      %1087 = vmatprep.subr.bf16.mxu0 0
      %1088 = vmatpush1.bf16.msra.mxu0 %v971
      %1089 = vmatprep.subr.bf16.mxu0 0
      %1090 = vmatpush1.bf16.msra.mxu0 %v974
      %1091 = vmatprep.subr.bf16.mxu0 0
      %1092 = vmatpush1.bf16.msra.mxu0 %v977
      %1093 = vmatprep.subr.bf16.mxu0 0
      %1094 = vmatpush1.bf16.msra.mxu0 %v980
      %1095 = vmatprep.subr.bf16.mxu0 0
      %1096 = vmatpush1.bf16.msra.mxu0 %v983
      %1097 = vmatprep.subr.bf16.mxu0 0
      %1098 = vmatpush1.bf16.msra.mxu0 0
      %1099 = vmatprep.subr.bf16.mxu0 0
      %1100 = vmatpush1.bf16.msra.mxu0 0
      %1101 = vmatprep.subr.bf16.mxu0 0
      %1102 = vmatpush1.bf16.msra.mxu0 0
      %1103 = vmatprep.subr.bf16.mxu0 0
      %1104 = vmatpush1.bf16.msra.mxu0 0
      %1105 = vmatprep.subr.bf16.mxu0 0
      %1106 = vmatpush1.bf16.msra.mxu0 0
      %1107 = vmatprep.subr.bf16.mxu0 0
      %1108 = vmatpush1.bf16.msra.mxu0 0
      %1109 = vmatprep.subr.bf16.mxu0 0
      %1110 = vmatpush1.bf16.msra.mxu0 0
      %1111 = vmatprep.subr.bf16.mxu0 0
      %1112 = vmatpush1.bf16.msra.mxu0 0
      %1113 = vmatprep.mubr.bf16.mxu0 0
      %1114 = vmatmul.mubr.bf16.gmra.mrb[0].mxu0 %v872
      %v1115 = vpop.f32.mrb[0].mxu0
      %v1116 = vadd.f32 %v826, %v1115
      %v1117 = vpop.f32.mrb[0].mxu0
      %v1118 = vpop.f32.mrb[0].mxu0
      %v1119 = vadd.f32 %v829, %v1118
      %v1120 = vpop.f32.mrb[0].mxu0
      %1121 = vmatprep.mubr.bf16.mxu0 0
      %1122 = vmatmul.mubr.bf16.gmra.mrb[0].mxu0 %v873
      %v1123 = vpop.f32.mrb[0].mxu0
      %v1124 = vadd.f32 %v834, %v1123
      %v1125 = vpop.f32.mrb[0].mxu0
      %v1126 = vpop.f32.mrb[0].mxu0
      %v1127 = vadd.f32 %v837, %v1126
      %v1128 = vpop.f32.mrb[0].mxu0
      %1129 = vmatprep.mubr.bf16.mxu0 0
      %1130 = vmatmul.mubr.bf16.gmra.mrb[0].mxu0 %v874
      %v1131 = vpop.f32.mrb[0].mxu0
      %v1132 = vadd.f32 %v842, %v1131
      %v1133 = vpop.f32.mrb[0].mxu0
      %v1134 = vpop.f32.mrb[0].mxu0
      %v1135 = vadd.f32 %v845, %v1134
      %v1136 = vpop.f32.mrb[0].mxu0
      %1137 = vmatprep.mubr.bf16.mxu0 0
      %1138 = vmatmul.mubr.bf16.gmra.mrb[0].mxu0 %v875
      %v1139 = vpop.f32.mrb[0].mxu0
      %v1140 = vadd.f32 %v850, %v1139
      %v1141 = vpop.f32.mrb[0].mxu0
      %v1142 = vpop.f32.mrb[0].mxu0
      %v1143 = vadd.f32 %v853, %v1142
      %v1144 = vpop.f32.mrb[0].mxu0
      %1145 = vdwg.mxu0
      %v1146 = vld [vmem:[%s7] sm:$0x7]
      %v1148 = vlaneseq
      %v1149 = vshrl.u32 %v1148, 7
      %v1150 = vsub.s32 0, %v1149
      %v1151 = vrot.slane %v1146, %v1150
      %v1152 = vlaneseq
      %v1153 = vshrl.u32 %v1152, 7
      %v1154 = vsub.s32 1, %v1153
      %v1155 = vrot.slane %v1146, %v1154
      %v1156 = vlaneseq
      %v1157 = vshrl.u32 %v1156, 7
      %v1158 = vsub.s32 2, %v1157
      %v1159 = vrot.slane %v1146, %v1158
      %v1163 = vadd.f32 %v1043, %v1151
      %v1164 = vadd.f32 %v1045, %v1155
      %v1165 = vadd.f32 %v1116, %v1159
      %v1166 = vadd.f32 %v1047, %v1151
      %v1167 = vadd.f32 %v1049, %v1155
      %v1168 = vadd.f32 %v1119, %v1159
      %v1169 = vadd.f32 %v1053, %v1151
      %v1170 = vadd.f32 %v1055, %v1155
      %v1171 = vadd.f32 %v1124, %v1159
      %v1172 = vadd.f32 %v1057, %v1151
      %v1173 = vadd.f32 %v1059, %v1155
      %v1174 = vadd.f32 %v1127, %v1159
      %v1175 = vadd.f32 %v1063, %v1151
      %v1176 = vadd.f32 %v1065, %v1155
      %v1177 = vadd.f32 %v1132, %v1159
      %v1178 = vadd.f32 %v1067, %v1151
      %v1179 = vadd.f32 %v1069, %v1155
      %v1180 = vadd.f32 %v1135, %v1159
      %v1181 = vadd.f32 %v1073, %v1151
      %v1182 = vadd.f32 %v1075, %v1155
      %v1183 = vadd.f32 %v1140, %v1159
      %v1184 = vadd.f32 %v1077, %v1151
      %v1185 = vadd.f32 %v1079, %v1155
      %v1186 = vadd.f32 %v1143, %v1159
      %1187 = vst [vmem:[#allocation3] sm:$0xff] %v1163
      %1188 = vst [vmem:[#allocation3 + $0x8] sm:$0xff] %v1164
      %1189 = vst [vmem:[#allocation3 + $0x10] sm:$0xff] %v1165
      %1190 = vst [vmem:[#allocation3 + $0x18] sm:$0xff] %v1166
      %1191 = vst [vmem:[#allocation3 + $0x20] sm:$0xff] %v1167
      %1192 = vst [vmem:[#allocation3 + $0x28] sm:$0xff] %v1168
      %1193 = vst [vmem:[#allocation3 + $0x30] sm:$0xff] %v1169
      %1194 = vst [vmem:[#allocation3 + $0x38] sm:$0xff] %v1170
      %1195 = vst [vmem:[#allocation3 + $0x40] sm:$0xff] %v1171
      %1196 = vst [vmem:[#allocation3 + $0x48] sm:$0xff] %v1172
      %1197 = vst [vmem:[#allocation3 + $0x50] sm:$0xff] %v1173
      %1198 = vst [vmem:[#allocation3 + $0x58] sm:$0xff] %v1174
      %1199 = vst [vmem:[#allocation3 + $0x60] sm:$0xff] %v1175
      %1200 = vst [vmem:[#allocation3 + $0x68] sm:$0xff] %v1176
      %1201 = vst [vmem:[#allocation3 + $0x70] sm:$0xff] %v1177
      %1202 = vst [vmem:[#allocation3 + $0x78] sm:$0xff] %v1178
      %1203 = vst [vmem:[#allocation3 + $0x80] sm:$0xff] %v1179
      %1204 = vst [vmem:[#allocation3 + $0x88] sm:$0xff] %v1180
      %1205 = vst [vmem:[#allocation3 + $0x90] sm:$0xff] %v1181
      %1206 = vst [vmem:[#allocation3 + $0x98] sm:$0xff] %v1182
      %1207 = vst [vmem:[#allocation3 + $0xa0] sm:$0xff] %v1183
      %1208 = vst [vmem:[#allocation3 + $0xa8] sm:$0xff] %v1184
      %1209 = vst [vmem:[#allocation3 + $0xb0] sm:$0xff] %v1185
      %1210 = vst [vmem:[#allocation3 + $0xb8] sm:$0xff] %v1186
      %v1211 = vld [vmem:[%s6] sm:$0xff]
      %v1212 = vld [vmem:[%s6 + $0x8] sm:$0xf]
      %v1213 = vld [vmem:[%s6 + $0xc] sm:$0xff]
      %v1214 = vld [vmem:[%s6 + $0x14] sm:$0xf]
      %v1215 = vld [vmem:[%s6 + $0x18] sm:$0xff]
      %v1216 = vld [vmem:[%s6 + $0x20] sm:$0xf]
      %v1217 = vld [vmem:[%s6 + $0x24] sm:$0xff]
      %v1218 = vld [vmem:[%s6 + $0x2c] sm:$0xf]
      %v1219 = vld [vmem:[%s6 + $0x30] sm:$0xff]
      %v1220 = vld [vmem:[%s6 + $0x38] sm:$0xf]
      %v1221 = vld [vmem:[%s6 + $0x3c] sm:$0xff]
      %v1222 = vld [vmem:[%s6 + $0x44] sm:$0xf]
      %v1223 = vld [vmem:[%s6 + $0x48] sm:$0xff]
      %v1224 = vld [vmem:[%s6 + $0x50] sm:$0xf]
      %v1225 = vld [vmem:[%s6 + $0x54] sm:$0xff]
      %v1226 = vld [vmem:[%s6 + $0x5c] sm:$0xf]
      %v1227 = vld [vmem:[%s6 + $0x60] sm:$0xff]
      %v1228 = vld [vmem:[%s6 + $0x68] sm:$0xf]
      %v1229 = vld [vmem:[%s6 + $0x6c] sm:$0xff]
      %v1230 = vld [vmem:[%s6 + $0x74] sm:$0xf]
      %v1231 = vld [vmem:[%s6 + $0x78] sm:$0xff]
      %v1232 = vld [vmem:[%s6 + $0x80] sm:$0xf]
      %v1233 = vld [vmem:[%s6 + $0x84] sm:$0xff]
      %v1234 = vld [vmem:[%s6 + $0x8c] sm:$0xf]
      %v1235 = vld [vmem:[%s6 + $0x90] sm:$0xff]
      %v1236 = vld [vmem:[%s6 + $0x98] sm:$0xf]
      %v1237 = vld [vmem:[%s6 + $0x9c] sm:$0xff]
      %v1238 = vld [vmem:[%s6 + $0xa4] sm:$0xf]
      %v1239 = vld [vmem:[%s6 + $0xa8] sm:$0xff]
      %v1240 = vld [vmem:[%s6 + $0xb0] sm:$0xf]
      %v1241 = vld [vmem:[%s6 + $0xb4] sm:$0xff]
      %v1242 = vld [vmem:[%s6 + $0xbc] sm:$0xf]
      %v1243 = vld [vmem:[%s9] sm:$0x1]
      %v1245 = vlaneseq
      %v1246 = vshrl.u32 %v1245, 7
      %v1247 = vsub.s32 0, %v1246
      %v1248 = vrot.slane %v1243, %v1247
      %v1250 = vld [vmem:[#allocation2] sm:$0xff]
      %v1251 = vld [vmem:[#allocation2 + $0x8] sm:$0xff]
      %s1252 = smul.u32 0, 3
      %s1253 = smul.addr %s1252, 8
      %s1254 = scalar_lea.vmem [#allocation3], %s1253
      %v1255 = vld [vmem:[%s1254] sm:$0xff]
      %v1256 = vld [vmem:[%s1254 + $0x8] sm:$0xff]
      %v1257 = vld [vmem:[%s1254 + $0x10] sm:$0xff]
      %v1258 = vld [vmem:[%s1254 + $0x18] sm:$0xff]
      %v1259 = vld [vmem:[%s1254 + $0x20] sm:$0xff]
      %v1260 = vld [vmem:[%s1254 + $0x28] sm:$0xff]
      %v1261 = vpack.c.bf16 %v1251, %v1250
      %v1294 = vunpack.c.l.b16 %v1211
      %v1295 = vunpack.c.h.b16 %v1211
      %v1296 = vunpack.c.l.b16 %v1212
      %v1297 = vunpack.c.l.b16 %v1213
      %v1298 = vunpack.c.h.b16 %v1213
      %v1299 = vunpack.c.l.b16 %v1214
      %v1300 = vunpack.c.l.b16 %v1215
      %v1301 = vunpack.c.h.b16 %v1215
      %v1302 = vunpack.c.l.b16 %v1216
      %v1303 = vunpack.c.l.b16 %v1217
      %v1304 = vunpack.c.h.b16 %v1217
      %v1305 = vunpack.c.l.b16 %v1218
      %v1306 = vunpack.c.l.b16 %v1219
      %v1307 = vunpack.c.h.b16 %v1219
      %v1308 = vunpack.c.l.b16 %v1220
      %v1309 = vunpack.c.l.b16 %v1221
      %v1310 = vunpack.c.h.b16 %v1221
      %v1311 = vunpack.c.l.b16 %v1222
      %v1312 = vunpack.c.l.b16 %v1223
      %v1313 = vunpack.c.h.b16 %v1223
      %v1314 = vunpack.c.l.b16 %v1224
      %v1315 = vunpack.c.l.b16 %v1225
      %v1316 = vunpack.c.h.b16 %v1225
      %v1317 = vunpack.c.l.b16 %v1226
      %v1318 = vunpack.c.l.b16 %v1227
      %v1319 = vunpack.c.h.b16 %v1227
      %v1320 = vunpack.c.l.b16 %v1228
      %v1321 = vunpack.c.l.b16 %v1229
      %v1322 = vunpack.c.h.b16 %v1229
      %v1323 = vunpack.c.l.b16 %v1230
      %v1324 = vunpack.c.l.b16 %v1231
      %v1325 = vunpack.c.h.b16 %v1231
      %v1326 = vunpack.c.l.b16 %v1232
      %v1327 = vunpack.c.l.b16 %v1233
      %v1328 = vunpack.c.h.b16 %v1233
      %v1329 = vunpack.c.l.b16 %v1234
      %v1330 = vunpack.c.l.b16 %v1235
      %v1331 = vunpack.c.h.b16 %v1235
      %v1332 = vunpack.c.l.b16 %v1236
      %v1333 = vunpack.c.l.b16 %v1237
      %v1334 = vunpack.c.h.b16 %v1237
      %v1335 = vunpack.c.l.b16 %v1238
      %v1336 = vunpack.c.l.b16 %v1239
      %v1337 = vunpack.c.h.b16 %v1239
      %v1338 = vunpack.c.l.b16 %v1240
      %v1339 = vunpack.c.l.b16 %v1241
      %v1340 = vunpack.c.h.b16 %v1241
      %v1341 = vunpack.c.l.b16 %v1242
      %v1342 = vpack.c.b16 %v1297, %v1294
      %v1343 = vpack.c.b16 %v1298, %v1295
      %v1344 = vpack.c.b16 %v1299, %v1296
      %v1345 = vpack.c.b16 %v1303, %v1300
      %v1346 = vpack.c.b16 %v1304, %v1301
      %v1347 = vpack.c.b16 %v1305, %v1302
      %v1348 = vpack.c.b16 %v1309, %v1306
      %v1349 = vpack.c.b16 %v1310, %v1307
      %v1350 = vpack.c.b16 %v1311, %v1308
      %v1351 = vpack.c.b16 %v1315, %v1312
      %v1352 = vpack.c.b16 %v1316, %v1313
      %v1353 = vpack.c.b16 %v1317, %v1314
      %v1354 = vpack.c.b16 %v1321, %v1318
      %v1355 = vpack.c.b16 %v1322, %v1319
      %v1356 = vpack.c.b16 %v1323, %v1320
      %v1357 = vpack.c.b16 %v1327, %v1324
      %v1358 = vpack.c.b16 %v1328, %v1325
      %v1359 = vpack.c.b16 %v1329, %v1326
      %v1360 = vpack.c.b16 %v1333, %v1330
      %v1361 = vpack.c.b16 %v1334, %v1331
      %v1362 = vpack.c.b16 %v1335, %v1332
      %v1363 = vpack.c.b16 %v1339, %v1336
      %v1364 = vpack.c.b16 %v1340, %v1337
      %v1365 = vpack.c.b16 %v1341, %v1338
      %1390 = vmatprep.subr.bf16.mxu0 %v1343
      %1391 = vmatpush1.bf16.msra.mxu0 %v1342
      %1392 = vmatprep.subr.bf16.mxu0 %v1346
      %1393 = vmatpush1.bf16.msra.mxu0 %v1345
      %1394 = vmatprep.subr.bf16.mxu0 %v1349
      %1395 = vmatpush1.bf16.msra.mxu0 %v1348
      %1396 = vmatprep.subr.bf16.mxu0 %v1352
      %1397 = vmatpush1.bf16.msra.mxu0 %v1351
      %1398 = vmatprep.subr.bf16.mxu0 %v1355
      %1399 = vmatpush1.bf16.msra.mxu0 %v1354
      %1400 = vmatprep.subr.bf16.mxu0 %v1358
      %1401 = vmatpush1.bf16.msra.mxu0 %v1357
      %1402 = vmatprep.subr.bf16.mxu0 %v1361
      %1403 = vmatpush1.bf16.msra.mxu0 %v1360
      %1404 = vmatprep.subr.bf16.mxu0 %v1364
      %1405 = vmatpush1.bf16.msra.mxu0 %v1363
      %1406 = vmatprep.subr.bf16.mxu0 0
      %1407 = vmatpush1.bf16.msra.mxu0 0
      %1408 = vmatprep.subr.bf16.mxu0 0
      %1409 = vmatpush1.bf16.msra.mxu0 0
      %1410 = vmatprep.subr.bf16.mxu0 0
      %1411 = vmatpush1.bf16.msra.mxu0 0
      %1412 = vmatprep.subr.bf16.mxu0 0
      %1413 = vmatpush1.bf16.msra.mxu0 0
      %1414 = vmatprep.subr.bf16.mxu0 0
      %1415 = vmatpush1.bf16.msra.mxu0 0
      %1416 = vmatprep.subr.bf16.mxu0 0
      %1417 = vmatpush1.bf16.msra.mxu0 0
      %1418 = vmatprep.subr.bf16.mxu0 0
      %1419 = vmatpush1.bf16.msra.mxu0 0
      %1420 = vmatprep.subr.bf16.mxu0 0
      %1421 = vmatpush1.bf16.msra.mxu0 0
      %1422 = vmatprep.mubr.bf16.mxu0 0
      %1423 = vmatmul.mubr.bf16.gmra.mrb[0].mxu0 %v1261
      %v1424 = vpop.f32.mrb[0].mxu0
      %v1425 = vadd.f32 0.0, %v1424
      %v1426 = vpop.f32.mrb[0].mxu0
      %v1427 = vadd.f32 0.0, %v1426
      %v1428 = vpop.f32.mrb[0].mxu0
      %v1429 = vadd.f32 0.0, %v1428
      %v1430 = vpop.f32.mrb[0].mxu0
      %v1431 = vadd.f32 0.0, %v1430
      %1432 = vdwg.mxu0
      %1433 = vmatprep.subr.bf16.mxu0 0
      %1434 = vmatpush1.bf16.msra.mxu0 %v1344
      %1435 = vmatprep.subr.bf16.mxu0 0
      %1436 = vmatpush1.bf16.msra.mxu0 %v1347
      %1437 = vmatprep.subr.bf16.mxu0 0
      %1438 = vmatpush1.bf16.msra.mxu0 %v1350
      %1439 = vmatprep.subr.bf16.mxu0 0
      %1440 = vmatpush1.bf16.msra.mxu0 %v1353
      %1441 = vmatprep.subr.bf16.mxu0 0
      %1442 = vmatpush1.bf16.msra.mxu0 %v1356
      %1443 = vmatprep.subr.bf16.mxu0 0
      %1444 = vmatpush1.bf16.msra.mxu0 %v1359
      %1445 = vmatprep.subr.bf16.mxu0 0
      %1446 = vmatpush1.bf16.msra.mxu0 %v1362
      %1447 = vmatprep.subr.bf16.mxu0 0
      %1448 = vmatpush1.bf16.msra.mxu0 %v1365
      %1449 = vmatprep.subr.bf16.mxu0 0
      %1450 = vmatpush1.bf16.msra.mxu0 0
      %1451 = vmatprep.subr.bf16.mxu0 0
      %1452 = vmatpush1.bf16.msra.mxu0 0
      %1453 = vmatprep.subr.bf16.mxu0 0
      %1454 = vmatpush1.bf16.msra.mxu0 0
      %1455 = vmatprep.subr.bf16.mxu0 0
      %1456 = vmatpush1.bf16.msra.mxu0 0
      %1457 = vmatprep.subr.bf16.mxu0 0
      %1458 = vmatpush1.bf16.msra.mxu0 0
      %1459 = vmatprep.subr.bf16.mxu0 0
      %1460 = vmatpush1.bf16.msra.mxu0 0
      %1461 = vmatprep.subr.bf16.mxu0 0
      %1462 = vmatpush1.bf16.msra.mxu0 0
      %1463 = vmatprep.subr.bf16.mxu0 0
      %1464 = vmatpush1.bf16.msra.mxu0 0
      %1465 = vmatprep.mubr.bf16.mxu0 0
      %1466 = vmatmul.mubr.bf16.gmra.mrb[0].mxu0 %v1261
      %v1467 = vpop.f32.mrb[0].mxu0
      %v1468 = vadd.f32 0.0, %v1467
      %v1469 = vpop.f32.mrb[0].mxu0
      %v1470 = vpop.f32.mrb[0].mxu0
      %v1471 = vadd.f32 0.0, %v1470
      %v1472 = vpop.f32.mrb[0].mxu0
      %1473 = vdwg.mxu0
      %v1474 = vadd.f32 %v1255, %v1425
      %v1475 = vadd.f32 %v1258, %v1429
      %v1476 = vxor.u32 %v1474, 2147483648
      %v1477 = vxor.u32 %v1475, 2147483648
      %v1478 = vmul.f32 %v1476, 1.442695
      %v1479 = vpow.pop %v1478
      %v1480 = vmul.f32 %v1477, 1.442695
      %v1481 = vpow.pop %v1480
      %v1482 = vadd.f32 %v1479, 1.0
      %v1483 = vadd.f32 %v1481, 1.0
      %v1484 = vrcp.pop %v1482
      %v1485 = vmul.f32 1.0, %v1484
      %v1486 = vrcp.pop %v1483
      %v1487 = vmul.f32 1.0, %v1486
      %v1488 = vadd.f32 %v1256, %v1427
      %v1489 = vadd.f32 %v1259, %v1431
      %v1490 = vxor.u32 %v1488, 2147483648
      %v1491 = vxor.u32 %v1489, 2147483648
      %v1492 = vmul.f32 %v1490, 1.442695
      %v1493 = vpow.pop %v1492
      %v1494 = vmul.f32 %v1491, 1.442695
      %v1495 = vpow.pop %v1494
      %v1496 = vadd.f32 %v1493, 1.0
      %v1497 = vadd.f32 %v1495, 1.0
      %v1498 = vrcp.pop %v1496
      %v1499 = vmul.f32 1.0, %v1498
      %v1500 = vrcp.pop %v1497
      %v1501 = vmul.f32 1.0, %v1500
      %v1502 = vadd.f32 %v1468, %v1248
      %v1503 = vadd.f32 %v1471, %v1248
      %v1504 = vmul.f32 %v1485, %v1502
      %v1505 = vmul.f32 %v1487, %v1503
      %v1506 = vadd.f32 %v1257, %v1504
      %v1507 = vadd.f32 %v1260, %v1505
      %v1508 = vtanh.pop %v1506
      %v1509 = vtanh.pop %v1507
      %v1510 = vsub.f32 %v1250, %v1508
      %v1511 = vsub.f32 %v1251, %v1509
      %v1512 = vmul.f32 %v1499, %v1510
      %v1513 = vmul.f32 %v1501, %v1511
      %v1514 = vadd.f32 %v1508, %v1512
      %v1515 = vadd.f32 %v1509, %v1513
      %s1516 = smul.u32 2, 3
      %s1517 = smul.addr %s1516, 8
      %s1518 = scalar_lea.vmem [#allocation3], %s1517
      %v1519 = vld [vmem:[%s1518] sm:$0xff]
      %v1520 = vld [vmem:[%s1518 + $0x8] sm:$0xff]
      %v1521 = vld [vmem:[%s1518 + $0x10] sm:$0xff]
      %v1522 = vld [vmem:[%s1518 + $0x18] sm:$0xff]
      %v1523 = vld [vmem:[%s1518 + $0x20] sm:$0xff]
      %v1524 = vld [vmem:[%s1518 + $0x28] sm:$0xff]
      %v1525 = vpack.c.bf16 %v1515, %v1514
      %1526 = vmatprep.subr.bf16.mxu0 %v1343
      %1527 = vmatpush1.bf16.msra.mxu0 %v1342
      %1528 = vmatprep.subr.bf16.mxu0 %v1346
      %1529 = vmatpush1.bf16.msra.mxu0 %v1345
      %1530 = vmatprep.subr.bf16.mxu0 %v1349
      %1531 = vmatpush1.bf16.msra.mxu0 %v1348
      %1532 = vmatprep.subr.bf16.mxu0 %v1352
      %1533 = vmatpush1.bf16.msra.mxu0 %v1351
      %1534 = vmatprep.subr.bf16.mxu0 %v1355
      %1535 = vmatpush1.bf16.msra.mxu0 %v1354
      %1536 = vmatprep.subr.bf16.mxu0 %v1358
      %1537 = vmatpush1.bf16.msra.mxu0 %v1357
      %1538 = vmatprep.subr.bf16.mxu0 %v1361
      %1539 = vmatpush1.bf16.msra.mxu0 %v1360
      %1540 = vmatprep.subr.bf16.mxu0 %v1364
      %1541 = vmatpush1.bf16.msra.mxu0 %v1363
      %1542 = vmatprep.subr.bf16.mxu0 0
      %1543 = vmatpush1.bf16.msra.mxu0 0
      %1544 = vmatprep.subr.bf16.mxu0 0
      %1545 = vmatpush1.bf16.msra.mxu0 0
      %1546 = vmatprep.subr.bf16.mxu0 0
      %1547 = vmatpush1.bf16.msra.mxu0 0
      %1548 = vmatprep.subr.bf16.mxu0 0
      %1549 = vmatpush1.bf16.msra.mxu0 0
      %1550 = vmatprep.subr.bf16.mxu0 0
      %1551 = vmatpush1.bf16.msra.mxu0 0
      %1552 = vmatprep.subr.bf16.mxu0 0
      %1553 = vmatpush1.bf16.msra.mxu0 0
      %1554 = vmatprep.subr.bf16.mxu0 0
      %1555 = vmatpush1.bf16.msra.mxu0 0
      %1556 = vmatprep.subr.bf16.mxu0 0
      %1557 = vmatpush1.bf16.msra.mxu0 0
      %1558 = vmatprep.mubr.bf16.mxu0 0
      %1559 = vmatmul.mubr.bf16.gmra.mrb[0].mxu0 %v1525
      %v1560 = vpop.f32.mrb[0].mxu0
      %v1561 = vadd.f32 0.0, %v1560
      %v1562 = vpop.f32.mrb[0].mxu0
      %v1563 = vadd.f32 0.0, %v1562
      %v1564 = vpop.f32.mrb[0].mxu0
      %v1565 = vadd.f32 0.0, %v1564
      %v1566 = vpop.f32.mrb[0].mxu0
      %v1567 = vadd.f32 0.0, %v1566
      %1568 = vdwg.mxu0
      %1569 = vmatprep.subr.bf16.mxu0 0
      %1570 = vmatpush1.bf16.msra.mxu0 %v1344
      %1571 = vmatprep.subr.bf16.mxu0 0
      %1572 = vmatpush1.bf16.msra.mxu0 %v1347
      %1573 = vmatprep.subr.bf16.mxu0 0
      %1574 = vmatpush1.bf16.msra.mxu0 %v1350
      %1575 = vmatprep.subr.bf16.mxu0 0
      %1576 = vmatpush1.bf16.msra.mxu0 %v1353
      %1577 = vmatprep.subr.bf16.mxu0 0
      %1578 = vmatpush1.bf16.msra.mxu0 %v1356
      %1579 = vmatprep.subr.bf16.mxu0 0
      %1580 = vmatpush1.bf16.msra.mxu0 %v1359
      %1581 = vmatprep.subr.bf16.mxu0 0
      %1582 = vmatpush1.bf16.msra.mxu0 %v1362
      %1583 = vmatprep.subr.bf16.mxu0 0
      %1584 = vmatpush1.bf16.msra.mxu0 %v1365
      %1585 = vmatprep.subr.bf16.mxu0 0
      %1586 = vmatpush1.bf16.msra.mxu0 0
      %1587 = vmatprep.subr.bf16.mxu0 0
      %1588 = vmatpush1.bf16.msra.mxu0 0
      %1589 = vmatprep.subr.bf16.mxu0 0
      %1590 = vmatpush1.bf16.msra.mxu0 0
      %1591 = vmatprep.subr.bf16.mxu0 0
      %1592 = vmatpush1.bf16.msra.mxu0 0
      %1593 = vmatprep.subr.bf16.mxu0 0
      %1594 = vmatpush1.bf16.msra.mxu0 0
      %1595 = vmatprep.subr.bf16.mxu0 0
      %1596 = vmatpush1.bf16.msra.mxu0 0
      %1597 = vmatprep.subr.bf16.mxu0 0
      %1598 = vmatpush1.bf16.msra.mxu0 0
      %1599 = vmatprep.subr.bf16.mxu0 0
      %1600 = vmatpush1.bf16.msra.mxu0 0
      %1601 = vmatprep.mubr.bf16.mxu0 0
      %1602 = vmatmul.mubr.bf16.gmra.mrb[0].mxu0 %v1525
      %v1603 = vpop.f32.mrb[0].mxu0
      %v1604 = vadd.f32 0.0, %v1603
      %v1605 = vpop.f32.mrb[0].mxu0
      %v1606 = vpop.f32.mrb[0].mxu0
      %v1607 = vadd.f32 0.0, %v1606
      %v1608 = vpop.f32.mrb[0].mxu0
      %1609 = vdwg.mxu0
      %v1610 = vadd.f32 %v1519, %v1561
      %v1611 = vadd.f32 %v1522, %v1565
      %v1612 = vxor.u32 %v1610, 2147483648
      %v1613 = vxor.u32 %v1611, 2147483648
      %v1614 = vmul.f32 %v1612, 1.442695
      %v1615 = vpow.pop %v1614
      %v1616 = vmul.f32 %v1613, 1.442695
      %v1617 = vpow.pop %v1616
      %v1618 = vadd.f32 %v1615, 1.0
      %v1619 = vadd.f32 %v1617, 1.0
      %v1620 = vrcp.pop %v1618
      %v1621 = vmul.f32 1.0, %v1620
      %v1622 = vrcp.pop %v1619
      %v1623 = vmul.f32 1.0, %v1622
      %v1624 = vadd.f32 %v1520, %v1563
      %v1625 = vadd.f32 %v1523, %v1567
      %v1626 = vxor.u32 %v1624, 2147483648
      %v1627 = vxor.u32 %v1625, 2147483648
      %v1628 = vmul.f32 %v1626, 1.442695
      %v1629 = vpow.pop %v1628
      %v1630 = vmul.f32 %v1627, 1.442695
      %v1631 = vpow.pop %v1630
      %v1632 = vadd.f32 %v1629, 1.0
      %v1633 = vadd.f32 %v1631, 1.0
      %v1634 = vrcp.pop %v1632
      %v1635 = vmul.f32 1.0, %v1634
      %v1636 = vrcp.pop %v1633
      %v1637 = vmul.f32 1.0, %v1636
      %v1638 = vadd.f32 %v1604, %v1248
      %v1639 = vadd.f32 %v1607, %v1248
      %v1640 = vmul.f32 %v1621, %v1638
      %v1641 = vmul.f32 %v1623, %v1639
      %v1642 = vadd.f32 %v1521, %v1640
      %v1643 = vadd.f32 %v1524, %v1641
      %v1644 = vtanh.pop %v1642
      %v1645 = vtanh.pop %v1643
      %v1646 = vsub.f32 %v1514, %v1644
      %v1647 = vsub.f32 %v1515, %v1645
      %v1648 = vmul.f32 %v1635, %v1646
      %v1649 = vmul.f32 %v1637, %v1647
      %v1650 = vadd.f32 %v1644, %v1648
      %v1651 = vadd.f32 %v1645, %v1649
      %s1652 = smul.u32 4, 3
      %s1653 = smul.addr %s1652, 8
      %s1654 = scalar_lea.vmem [#allocation3], %s1653
      %v1655 = vld [vmem:[%s1654] sm:$0xff]
      %v1656 = vld [vmem:[%s1654 + $0x8] sm:$0xff]
      %v1657 = vld [vmem:[%s1654 + $0x10] sm:$0xff]
      %v1658 = vld [vmem:[%s1654 + $0x18] sm:$0xff]
      %v1659 = vld [vmem:[%s1654 + $0x20] sm:$0xff]
      %v1660 = vld [vmem:[%s1654 + $0x28] sm:$0xff]
      %v1661 = vpack.c.bf16 %v1651, %v1650
      %1662 = vmatprep.subr.bf16.mxu0 %v1343
      %1663 = vmatpush1.bf16.msra.mxu0 %v1342
      %1664 = vmatprep.subr.bf16.mxu0 %v1346
      %1665 = vmatpush1.bf16.msra.mxu0 %v1345
      %1666 = vmatprep.subr.bf16.mxu0 %v1349
      %1667 = vmatpush1.bf16.msra.mxu0 %v1348
      %1668 = vmatprep.subr.bf16.mxu0 %v1352
      %1669 = vmatpush1.bf16.msra.mxu0 %v1351
      %1670 = vmatprep.subr.bf16.mxu0 %v1355
      %1671 = vmatpush1.bf16.msra.mxu0 %v1354
      %1672 = vmatprep.subr.bf16.mxu0 %v1358
      %1673 = vmatpush1.bf16.msra.mxu0 %v1357
      %1674 = vmatprep.subr.bf16.mxu0 %v1361
      %1675 = vmatpush1.bf16.msra.mxu0 %v1360
      %1676 = vmatprep.subr.bf16.mxu0 %v1364
      %1677 = vmatpush1.bf16.msra.mxu0 %v1363
      %1678 = vmatprep.subr.bf16.mxu0 0
      %1679 = vmatpush1.bf16.msra.mxu0 0
      %1680 = vmatprep.subr.bf16.mxu0 0
      %1681 = vmatpush1.bf16.msra.mxu0 0
      %1682 = vmatprep.subr.bf16.mxu0 0
      %1683 = vmatpush1.bf16.msra.mxu0 0
      %1684 = vmatprep.subr.bf16.mxu0 0
      %1685 = vmatpush1.bf16.msra.mxu0 0
      %1686 = vmatprep.subr.bf16.mxu0 0
      %1687 = vmatpush1.bf16.msra.mxu0 0
      %1688 = vmatprep.subr.bf16.mxu0 0
      %1689 = vmatpush1.bf16.msra.mxu0 0
      %1690 = vmatprep.subr.bf16.mxu0 0
      %1691 = vmatpush1.bf16.msra.mxu0 0
      %1692 = vmatprep.subr.bf16.mxu0 0
      %1693 = vmatpush1.bf16.msra.mxu0 0
      %1694 = vmatprep.mubr.bf16.mxu0 0
      %1695 = vmatmul.mubr.bf16.gmra.mrb[0].mxu0 %v1661
      %v1696 = vpop.f32.mrb[0].mxu0
      %v1697 = vadd.f32 0.0, %v1696
      %v1698 = vpop.f32.mrb[0].mxu0
      %v1699 = vadd.f32 0.0, %v1698
      %v1700 = vpop.f32.mrb[0].mxu0
      %v1701 = vadd.f32 0.0, %v1700
      %v1702 = vpop.f32.mrb[0].mxu0
      %v1703 = vadd.f32 0.0, %v1702
      %1704 = vdwg.mxu0
      %1705 = vmatprep.subr.bf16.mxu0 0
      %1706 = vmatpush1.bf16.msra.mxu0 %v1344
      %1707 = vmatprep.subr.bf16.mxu0 0
      %1708 = vmatpush1.bf16.msra.mxu0 %v1347
      %1709 = vmatprep.subr.bf16.mxu0 0
      %1710 = vmatpush1.bf16.msra.mxu0 %v1350
      %1711 = vmatprep.subr.bf16.mxu0 0
      %1712 = vmatpush1.bf16.msra.mxu0 %v1353
      %1713 = vmatprep.subr.bf16.mxu0 0
      %1714 = vmatpush1.bf16.msra.mxu0 %v1356
      %1715 = vmatprep.subr.bf16.mxu0 0
      %1716 = vmatpush1.bf16.msra.mxu0 %v1359
      %1717 = vmatprep.subr.bf16.mxu0 0
      %1718 = vmatpush1.bf16.msra.mxu0 %v1362
      %1719 = vmatprep.subr.bf16.mxu0 0
      %1720 = vmatpush1.bf16.msra.mxu0 %v1365
      %1721 = vmatprep.subr.bf16.mxu0 0
      %1722 = vmatpush1.bf16.msra.mxu0 0
      %1723 = vmatprep.subr.bf16.mxu0 0
      %1724 = vmatpush1.bf16.msra.mxu0 0
      %1725 = vmatprep.subr.bf16.mxu0 0
      %1726 = vmatpush1.bf16.msra.mxu0 0
      %1727 = vmatprep.subr.bf16.mxu0 0
      %1728 = vmatpush1.bf16.msra.mxu0 0
      %1729 = vmatprep.subr.bf16.mxu0 0
      %1730 = vmatpush1.bf16.msra.mxu0 0
      %1731 = vmatprep.subr.bf16.mxu0 0
      %1732 = vmatpush1.bf16.msra.mxu0 0
      %1733 = vmatprep.subr.bf16.mxu0 0
      %1734 = vmatpush1.bf16.msra.mxu0 0
      %1735 = vmatprep.subr.bf16.mxu0 0
      %1736 = vmatpush1.bf16.msra.mxu0 0
      %1737 = vmatprep.mubr.bf16.mxu0 0
      %1738 = vmatmul.mubr.bf16.gmra.mrb[0].mxu0 %v1661
      %v1739 = vpop.f32.mrb[0].mxu0
      %v1740 = vadd.f32 0.0, %v1739
      %v1741 = vpop.f32.mrb[0].mxu0
      %v1742 = vpop.f32.mrb[0].mxu0
      %v1743 = vadd.f32 0.0, %v1742
      %v1744 = vpop.f32.mrb[0].mxu0
      %1745 = vdwg.mxu0
      %v1746 = vadd.f32 %v1655, %v1697
      %v1747 = vadd.f32 %v1658, %v1701
      %v1748 = vxor.u32 %v1746, 2147483648
      %v1749 = vxor.u32 %v1747, 2147483648
      %v1750 = vmul.f32 %v1748, 1.442695
      %v1751 = vpow.pop %v1750
      %v1752 = vmul.f32 %v1749, 1.442695
      %v1753 = vpow.pop %v1752
      %v1754 = vadd.f32 %v1751, 1.0
      %v1755 = vadd.f32 %v1753, 1.0
      %v1756 = vrcp.pop %v1754
      %v1757 = vmul.f32 1.0, %v1756
      %v1758 = vrcp.pop %v1755
      %v1759 = vmul.f32 1.0, %v1758
      %v1760 = vadd.f32 %v1656, %v1699
      %v1761 = vadd.f32 %v1659, %v1703
      %v1762 = vxor.u32 %v1760, 2147483648
      %v1763 = vxor.u32 %v1761, 2147483648
      %v1764 = vmul.f32 %v1762, 1.442695
      %v1765 = vpow.pop %v1764
      %v1766 = vmul.f32 %v1763, 1.442695
      %v1767 = vpow.pop %v1766
      %v1768 = vadd.f32 %v1765, 1.0
      %v1769 = vadd.f32 %v1767, 1.0
      %v1770 = vrcp.pop %v1768
      %v1771 = vmul.f32 1.0, %v1770
      %v1772 = vrcp.pop %v1769
      %v1773 = vmul.f32 1.0, %v1772
      %v1774 = vadd.f32 %v1740, %v1248
      %v1775 = vadd.f32 %v1743, %v1248
      %v1776 = vmul.f32 %v1757, %v1774
      %v1777 = vmul.f32 %v1759, %v1775
      %v1778 = vadd.f32 %v1657, %v1776
      %v1779 = vadd.f32 %v1660, %v1777
      %v1780 = vtanh.pop %v1778
      %v1781 = vtanh.pop %v1779
      %v1782 = vsub.f32 %v1650, %v1780
      %v1783 = vsub.f32 %v1651, %v1781
      %v1784 = vmul.f32 %v1771, %v1782
      %v1785 = vmul.f32 %v1773, %v1783
      %v1786 = vadd.f32 %v1780, %v1784
      %v1787 = vadd.f32 %v1781, %v1785
      %s1788 = smul.u32 6, 3
      %s1789 = smul.addr %s1788, 8
      %s1790 = scalar_lea.vmem [#allocation3], %s1789
      %v1791 = vld [vmem:[%s1790] sm:$0xff]
      %v1792 = vld [vmem:[%s1790 + $0x8] sm:$0xff]
      %v1793 = vld [vmem:[%s1790 + $0x10] sm:$0xff]
      %v1794 = vld [vmem:[%s1790 + $0x18] sm:$0xff]
      %v1795 = vld [vmem:[%s1790 + $0x20] sm:$0xff]
      %v1796 = vld [vmem:[%s1790 + $0x28] sm:$0xff]
      %v1797 = vpack.c.bf16 %v1787, %v1786
      %1798 = vmatprep.subr.bf16.mxu0 %v1343
      %1799 = vmatpush1.bf16.msra.mxu0 %v1342
      %1800 = vmatprep.subr.bf16.mxu0 %v1346
      %1801 = vmatpush1.bf16.msra.mxu0 %v1345
      %1802 = vmatprep.subr.bf16.mxu0 %v1349
      %1803 = vmatpush1.bf16.msra.mxu0 %v1348
      %1804 = vmatprep.subr.bf16.mxu0 %v1352
      %1805 = vmatpush1.bf16.msra.mxu0 %v1351
      %1806 = vmatprep.subr.bf16.mxu0 %v1355
      %1807 = vmatpush1.bf16.msra.mxu0 %v1354
      %1808 = vmatprep.subr.bf16.mxu0 %v1358
      %1809 = vmatpush1.bf16.msra.mxu0 %v1357
      %1810 = vmatprep.subr.bf16.mxu0 %v1361
      %1811 = vmatpush1.bf16.msra.mxu0 %v1360
      %1812 = vmatprep.subr.bf16.mxu0 %v1364
      %1813 = vmatpush1.bf16.msra.mxu0 %v1363
      %1814 = vmatprep.subr.bf16.mxu0 0
      %1815 = vmatpush1.bf16.msra.mxu0 0
      %1816 = vmatprep.subr.bf16.mxu0 0
      %1817 = vmatpush1.bf16.msra.mxu0 0
      %1818 = vmatprep.subr.bf16.mxu0 0
      %1819 = vmatpush1.bf16.msra.mxu0 0
      %1820 = vmatprep.subr.bf16.mxu0 0
      %1821 = vmatpush1.bf16.msra.mxu0 0
      %1822 = vmatprep.subr.bf16.mxu0 0
      %1823 = vmatpush1.bf16.msra.mxu0 0
      %1824 = vmatprep.subr.bf16.mxu0 0
      %1825 = vmatpush1.bf16.msra.mxu0 0
      %1826 = vmatprep.subr.bf16.mxu0 0
      %1827 = vmatpush1.bf16.msra.mxu0 0
      %1828 = vmatprep.subr.bf16.mxu0 0
      %1829 = vmatpush1.bf16.msra.mxu0 0
      %1830 = vmatprep.mubr.bf16.mxu0 0
      %1831 = vmatmul.mubr.bf16.gmra.mrb[0].mxu0 %v1797
      %v1832 = vpop.f32.mrb[0].mxu0
      %v1833 = vadd.f32 0.0, %v1832
      %v1834 = vpop.f32.mrb[0].mxu0
      %v1835 = vadd.f32 0.0, %v1834
      %v1836 = vpop.f32.mrb[0].mxu0
      %v1837 = vadd.f32 0.0, %v1836
      %v1838 = vpop.f32.mrb[0].mxu0
      %v1839 = vadd.f32 0.0, %v1838
      %1840 = vdwg.mxu0
      %1841 = vmatprep.subr.bf16.mxu0 0
      %1842 = vmatpush1.bf16.msra.mxu0 %v1344
      %1843 = vmatprep.subr.bf16.mxu0 0
      %1844 = vmatpush1.bf16.msra.mxu0 %v1347
      %1845 = vmatprep.subr.bf16.mxu0 0
      %1846 = vmatpush1.bf16.msra.mxu0 %v1350
      %1847 = vmatprep.subr.bf16.mxu0 0
      %1848 = vmatpush1.bf16.msra.mxu0 %v1353
      %1849 = vmatprep.subr.bf16.mxu0 0
      %1850 = vmatpush1.bf16.msra.mxu0 %v1356
      %1851 = vmatprep.subr.bf16.mxu0 0
      %1852 = vmatpush1.bf16.msra.mxu0 %v1359
      %1853 = vmatprep.subr.bf16.mxu0 0
      %1854 = vmatpush1.bf16.msra.mxu0 %v1362
      %1855 = vmatprep.subr.bf16.mxu0 0
      %1856 = vmatpush1.bf16.msra.mxu0 %v1365
      %1857 = vmatprep.subr.bf16.mxu0 0
      %1858 = vmatpush1.bf16.msra.mxu0 0
      %1859 = vmatprep.subr.bf16.mxu0 0
      %1860 = vmatpush1.bf16.msra.mxu0 0
      %1861 = vmatprep.subr.bf16.mxu0 0
      %1862 = vmatpush1.bf16.msra.mxu0 0
      %1863 = vmatprep.subr.bf16.mxu0 0
      %1864 = vmatpush1.bf16.msra.mxu0 0
      %1865 = vmatprep.subr.bf16.mxu0 0
      %1866 = vmatpush1.bf16.msra.mxu0 0
      %1867 = vmatprep.subr.bf16.mxu0 0
      %1868 = vmatpush1.bf16.msra.mxu0 0
      %1869 = vmatprep.subr.bf16.mxu0 0
      %1870 = vmatpush1.bf16.msra.mxu0 0
      %1871 = vmatprep.subr.bf16.mxu0 0
      %1872 = vmatpush1.bf16.msra.mxu0 0
      %1873 = vmatprep.mubr.bf16.mxu0 0
      %1874 = vmatmul.mubr.bf16.gmra.mrb[0].mxu0 %v1797
      %v1875 = vpop.f32.mrb[0].mxu0
      %v1876 = vadd.f32 0.0, %v1875
      %v1877 = vpop.f32.mrb[0].mxu0
      %v1878 = vpop.f32.mrb[0].mxu0
      %v1879 = vadd.f32 0.0, %v1878
      %v1880 = vpop.f32.mrb[0].mxu0
      %1881 = vdwg.mxu0
      %v1882 = vadd.f32 %v1791, %v1833
      %v1883 = vadd.f32 %v1794, %v1837
      %v1884 = vxor.u32 %v1882, 2147483648
      %v1885 = vxor.u32 %v1883, 2147483648
      %v1886 = vmul.f32 %v1884, 1.442695
      %v1887 = vpow.pop %v1886
      %v1888 = vmul.f32 %v1885, 1.442695
      %v1889 = vpow.pop %v1888
      %v1890 = vadd.f32 %v1887, 1.0
      %v1891 = vadd.f32 %v1889, 1.0
      %v1892 = vrcp.pop %v1890
      %v1893 = vmul.f32 1.0, %v1892
      %v1894 = vrcp.pop %v1891
      %v1895 = vmul.f32 1.0, %v1894
      %v1896 = vadd.f32 %v1792, %v1835
      %v1897 = vadd.f32 %v1795, %v1839
      %v1898 = vxor.u32 %v1896, 2147483648
      %v1899 = vxor.u32 %v1897, 2147483648
      %v1900 = vmul.f32 %v1898, 1.442695
      %v1901 = vpow.pop %v1900
      %v1902 = vmul.f32 %v1899, 1.442695
      %v1903 = vpow.pop %v1902
      %v1904 = vadd.f32 %v1901, 1.0
      %v1905 = vadd.f32 %v1903, 1.0
      %v1906 = vrcp.pop %v1904
      %v1907 = vmul.f32 1.0, %v1906
      %v1908 = vrcp.pop %v1905
      %v1909 = vmul.f32 1.0, %v1908
      %v1910 = vadd.f32 %v1876, %v1248
      %v1911 = vadd.f32 %v1879, %v1248
      %v1912 = vmul.f32 %v1893, %v1910
      %v1913 = vmul.f32 %v1895, %v1911
      %v1914 = vadd.f32 %v1793, %v1912
      %v1915 = vadd.f32 %v1796, %v1913
      %v1916 = vtanh.pop %v1914
      %v1917 = vtanh.pop %v1915
      %v1918 = vsub.f32 %v1786, %v1916
      %v1919 = vsub.f32 %v1787, %v1917
      %v1920 = vmul.f32 %v1907, %v1918
      %v1921 = vmul.f32 %v1909, %v1919
      %v1922 = vadd.f32 %v1916, %v1920
      %v1923 = vadd.f32 %v1917, %v1921
      %1924 = vst [vmem:[#allocation2] sm:$0xff] %v1922
      %1925 = vst [vmem:[#allocation2 + $0x8] sm:$0xff] %v1923
      %p1926 = scmp.eq.s32.totalorder %s27, 1
      // Predicated region
      $region81: #{rnn_model_forward.3} parent=75 // pred_check
        %p1927 = pneg %p1926
      $region82: #{rnn_model_forward.3} parent=75 // pred_check_branch
        %1929 = sbr.rel (%p1927) target = $region84
      $region83: #{rnn_model_forward.3} parent=75 // pred_region
        %v1930 = vld [vmem:[%s471 + $0x18] sm:$0xf]
        %v1931 = vld [vmem:[%s471 + $0x1c] sm:$0xf]
        %v1932 = vld [vmem:[%s4] sm:$0xff]
        %v1933 = vld [vmem:[%s4 + $0x8] sm:$0xf]
        %v1934 = vld [vmem:[%s4 + $0xc] sm:$0xff]
        %v1935 = vld [vmem:[%s4 + $0x14] sm:$0xf]
        %v1936 = vld [vmem:[%s4 + $0x18] sm:$0xff]
        %v1937 = vld [vmem:[%s4 + $0x20] sm:$0xf]
        %v1938 = vld [vmem:[%s4 + $0x24] sm:$0xff]
        %v1939 = vld [vmem:[%s4 + $0x2c] sm:$0xf]
        %v1940 = vld [vmem:[%s4 + $0x30] sm:$0xff]
        %v1941 = vld [vmem:[%s4 + $0x38] sm:$0xf]
        %v1942 = vld [vmem:[%s4 + $0x3c] sm:$0xff]
        %v1943 = vld [vmem:[%s4 + $0x44] sm:$0xf]
        %v1944 = vld [vmem:[%s4 + $0x48] sm:$0xff]
        %v1945 = vld [vmem:[%s4 + $0x50] sm:$0xf]
        %v1946 = vld [vmem:[%s4 + $0x54] sm:$0xff]
        %v1947 = vld [vmem:[%s4 + $0x5c] sm:$0xf]
        %v1948 = vld [vmem:[%s4 + $0x60] sm:$0xff]
        %v1949 = vld [vmem:[%s4 + $0x68] sm:$0xf]
        %v1950 = vld [vmem:[%s4 + $0x6c] sm:$0xff]
        %v1951 = vld [vmem:[%s4 + $0x74] sm:$0xf]
        %v1952 = vld [vmem:[%s4 + $0x78] sm:$0xff]
        %v1953 = vld [vmem:[%s4 + $0x80] sm:$0xf]
        %v1954 = vld [vmem:[%s4 + $0x84] sm:$0xff]
        %v1955 = vld [vmem:[%s4 + $0x8c] sm:$0xf]
        %v1956 = vld [vmem:[%s4 + $0x90] sm:$0xff]
        %v1957 = vld [vmem:[%s4 + $0x98] sm:$0xf]
        %v1958 = vld [vmem:[%s4 + $0x9c] sm:$0xff]
        %v1959 = vld [vmem:[%s4 + $0xa4] sm:$0xf]
        %v1960 = vld [vmem:[%s4 + $0xa8] sm:$0xff]
        %v1961 = vld [vmem:[%s4 + $0xb0] sm:$0xf]
        %v1962 = vld [vmem:[%s4 + $0xb4] sm:$0xff]
        %v1963 = vld [vmem:[%s4 + $0xbc] sm:$0xf]
        %v1964 = vld [vmem:[%s477 + $0x18] sm:$0xf]
        %v1965 = vld [vmem:[%s477 + $0x1c] sm:$0xf]
        %v1966 = vld [vmem:[%s5] sm:$0xff]
        %v1967 = vld [vmem:[%s5 + $0x8] sm:$0xf]
        %v1968 = vld [vmem:[%s5 + $0xc] sm:$0xff]
        %v1969 = vld [vmem:[%s5 + $0x14] sm:$0xf]
        %v1970 = vld [vmem:[%s5 + $0x18] sm:$0xff]
        %v1971 = vld [vmem:[%s5 + $0x20] sm:$0xf]
        %v1972 = vld [vmem:[%s5 + $0x24] sm:$0xff]
        %v1973 = vld [vmem:[%s5 + $0x2c] sm:$0xf]
        %v1974 = vld [vmem:[%s5 + $0x30] sm:$0xff]
        %v1975 = vld [vmem:[%s5 + $0x38] sm:$0xf]
        %v1976 = vld [vmem:[%s5 + $0x3c] sm:$0xff]
        %v1977 = vld [vmem:[%s5 + $0x44] sm:$0xf]
        %v1978 = vld [vmem:[%s5 + $0x48] sm:$0xff]
        %v1979 = vld [vmem:[%s5 + $0x50] sm:$0xf]
        %v1980 = vld [vmem:[%s5 + $0x54] sm:$0xff]
        %v1981 = vld [vmem:[%s5 + $0x5c] sm:$0xf]
        %v1982 = vld [vmem:[%s5 + $0x60] sm:$0xff]
        %v1983 = vld [vmem:[%s5 + $0x68] sm:$0xf]
        %v1984 = vld [vmem:[%s5 + $0x6c] sm:$0xff]
        %v1985 = vld [vmem:[%s5 + $0x74] sm:$0xf]
        %v1986 = vld [vmem:[%s5 + $0x78] sm:$0xff]
        %v1987 = vld [vmem:[%s5 + $0x80] sm:$0xf]
        %v1988 = vld [vmem:[%s5 + $0x84] sm:$0xff]
        %v1989 = vld [vmem:[%s5 + $0x8c] sm:$0xf]
        %v1990 = vld [vmem:[%s5 + $0x90] sm:$0xff]
        %v1991 = vld [vmem:[%s5 + $0x98] sm:$0xf]
        %v1992 = vld [vmem:[%s5 + $0x9c] sm:$0xff]
        %v1993 = vld [vmem:[%s5 + $0xa4] sm:$0xf]
        %v1994 = vld [vmem:[%s5 + $0xa8] sm:$0xff]
        %v1995 = vld [vmem:[%s5 + $0xb0] sm:$0xf]
        %v1996 = vld [vmem:[%s5 + $0xb4] sm:$0xff]
        %v1997 = vld [vmem:[%s5 + $0xbc] sm:$0xf]
        %v2000 = vunpack.c.l.b16 %v1964
        %v2001 = vunpack.c.l.b16 %v1965
        %v2002 = vpack.c.b16 %v2001, %v2000
        %v2036 = vunpack.c.l.b16 %v1966
        %v2037 = vunpack.c.h.b16 %v1966
        %v2038 = vunpack.c.l.b16 %v1967
        %v2039 = vunpack.c.l.b16 %v1968
        %v2040 = vunpack.c.h.b16 %v1968
        %v2041 = vunpack.c.l.b16 %v1969
        %v2042 = vunpack.c.l.b16 %v1970
        %v2043 = vunpack.c.h.b16 %v1970
        %v2044 = vunpack.c.l.b16 %v1971
        %v2045 = vunpack.c.l.b16 %v1972
        %v2046 = vunpack.c.h.b16 %v1972
        %v2047 = vunpack.c.l.b16 %v1973
        %v2048 = vunpack.c.l.b16 %v1974
        %v2049 = vunpack.c.h.b16 %v1974
        %v2050 = vunpack.c.l.b16 %v1975
        %v2051 = vunpack.c.l.b16 %v1976
        %v2052 = vunpack.c.h.b16 %v1976
        %v2053 = vunpack.c.l.b16 %v1977
        %v2054 = vunpack.c.l.b16 %v1978
        %v2055 = vunpack.c.h.b16 %v1978
        %v2056 = vunpack.c.l.b16 %v1979
        %v2057 = vunpack.c.l.b16 %v1980
        %v2058 = vunpack.c.h.b16 %v1980
        %v2059 = vunpack.c.l.b16 %v1981
        %v2060 = vunpack.c.l.b16 %v1982
        %v2061 = vunpack.c.h.b16 %v1982
        %v2062 = vunpack.c.l.b16 %v1983
        %v2063 = vunpack.c.l.b16 %v1984
        %v2064 = vunpack.c.h.b16 %v1984
        %v2065 = vunpack.c.l.b16 %v1985
        %v2066 = vunpack.c.l.b16 %v1986
        %v2067 = vunpack.c.h.b16 %v1986
        %v2068 = vunpack.c.l.b16 %v1987
        %v2069 = vunpack.c.l.b16 %v1988
        %v2070 = vunpack.c.h.b16 %v1988
        %v2071 = vunpack.c.l.b16 %v1989
        %v2072 = vunpack.c.l.b16 %v1990
        %v2073 = vunpack.c.h.b16 %v1990
        %v2074 = vunpack.c.l.b16 %v1991
        %v2075 = vunpack.c.l.b16 %v1992
        %v2076 = vunpack.c.h.b16 %v1992
        %v2077 = vunpack.c.l.b16 %v1993
        %v2078 = vunpack.c.l.b16 %v1994
        %v2079 = vunpack.c.h.b16 %v1994
        %v2080 = vunpack.c.l.b16 %v1995
        %v2081 = vunpack.c.l.b16 %v1996
        %v2082 = vunpack.c.h.b16 %v1996
        %v2083 = vunpack.c.l.b16 %v1997
        %v2084 = vpack.c.b16 %v2039, %v2036
        %v2085 = vpack.c.b16 %v2040, %v2037
        %v2086 = vpack.c.b16 %v2041, %v2038
        %v2087 = vpack.c.b16 %v2045, %v2042
        %v2088 = vpack.c.b16 %v2046, %v2043
        %v2089 = vpack.c.b16 %v2047, %v2044
        %v2090 = vpack.c.b16 %v2051, %v2048
        %v2091 = vpack.c.b16 %v2052, %v2049
        %v2092 = vpack.c.b16 %v2053, %v2050
        %v2093 = vpack.c.b16 %v2057, %v2054
        %v2094 = vpack.c.b16 %v2058, %v2055
        %v2095 = vpack.c.b16 %v2059, %v2056
        %v2096 = vpack.c.b16 %v2063, %v2060
        %v2097 = vpack.c.b16 %v2064, %v2061
        %v2098 = vpack.c.b16 %v2065, %v2062
        %v2099 = vpack.c.b16 %v2069, %v2066
        %v2100 = vpack.c.b16 %v2070, %v2067
        %v2101 = vpack.c.b16 %v2071, %v2068
        %v2102 = vpack.c.b16 %v2075, %v2072
        %v2103 = vpack.c.b16 %v2076, %v2073
        %v2104 = vpack.c.b16 %v2077, %v2074
        %v2105 = vpack.c.b16 %v2081, %v2078
        %v2106 = vpack.c.b16 %v2082, %v2079
        %v2107 = vpack.c.b16 %v2083, %v2080
        %2132 = vmatprep.subr.bf16.mxu0 %v2085
        %2133 = vmatpush1.bf16.msra.mxu0 %v2084
        %2134 = vmatprep.subr.bf16.mxu0 %v2088
        %2135 = vmatpush1.bf16.msra.mxu0 %v2087
        %2136 = vmatprep.subr.bf16.mxu0 %v2091
        %2137 = vmatpush1.bf16.msra.mxu0 %v2090
        %2138 = vmatprep.subr.bf16.mxu0 %v2094
        %2139 = vmatpush1.bf16.msra.mxu0 %v2093
        %2140 = vmatprep.subr.bf16.mxu0 %v2097
        %2141 = vmatpush1.bf16.msra.mxu0 %v2096
        %2142 = vmatprep.subr.bf16.mxu0 %v2100
        %2143 = vmatpush1.bf16.msra.mxu0 %v2099
        %2144 = vmatprep.subr.bf16.mxu0 %v2103
        %2145 = vmatpush1.bf16.msra.mxu0 %v2102
        %2146 = vmatprep.subr.bf16.mxu0 %v2106
        %2147 = vmatpush1.bf16.msra.mxu0 %v2105
        %2148 = vmatprep.subr.bf16.mxu0 0
        %2149 = vmatpush1.bf16.msra.mxu0 0
        %2150 = vmatprep.subr.bf16.mxu0 0
        %2151 = vmatpush1.bf16.msra.mxu0 0
        %2152 = vmatprep.subr.bf16.mxu0 0
        %2153 = vmatpush1.bf16.msra.mxu0 0
        %2154 = vmatprep.subr.bf16.mxu0 0
        %2155 = vmatpush1.bf16.msra.mxu0 0
        %2156 = vmatprep.subr.bf16.mxu0 0
        %2157 = vmatpush1.bf16.msra.mxu0 0
        %2158 = vmatprep.subr.bf16.mxu0 0
        %2159 = vmatpush1.bf16.msra.mxu0 0
        %2160 = vmatprep.subr.bf16.mxu0 0
        %2161 = vmatpush1.bf16.msra.mxu0 0
        %2162 = vmatprep.subr.bf16.mxu0 0
        %2163 = vmatpush1.bf16.msra.mxu0 0
        %2164 = vmatprep.mubr.bf16.mxu0 0
        %2165 = vmatmul.mubr.bf16.gmra.mrb[0].mxu0 %v2002
        %v2166 = vpop.f32.mrb[0].mxu0
        %v2167 = vadd.f32 0.0, %v2166
        %v2168 = vpop.f32.mrb[0].mxu0
        %v2169 = vadd.f32 0.0, %v2168
        %v2170 = vpop.f32.mrb[0].mxu0
        %v2171 = vadd.f32 0.0, %v2170
        %v2172 = vpop.f32.mrb[0].mxu0
        %v2173 = vadd.f32 0.0, %v2172
        %2174 = vdwg.mxu0
        %2175 = vmatprep.subr.bf16.mxu0 0
        %2176 = vmatpush1.bf16.msra.mxu0 %v2086
        %2177 = vmatprep.subr.bf16.mxu0 0
        %2178 = vmatpush1.bf16.msra.mxu0 %v2089
        %2179 = vmatprep.subr.bf16.mxu0 0
        %2180 = vmatpush1.bf16.msra.mxu0 %v2092
        %2181 = vmatprep.subr.bf16.mxu0 0
        %2182 = vmatpush1.bf16.msra.mxu0 %v2095
        %2183 = vmatprep.subr.bf16.mxu0 0
        %2184 = vmatpush1.bf16.msra.mxu0 %v2098
        %2185 = vmatprep.subr.bf16.mxu0 0
        %2186 = vmatpush1.bf16.msra.mxu0 %v2101
        %2187 = vmatprep.subr.bf16.mxu0 0
        %2188 = vmatpush1.bf16.msra.mxu0 %v2104
        %2189 = vmatprep.subr.bf16.mxu0 0
        %2190 = vmatpush1.bf16.msra.mxu0 %v2107
        %2191 = vmatprep.subr.bf16.mxu0 0
        %2192 = vmatpush1.bf16.msra.mxu0 0
        %2193 = vmatprep.subr.bf16.mxu0 0
        %2194 = vmatpush1.bf16.msra.mxu0 0
        %2195 = vmatprep.subr.bf16.mxu0 0
        %2196 = vmatpush1.bf16.msra.mxu0 0
        %2197 = vmatprep.subr.bf16.mxu0 0
        %2198 = vmatpush1.bf16.msra.mxu0 0
        %2199 = vmatprep.subr.bf16.mxu0 0
        %2200 = vmatpush1.bf16.msra.mxu0 0
        %2201 = vmatprep.subr.bf16.mxu0 0
        %2202 = vmatpush1.bf16.msra.mxu0 0
        %2203 = vmatprep.subr.bf16.mxu0 0
        %2204 = vmatpush1.bf16.msra.mxu0 0
        %2205 = vmatprep.subr.bf16.mxu0 0
        %2206 = vmatpush1.bf16.msra.mxu0 0
        %2207 = vmatprep.mubr.bf16.mxu0 0
        %2208 = vmatmul.mubr.bf16.gmra.mrb[0].mxu0 %v2002
        %v2209 = vpop.f32.mrb[0].mxu0
        %v2210 = vadd.f32 0.0, %v2209
        %v2211 = vpop.f32.mrb[0].mxu0
        %v2212 = vpop.f32.mrb[0].mxu0
        %v2213 = vadd.f32 0.0, %v2212
        %v2214 = vpop.f32.mrb[0].mxu0
        %2215 = vdwg.mxu0
        %v2218 = vunpack.c.l.b16 %v1930
        %v2219 = vunpack.c.l.b16 %v1931
        %v2220 = vpack.c.b16 %v2219, %v2218
        %v2254 = vunpack.c.l.b16 %v1932
        %v2255 = vunpack.c.h.b16 %v1932
        %v2256 = vunpack.c.l.b16 %v1933
        %v2257 = vunpack.c.l.b16 %v1934
        %v2258 = vunpack.c.h.b16 %v1934
        %v2259 = vunpack.c.l.b16 %v1935
        %v2260 = vunpack.c.l.b16 %v1936
        %v2261 = vunpack.c.h.b16 %v1936
        %v2262 = vunpack.c.l.b16 %v1937
        %v2263 = vunpack.c.l.b16 %v1938
        %v2264 = vunpack.c.h.b16 %v1938
        %v2265 = vunpack.c.l.b16 %v1939
        %v2266 = vunpack.c.l.b16 %v1940
        %v2267 = vunpack.c.h.b16 %v1940
        %v2268 = vunpack.c.l.b16 %v1941
        %v2269 = vunpack.c.l.b16 %v1942
        %v2270 = vunpack.c.h.b16 %v1942
        %v2271 = vunpack.c.l.b16 %v1943
        %v2272 = vunpack.c.l.b16 %v1944
        %v2273 = vunpack.c.h.b16 %v1944
        %v2274 = vunpack.c.l.b16 %v1945
        %v2275 = vunpack.c.l.b16 %v1946
        %v2276 = vunpack.c.h.b16 %v1946
        %v2277 = vunpack.c.l.b16 %v1947
        %v2278 = vunpack.c.l.b16 %v1948
        %v2279 = vunpack.c.h.b16 %v1948
        %v2280 = vunpack.c.l.b16 %v1949
        %v2281 = vunpack.c.l.b16 %v1950
        %v2282 = vunpack.c.h.b16 %v1950
        %v2283 = vunpack.c.l.b16 %v1951
        %v2284 = vunpack.c.l.b16 %v1952
        %v2285 = vunpack.c.h.b16 %v1952
        %v2286 = vunpack.c.l.b16 %v1953
        %v2287 = vunpack.c.l.b16 %v1954
        %v2288 = vunpack.c.h.b16 %v1954
        %v2289 = vunpack.c.l.b16 %v1955
        %v2290 = vunpack.c.l.b16 %v1956
        %v2291 = vunpack.c.h.b16 %v1956
        %v2292 = vunpack.c.l.b16 %v1957
        %v2293 = vunpack.c.l.b16 %v1958
        %v2294 = vunpack.c.h.b16 %v1958
        %v2295 = vunpack.c.l.b16 %v1959
        %v2296 = vunpack.c.l.b16 %v1960
        %v2297 = vunpack.c.h.b16 %v1960
        %v2298 = vunpack.c.l.b16 %v1961
        %v2299 = vunpack.c.l.b16 %v1962
        %v2300 = vunpack.c.h.b16 %v1962
        %v2301 = vunpack.c.l.b16 %v1963
        %v2302 = vpack.c.b16 %v2257, %v2254
        %v2303 = vpack.c.b16 %v2258, %v2255
        %v2304 = vpack.c.b16 %v2259, %v2256
        %v2305 = vpack.c.b16 %v2263, %v2260
        %v2306 = vpack.c.b16 %v2264, %v2261
        %v2307 = vpack.c.b16 %v2265, %v2262
        %v2308 = vpack.c.b16 %v2269, %v2266
        %v2309 = vpack.c.b16 %v2270, %v2267
        %v2310 = vpack.c.b16 %v2271, %v2268
        %v2311 = vpack.c.b16 %v2275, %v2272
        %v2312 = vpack.c.b16 %v2276, %v2273
        %v2313 = vpack.c.b16 %v2277, %v2274
        %v2314 = vpack.c.b16 %v2281, %v2278
        %v2315 = vpack.c.b16 %v2282, %v2279
        %v2316 = vpack.c.b16 %v2283, %v2280
        %v2317 = vpack.c.b16 %v2287, %v2284
        %v2318 = vpack.c.b16 %v2288, %v2285
        %v2319 = vpack.c.b16 %v2289, %v2286
        %v2320 = vpack.c.b16 %v2293, %v2290
        %v2321 = vpack.c.b16 %v2294, %v2291
        %v2322 = vpack.c.b16 %v2295, %v2292
        %v2323 = vpack.c.b16 %v2299, %v2296
        %v2324 = vpack.c.b16 %v2300, %v2297
        %v2325 = vpack.c.b16 %v2301, %v2298
        %2350 = vmatprep.subr.bf16.mxu0 %v2303
        %2351 = vmatpush1.bf16.msra.mxu0 %v2302
        %2352 = vmatprep.subr.bf16.mxu0 %v2306
        %2353 = vmatpush1.bf16.msra.mxu0 %v2305
        %2354 = vmatprep.subr.bf16.mxu0 %v2309
        %2355 = vmatpush1.bf16.msra.mxu0 %v2308
        %2356 = vmatprep.subr.bf16.mxu0 %v2312
        %2357 = vmatpush1.bf16.msra.mxu0 %v2311
        %2358 = vmatprep.subr.bf16.mxu0 %v2315
        %2359 = vmatpush1.bf16.msra.mxu0 %v2314
        %2360 = vmatprep.subr.bf16.mxu0 %v2318
        %2361 = vmatpush1.bf16.msra.mxu0 %v2317
        %2362 = vmatprep.subr.bf16.mxu0 %v2321
        %2363 = vmatpush1.bf16.msra.mxu0 %v2320
        %2364 = vmatprep.subr.bf16.mxu0 %v2324
        %2365 = vmatpush1.bf16.msra.mxu0 %v2323
        %2366 = vmatprep.subr.bf16.mxu0 0
        %2367 = vmatpush1.bf16.msra.mxu0 0
        %2368 = vmatprep.subr.bf16.mxu0 0
        %2369 = vmatpush1.bf16.msra.mxu0 0
        %2370 = vmatprep.subr.bf16.mxu0 0
        %2371 = vmatpush1.bf16.msra.mxu0 0
        %2372 = vmatprep.subr.bf16.mxu0 0
        %2373 = vmatpush1.bf16.msra.mxu0 0
        %2374 = vmatprep.subr.bf16.mxu0 0
        %2375 = vmatpush1.bf16.msra.mxu0 0
        %2376 = vmatprep.subr.bf16.mxu0 0
        %2377 = vmatpush1.bf16.msra.mxu0 0
        %2378 = vmatprep.subr.bf16.mxu0 0
        %2379 = vmatpush1.bf16.msra.mxu0 0
        %2380 = vmatprep.subr.bf16.mxu0 0
        %2381 = vmatpush1.bf16.msra.mxu0 0
        %2382 = vmatprep.mubr.bf16.mxu0 0
        %2383 = vmatmul.mubr.bf16.gmra.mrb[0].mxu0 %v2220
        %v2384 = vpop.f32.mrb[0].mxu0
        %v2385 = vadd.f32 %v2167, %v2384
        %v2386 = vpop.f32.mrb[0].mxu0
        %v2387 = vadd.f32 %v2169, %v2386
        %v2388 = vpop.f32.mrb[0].mxu0
        %v2389 = vadd.f32 %v2171, %v2388
        %v2390 = vpop.f32.mrb[0].mxu0
        %v2391 = vadd.f32 %v2173, %v2390
        %2392 = vdwg.mxu0
        %2393 = vmatprep.subr.bf16.mxu0 0
        %2394 = vmatpush1.bf16.msra.mxu0 %v2304
        %2395 = vmatprep.subr.bf16.mxu0 0
        %2396 = vmatpush1.bf16.msra.mxu0 %v2307
        %2397 = vmatprep.subr.bf16.mxu0 0
        %2398 = vmatpush1.bf16.msra.mxu0 %v2310
        %2399 = vmatprep.subr.bf16.mxu0 0
        %2400 = vmatpush1.bf16.msra.mxu0 %v2313
        %2401 = vmatprep.subr.bf16.mxu0 0
        %2402 = vmatpush1.bf16.msra.mxu0 %v2316
        %2403 = vmatprep.subr.bf16.mxu0 0
        %2404 = vmatpush1.bf16.msra.mxu0 %v2319
        %2405 = vmatprep.subr.bf16.mxu0 0
        %2406 = vmatpush1.bf16.msra.mxu0 %v2322
        %2407 = vmatprep.subr.bf16.mxu0 0
        %2408 = vmatpush1.bf16.msra.mxu0 %v2325
        %2409 = vmatprep.subr.bf16.mxu0 0
        %2410 = vmatpush1.bf16.msra.mxu0 0
        %2411 = vmatprep.subr.bf16.mxu0 0
        %2412 = vmatpush1.bf16.msra.mxu0 0
        %2413 = vmatprep.subr.bf16.mxu0 0
        %2414 = vmatpush1.bf16.msra.mxu0 0
        %2415 = vmatprep.subr.bf16.mxu0 0
        %2416 = vmatpush1.bf16.msra.mxu0 0
        %2417 = vmatprep.subr.bf16.mxu0 0
        %2418 = vmatpush1.bf16.msra.mxu0 0
        %2419 = vmatprep.subr.bf16.mxu0 0
        %2420 = vmatpush1.bf16.msra.mxu0 0
        %2421 = vmatprep.subr.bf16.mxu0 0
        %2422 = vmatpush1.bf16.msra.mxu0 0
        %2423 = vmatprep.subr.bf16.mxu0 0
        %2424 = vmatpush1.bf16.msra.mxu0 0
        %2425 = vmatprep.mubr.bf16.mxu0 0
        %2426 = vmatmul.mubr.bf16.gmra.mrb[0].mxu0 %v2220
        %v2427 = vpop.f32.mrb[0].mxu0
        %v2428 = vadd.f32 %v2210, %v2427
        %v2429 = vpop.f32.mrb[0].mxu0
        %v2430 = vpop.f32.mrb[0].mxu0
        %v2431 = vadd.f32 %v2213, %v2430
        %v2432 = vpop.f32.mrb[0].mxu0
        %2433 = vdwg.mxu0
        %v2434 = vld [vmem:[%s8] sm:$0x7]
        %v2436 = vlaneseq
        %v2437 = vshrl.u32 %v2436, 7
        %v2438 = vsub.s32 0, %v2437
        %v2439 = vrot.slane %v2434, %v2438
        %v2440 = vlaneseq
        %v2441 = vshrl.u32 %v2440, 7
        %v2442 = vsub.s32 1, %v2441
        %v2443 = vrot.slane %v2434, %v2442
        %v2444 = vlaneseq
        %v2445 = vshrl.u32 %v2444, 7
        %v2446 = vsub.s32 2, %v2445
        %v2447 = vrot.slane %v2434, %v2446
        %v2451 = vadd.f32 %v2385, %v2439
        %v2452 = vadd.f32 %v2387, %v2443
        %v2453 = vadd.f32 %v2428, %v2447
        %v2454 = vadd.f32 %v2389, %v2439
        %v2455 = vadd.f32 %v2391, %v2443
        %v2456 = vadd.f32 %v2431, %v2447
        %v2457 = vxor.u32 %v2451, 2147483648
        %v2458 = vxor.u32 %v2454, 2147483648
        %v2459 = vmul.f32 %v2457, 1.442695
        %v2460 = vpow.pop %v2459
        %v2461 = vmul.f32 %v2458, 1.442695
        %v2462 = vpow.pop %v2461
        %v2463 = vadd.f32 %v2460, 1.0
        %v2464 = vadd.f32 %v2462, 1.0
        %v2465 = vrcp.pop %v2463
        %v2466 = vmul.f32 1.0, %v2465
        %v2467 = vrcp.pop %v2464
        %v2468 = vmul.f32 1.0, %v2467
        %v2469 = vxor.u32 %v2452, 2147483648
        %v2470 = vxor.u32 %v2455, 2147483648
        %v2471 = vmul.f32 %v2469, 1.442695
        %v2472 = vpow.pop %v2471
        %v2473 = vmul.f32 %v2470, 1.442695
        %v2474 = vpow.pop %v2473
        %v2475 = vadd.f32 %v2472, 1.0
        %v2476 = vadd.f32 %v2474, 1.0
        %v2477 = vrcp.pop %v2475
        %v2478 = vmul.f32 1.0, %v2477
        %v2479 = vrcp.pop %v2476
        %v2480 = vmul.f32 1.0, %v2479
        %v2481 = vld [vmem:[%s10] sm:$0x1]
        %v2483 = vlaneseq
        %v2484 = vshrl.u32 %v2483, 7
        %v2485 = vsub.s32 0, %v2484
        %v2486 = vrot.slane %v2481, %v2485
        %v2488 = vmul.f32 %v2466, %v2486
        %v2489 = vmul.f32 %v2468, %v2486
        %v2490 = vadd.f32 %v2453, %v2488
        %v2491 = vadd.f32 %v2456, %v2489
        %v2492 = vtanh.pop %v2490
        %v2493 = vtanh.pop %v2491
        %v2494 = vmul.f32 %v2478, %v2492
        %v2495 = vmul.f32 %v2480, %v2493
        %v2496 = vsub.f32 %v2492, %v2494
        %v2497 = vsub.f32 %v2493, %v2495
        %v2498 = vld [vmem:[%s11] sm:$0x1]
        %v2500 = vlaneseq
        %v2501 = vshrl.u32 %v2500, 7
        %v2502 = vsub.s32 0, %v2501
        %v2503 = vrot.slane %v2498, %v2502
        %v2505 = vmul.f32 %v1922, %v2503
        %v2506 = vmul.f32 %v1923, %v2503
        %2507 = vadd.xlane.f32.xlu0 %v2505
        %v2508 = vpop.xlane.xlu0 %2507
        %2509 = vadd.xlane.f32.xlu0 %v2506
        %v2510 = vpop.xlane.xlu0 %2509
        %v2511 = vld [vmem:[%s12] sm:$0x1]
        %v2513 = vlaneseq
        %v2514 = vshrl.u32 %v2513, 7
        %v2515 = vsub.s32 0, %v2514
        %v2516 = vrot.slane %v2511, %v2515
        %v2518 = vmul.f32 %v2496, %v2516
        %v2519 = vmul.f32 %v2497, %v2516
        %2520 = vadd.xlane.f32.xlu0 %v2518
        %v2521 = vpop.xlane.xlu0 %2520
        %2522 = vadd.xlane.f32.xlu0 %v2519
        %v2523 = vpop.xlane.xlu0 %2522
        %v2524 = vadd.f32 %v2508, %v2521
        %v2525 = vadd.f32 %v2510, %v2523
        %v2526 = vld [vmem:[#allocation4] sm:$0x1]
        %v2528 = vlaneseq
        %v2529 = vshrl.u32 %v2528, 7
        %v2530 = vsub.s32 0, %v2529
        %v2531 = vrot.slane %v2526, %v2530
        %v2533 = vadd.f32 %v2524, %v2531
        %v2534 = vadd.f32 %v2525, %v2531
        %vm2535 = vcmask 7168
        %2536 = vst.msk [vmem:[%s14] sm:$0xff] %vm2535, %v2533
        %2537 = vst.msk [vmem:[%s14 + $0x8] sm:$0xff] %vm2535, %v2534
      $region84: #{rnn_model_forward.3} parent=75 // pred_fallthru
        _
      // Predicated region
      $region85: #{rnn_model_forward.3} parent=75 // pred_check
        %p2538 = pneg %p344
      $region86: #{rnn_model_forward.3} parent=75 // pred_check_branch
        %2540 = sbr.rel (%p2538) target = $region88
      $region87: #{rnn_model_forward.3} parent=75 // pred_region
        _
      $region88: #{rnn_model_forward.3} parent=75 // pred_fallthru
        _
      // Predicated region
      $region89: #{rnn_model_forward.3} parent=75 // pred_check
        %p2541 = pneg %p344
      $region90: #{rnn_model_forward.3} parent=75 // pred_check_branch
        %2543 = sbr.rel (%p2541) target = $region92
      $region91: #{rnn_model_forward.3} parent=75 // pred_region
        _
      $region92: #{rnn_model_forward.3} parent=75 // pred_fallthru
        _
    $region76: #{rnn_model_forward.3} parent=5 // pred_fallthru
      _
    %p2544 = scmp.le.s32.totalorder 2, %s22
    // Predicated region
    $region93: #{rnn_model_forward.3} parent=5 // pred_check
      %p2545 = pneg %p2544
    $region94: #{rnn_model_forward.3} parent=5 // pred_check_branch
      %2547 = sbr.rel (%p2545) target = $region96
    $region95: #{rnn_model_forward.3} parent=5 // pred_region
      %s2548 = ssub.s32 %s22, 2
    $region96: #{rnn_model_forward.3} parent=5 // pred_fallthru
      _
  $region6: #{rnn_model_forward.3} parent=0 // loop_footer
    %s26 = sadd.s32 1, %s22
  $region7: #{rnn_model_forward.3} parent=0 // loop_footer_branch
    %21 = sbr.rel target = $region3
  $region8: #{rnn_model_forward.3} parent=0 // loop_exit
    _

// kernel: rnn_model_forward.2
$region0: #{rnn_model_forward.2}
  #allocation0 [shape = 'u32[]', space=smem, size = 0x4, offset = 0x4, fixed_abs, tag = 'smem constant byte address 0x4 - core index']
  #allocation1 [shape = 'u32[144,128]{1,0:T(1,128)}', space=vmem, size = 0x12000, scoped, tag = 'internal scratch']
  #allocation2 [shape = 'f32[16,256]{1,0:T(8,128)}', space=vmem, size = 0x4000, scoped, tag = 'scratch operand']
  #allocation3 [shape = 'f32[64,384]{1,0:T(8,128)}', space=vmem, size = 0x18000, scoped, tag = 'scratch operand']
  #allocation4 [shape = 'f32[64,384]{1,0:T(8,128)}', space=vmem, size = 0x18000, scoped, tag = 'scratch operand']
  %s0 = inlined_call_operand.vmem [shape: bf16[128,128], index: 0, kind: input, shape index: {}, may-alias: {0,1}]
  %s1 = inlined_call_operand.vmem [shape: bf16[128,128], index: 1, kind: input, shape index: {}, may-alias: {0,1}]
  %s2 = inlined_call_operand.vmem [shape: bf16[128,384], index: 2, kind: input, shape index: {}]
  %s3 = inlined_call_operand.vmem [shape: bf16[128,384], index: 3, kind: input, shape index: {}]
  %s4 = inlined_call_operand.vmem [shape: bf16[256,768], index: 4, kind: input, shape index: {}]
  %s5 = inlined_call_operand.vmem [shape: f32[1,384], index: 5, kind: input, shape index: {}]
  %s6 = inlined_call_operand.vmem [shape: f32[1,384], index: 6, kind: input, shape index: {}]
  %s7 = inlined_call_operand.vmem [shape: f32[1,128], index: 7, kind: input, shape index: {}]
  %s8 = inlined_call_operand.vmem [shape: f32[1,128], index: 8, kind: input, shape index: {}]
  %s9 = inlined_call_operand.vmem [shape: bf16[128,128], index: 9, kind: output, shape index: {0}]
  %s10 = inlined_call_operand.vmem [shape: bf16[128,128], index: 10, kind: output, shape index: {1}]
  %11 = xla_tuple %s9, %s10
  %s12 = sld [smem:[#allocation0]]
  $region81: #{rnn_model_forward.2} parent=0
    _
  %s14 = ssub.s32 1, %s12
  %s15 = scalar_select 0, %s14, %s12
  loop: start=0, step=1, limit=4
  $region2: #{rnn_model_forward.2} parent=0 // loop_pre_header
    _
  $region3: #{rnn_model_forward.2} parent=0 // loop_header
    %s17 = sphi 0, %s21
    %p18 = scmp.ge.s32.totalorder %s17, 4
    %s27 = sphi 0, %s29
    %s30 = sphi 0, %s27
    %s31 = sphi 0, %s30
    %s47 = sphi 0, %s31
    %s55 = sphi 0, %s57
    %s58 = sphi 0, %s55
    %s59 = sphi 0, %s58
    %s75 = sphi 0, %s59
    %s79 = sphi 0, %s79
    %s81 = sphi 0, %s79
    %s82 = sphi 0, %s81
    %s96 = sphi 0, %s82
    %s100 = sphi 0, %s100
    %s102 = sphi 0, %s100
    %s103 = sphi 0, %s102
    %s117 = sphi 0, %s103
    %s121 = sphi 0, %s121
    %s123 = sphi 0, %s121
    %s124 = sphi 0, %s123
    %s138 = sphi 0, %s124
    %s142 = sphi 0, %s142
    %s144 = sphi 0, %s142
    %s145 = sphi 0, %s144
    %s159 = sphi 0, %s145
    %s163 = sphi 0, %s163
    %s165 = sphi 0, %s163
    %s166 = sphi 0, %s165
    %s180 = sphi 0, %s166
    %s184 = sphi 0, %s184
    %s186 = sphi 0, %s184
    %s187 = sphi 0, %s186
    %s201 = sphi 0, %s187
    %s205 = sphi 0, %s205
    %s207 = sphi 0, %s205
    %s208 = sphi 0, %s207
    %s222 = sphi 0, %s208
    %s228 = sphi 0, %s230
    %s231 = sphi 0, %s228
    %s232 = sphi 0, %s231
    %s248 = sphi 0, %s232
    %s256 = sphi 0, %s258
    %s259 = sphi 0, %s256
    %s260 = sphi 0, %s259
    %s276 = sphi 0, %s260
  $region4: #{rnn_model_forward.2} parent=0 // loop_header_branch
    %20 = sbr.rel (%p18) target = $region8
  $region5: #{rnn_model_forward.2} parent=0 // loop_body
    %s22 = ssub.s32 %s17, 1
    %s23 = ssub.s32 %s17, 2
    %s24 = sadd.s32 %s17, 1
    %s25 = ssub.s32 %s17, %s24
    %p26 = scmp.eq.s32.totalorder %s25, 0
    %s28 = sadd.s32 %s27, 1
    %s29 = scalar_select %p26, %s27, %s28
    %p32 = pneg %p26
    %p33 = scmp.eq.s32.totalorder %s17, 1
    %p34 = por %p32, %p33
    %p35 = scmp.ne.s32.totalorder %s27, %s30
    %p36 = scmp.eq.s32.totalorder %s17, 0
    %p37 = por %p35, %p36
    %p38 = scmp.ne.s32.totalorder %s27, %s30
    %p39 = scmp.eq.s32.totalorder %s22, 1
    %p40 = por %p38, %p39
    %p41 = scmp.ne.s32.totalorder %s30, %s31
    %p42 = scmp.eq.s32.totalorder %s22, 0
    %p43 = por %p41, %p42
    %p44 = scmp.ne.s32.totalorder %s30, %s31
    %p45 = scmp.eq.s32.totalorder %s23, 1
    %p46 = por %p44, %p45
    %p48 = scmp.ne.s32.totalorder %s31, %s47
    %p49 = scmp.eq.s32.totalorder %s23, 0
    %p50 = por %p48, %p49
    %s51 = ssub.s32 1, %s17
    %s52 = ssub.s32 1, %s24
    %s53 = ssub.s32 %s51, %s52
    %p54 = scmp.eq.s32.totalorder %s53, 0
    %s56 = sadd.s32 %s55, 1
    %s57 = scalar_select %p54, %s55, %s56
    %p60 = pneg %p54
    %p61 = scmp.eq.s32.totalorder %s17, 1
    %p62 = por %p60, %p61
    %p63 = scmp.ne.s32.totalorder %s55, %s58
    %p64 = scmp.eq.s32.totalorder %s17, 0
    %p65 = por %p63, %p64
    %p66 = scmp.ne.s32.totalorder %s55, %s58
    %p67 = scmp.eq.s32.totalorder %s22, 1
    %p68 = por %p66, %p67
    %p69 = scmp.ne.s32.totalorder %s58, %s59
    %p70 = scmp.eq.s32.totalorder %s22, 0
    %p71 = por %p69, %p70
    %p72 = scmp.ne.s32.totalorder %s58, %s59
    %p73 = scmp.eq.s32.totalorder %s23, 1
    %p74 = por %p72, %p73
    %p76 = scmp.ne.s32.totalorder %s59, %s75
    %p77 = scmp.eq.s32.totalorder %s23, 0
    %p78 = por %p76, %p77
    %s80 = sadd.s32 %s79, 1
    %p83 = scmp.eq.s32.totalorder %s17, 1
    %p84 = scmp.ne.s32.totalorder %s79, %s81
    %p85 = scmp.eq.s32.totalorder %s17, 0
    %p86 = por %p84, %p85
    %p87 = scmp.ne.s32.totalorder %s79, %s81
    %p88 = scmp.eq.s32.totalorder %s22, 1
    %p89 = por %p87, %p88
    %p90 = scmp.ne.s32.totalorder %s81, %s82
    %p91 = scmp.eq.s32.totalorder %s22, 0
    %p92 = por %p90, %p91
    %p93 = scmp.ne.s32.totalorder %s81, %s82
    %p94 = scmp.eq.s32.totalorder %s23, 1
    %p95 = por %p93, %p94
    %p97 = scmp.ne.s32.totalorder %s82, %s96
    %p98 = scmp.eq.s32.totalorder %s23, 0
    %p99 = por %p97, %p98
    %s101 = sadd.s32 %s100, 1
    %p104 = scmp.eq.s32.totalorder %s17, 1
    %p105 = scmp.ne.s32.totalorder %s100, %s102
    %p106 = scmp.eq.s32.totalorder %s17, 0
    %p107 = por %p105, %p106
    %p108 = scmp.ne.s32.totalorder %s100, %s102
    %p109 = scmp.eq.s32.totalorder %s22, 1
    %p110 = por %p108, %p109
    %p111 = scmp.ne.s32.totalorder %s102, %s103
    %p112 = scmp.eq.s32.totalorder %s22, 0
    %p113 = por %p111, %p112
    %p114 = scmp.ne.s32.totalorder %s102, %s103
    %p115 = scmp.eq.s32.totalorder %s23, 1
    %p116 = por %p114, %p115
    %p118 = scmp.ne.s32.totalorder %s103, %s117
    %p119 = scmp.eq.s32.totalorder %s23, 0
    %p120 = por %p118, %p119
    %s122 = sadd.s32 %s121, 1
    %p125 = scmp.eq.s32.totalorder %s17, 1
    %p126 = scmp.ne.s32.totalorder %s121, %s123
    %p127 = scmp.eq.s32.totalorder %s17, 0
    %p128 = por %p126, %p127
    %p129 = scmp.ne.s32.totalorder %s121, %s123
    %p130 = scmp.eq.s32.totalorder %s22, 1
    %p131 = por %p129, %p130
    %p132 = scmp.ne.s32.totalorder %s123, %s124
    %p133 = scmp.eq.s32.totalorder %s22, 0
    %p134 = por %p132, %p133
    %p135 = scmp.ne.s32.totalorder %s123, %s124
    %p136 = scmp.eq.s32.totalorder %s23, 1
    %p137 = por %p135, %p136
    %p139 = scmp.ne.s32.totalorder %s124, %s138
    %p140 = scmp.eq.s32.totalorder %s23, 0
    %p141 = por %p139, %p140
    %s143 = sadd.s32 %s142, 1
    %p146 = scmp.eq.s32.totalorder %s17, 1
    %p147 = scmp.ne.s32.totalorder %s142, %s144
    %p148 = scmp.eq.s32.totalorder %s17, 0
    %p149 = por %p147, %p148
    %p150 = scmp.ne.s32.totalorder %s142, %s144
    %p151 = scmp.eq.s32.totalorder %s22, 1
    %p152 = por %p150, %p151
    %p153 = scmp.ne.s32.totalorder %s144, %s145
    %p154 = scmp.eq.s32.totalorder %s22, 0
    %p155 = por %p153, %p154
    %p156 = scmp.ne.s32.totalorder %s144, %s145
    %p157 = scmp.eq.s32.totalorder %s23, 1
    %p158 = por %p156, %p157
    %p160 = scmp.ne.s32.totalorder %s145, %s159
    %p161 = scmp.eq.s32.totalorder %s23, 0
    %p162 = por %p160, %p161
    %s164 = sadd.s32 %s163, 1
    %p167 = scmp.eq.s32.totalorder %s17, 1
    %p168 = scmp.ne.s32.totalorder %s163, %s165
    %p169 = scmp.eq.s32.totalorder %s17, 0
    %p170 = por %p168, %p169
    %p171 = scmp.ne.s32.totalorder %s163, %s165
    %p172 = scmp.eq.s32.totalorder %s22, 1
    %p173 = por %p171, %p172
    %p174 = scmp.ne.s32.totalorder %s165, %s166
    %p175 = scmp.eq.s32.totalorder %s22, 0
    %p176 = por %p174, %p175
    %p177 = scmp.ne.s32.totalorder %s165, %s166
    %p178 = scmp.eq.s32.totalorder %s23, 1
    %p179 = por %p177, %p178
    %p181 = scmp.ne.s32.totalorder %s166, %s180
    %p182 = scmp.eq.s32.totalorder %s23, 0
    %p183 = por %p181, %p182
    %s185 = sadd.s32 %s184, 1
    %p188 = scmp.eq.s32.totalorder %s17, 1
    %p189 = scmp.ne.s32.totalorder %s184, %s186
    %p190 = scmp.eq.s32.totalorder %s17, 0
    %p191 = por %p189, %p190
    %p192 = scmp.ne.s32.totalorder %s184, %s186
    %p193 = scmp.eq.s32.totalorder %s22, 1
    %p194 = por %p192, %p193
    %p195 = scmp.ne.s32.totalorder %s186, %s187
    %p196 = scmp.eq.s32.totalorder %s22, 0
    %p197 = por %p195, %p196
    %p198 = scmp.ne.s32.totalorder %s186, %s187
    %p199 = scmp.eq.s32.totalorder %s23, 1
    %p200 = por %p198, %p199
    %p202 = scmp.ne.s32.totalorder %s187, %s201
    %p203 = scmp.eq.s32.totalorder %s23, 0
    %p204 = por %p202, %p203
    %s206 = sadd.s32 %s205, 1
    %p209 = scmp.eq.s32.totalorder %s17, 1
    %p210 = scmp.ne.s32.totalorder %s205, %s207
    %p211 = scmp.eq.s32.totalorder %s17, 0
    %p212 = por %p210, %p211
    %p213 = scmp.ne.s32.totalorder %s205, %s207
    %p214 = scmp.eq.s32.totalorder %s22, 1
    %p215 = por %p213, %p214
    %p216 = scmp.ne.s32.totalorder %s207, %s208
    %p217 = scmp.eq.s32.totalorder %s22, 0
    %p218 = por %p216, %p217
    %p219 = scmp.ne.s32.totalorder %s207, %s208
    %p220 = scmp.eq.s32.totalorder %s23, 1
    %p221 = por %p219, %p220
    %p223 = scmp.ne.s32.totalorder %s208, %s222
    %p224 = scmp.eq.s32.totalorder %s23, 0
    %p225 = por %p223, %p224
    %s226 = ssub.s32 %s17, %s24
    %p227 = scmp.eq.s32.totalorder %s226, 0
    %s229 = sadd.s32 %s228, 1
    %s230 = scalar_select %p227, %s228, %s229
    %p233 = pneg %p227
    %p234 = scmp.eq.s32.totalorder %s17, 1
    %p235 = por %p233, %p234
    %p236 = scmp.ne.s32.totalorder %s228, %s231
    %p237 = scmp.eq.s32.totalorder %s17, 0
    %p238 = por %p236, %p237
    %p239 = scmp.ne.s32.totalorder %s228, %s231
    %p240 = scmp.eq.s32.totalorder %s22, 1
    %p241 = por %p239, %p240
    %p242 = scmp.ne.s32.totalorder %s231, %s232
    %p243 = scmp.eq.s32.totalorder %s22, 0
    %p244 = por %p242, %p243
    %p245 = scmp.ne.s32.totalorder %s231, %s232
    %p246 = scmp.eq.s32.totalorder %s23, 1
    %p247 = por %p245, %p246
    %p249 = scmp.ne.s32.totalorder %s232, %s248
    %p250 = scmp.eq.s32.totalorder %s23, 0
    %p251 = por %p249, %p250
    %s252 = ssub.s32 1, %s17
    %s253 = ssub.s32 1, %s24
    %s254 = ssub.s32 %s252, %s253
    %p255 = scmp.eq.s32.totalorder %s254, 0
    %s257 = sadd.s32 %s256, 1
    %s258 = scalar_select %p255, %s256, %s257
    %p261 = pneg %p255
    %p262 = scmp.eq.s32.totalorder %s17, 1
    %p263 = por %p261, %p262
    %p264 = scmp.ne.s32.totalorder %s256, %s259
    %p265 = scmp.eq.s32.totalorder %s17, 0
    %p266 = por %p264, %p265
    %p267 = scmp.ne.s32.totalorder %s256, %s259
    %p268 = scmp.eq.s32.totalorder %s22, 1
    %p269 = por %p267, %p268
    %p270 = scmp.ne.s32.totalorder %s259, %s260
    %p271 = scmp.eq.s32.totalorder %s22, 0
    %p272 = por %p270, %p271
    %p273 = scmp.ne.s32.totalorder %s259, %s260
    %p274 = scmp.eq.s32.totalorder %s23, 1
    %p275 = por %p273, %p274
    %p277 = scmp.ne.s32.totalorder %s260, %s276
    %p278 = scmp.eq.s32.totalorder %s23, 0
    %p279 = por %p277, %p278
    %p280 = scmp.le.s32.totalorder 1, %s17
    %p281 = scmp.lt.s32.totalorder %s17, 3
    %p282 = pnand %p280, %p281
    %p283 = pneg %p282
    // Predicated region
    $region9: #{rnn_model_forward.2} parent=5 // pred_check
      _
    $region10: #{rnn_model_forward.2} parent=5 // pred_check_branch
      %285 = sbr.rel (%p282) target = $region12
    $region11: #{rnn_model_forward.2} parent=5 // pred_region
      %s286 = ssub.s32 %s17, 1
      // Predicated region
      $region13: #{rnn_model_forward.2} parent=11 // pred_check
        %p287 = pneg %p92
      $region14: #{rnn_model_forward.2} parent=11 // pred_check_branch
        %289 = sbr.rel (%p287) target = $region16
      $region15: #{rnn_model_forward.2} parent=11 // pred_region
        _
      $region16: #{rnn_model_forward.2} parent=11 // pred_fallthru
        _
      // Predicated region
      $region17: #{rnn_model_forward.2} parent=11 // pred_check
        %p290 = pneg %p113
      $region18: #{rnn_model_forward.2} parent=11 // pred_check_branch
        %292 = sbr.rel (%p290) target = $region20
      $region19: #{rnn_model_forward.2} parent=11 // pred_region
        _
      $region20: #{rnn_model_forward.2} parent=11 // pred_fallthru
        _
      // Predicated region
      $region21: #{rnn_model_forward.2} parent=11 // pred_check
        %p293 = pneg %p134
      $region22: #{rnn_model_forward.2} parent=11 // pred_check_branch
        %295 = sbr.rel (%p293) target = $region24
      $region23: #{rnn_model_forward.2} parent=11 // pred_region
        _
      $region24: #{rnn_model_forward.2} parent=11 // pred_fallthru
        _
      // Predicated region
      $region25: #{rnn_model_forward.2} parent=11 // pred_check
        %p296 = pneg %p155
      $region26: #{rnn_model_forward.2} parent=11 // pred_check_branch
        %298 = sbr.rel (%p296) target = $region28
      $region27: #{rnn_model_forward.2} parent=11 // pred_region
        _
      $region28: #{rnn_model_forward.2} parent=11 // pred_fallthru
        _
      // Predicated region
      $region29: #{rnn_model_forward.2} parent=11 // pred_check
        %p299 = pneg %p176
      $region30: #{rnn_model_forward.2} parent=11 // pred_check_branch
        %301 = sbr.rel (%p299) target = $region32
      $region31: #{rnn_model_forward.2} parent=11 // pred_region
        _
      $region32: #{rnn_model_forward.2} parent=11 // pred_fallthru
        _
      // Predicated region
      $region33: #{rnn_model_forward.2} parent=11 // pred_check
        %p302 = pneg %p197
      $region34: #{rnn_model_forward.2} parent=11 // pred_check_branch
        %304 = sbr.rel (%p302) target = $region36
      $region35: #{rnn_model_forward.2} parent=11 // pred_region
        _
      $region36: #{rnn_model_forward.2} parent=11 // pred_fallthru
        _
      // Predicated region
      $region37: #{rnn_model_forward.2} parent=11 // pred_check
        %p305 = pneg %p218
      $region38: #{rnn_model_forward.2} parent=11 // pred_check_branch
        %307 = sbr.rel (%p305) target = $region40
      $region39: #{rnn_model_forward.2} parent=11 // pred_region
        _
      $region40: #{rnn_model_forward.2} parent=11 // pred_fallthru
        _
    $region12: #{rnn_model_forward.2} parent=5 // pred_fallthru
      _
    %p308 = scmp.lt.s32.totalorder %s17, 2
    // Predicated region
    $region41: #{rnn_model_forward.2} parent=5 // pred_check
      %p309 = pneg %p308
    $region42: #{rnn_model_forward.2} parent=5 // pred_check_branch
      %311 = sbr.rel (%p309) target = $region44
    $region43: #{rnn_model_forward.2} parent=5 // pred_region
      // Predicated region
      $region45: #{rnn_model_forward.2} parent=43 // pred_check
        %p312 = pneg %p37
      $region46: #{rnn_model_forward.2} parent=43 // pred_check_branch
        %314 = sbr.rel (%p312) target = $region48
      $region47: #{rnn_model_forward.2} parent=43 // pred_region
        %s315 = smul.u32 8, %s17
        %p316 = scmp.lt.s32.totalorder %s315, 15
        %s317 = scalar_select %p316, %s315, 15
        %s318 = smul.addr %s317, 4
        %s319 = scalar_lea.vmem %s0, %s318
        %s320 = smul.u32 8, %s17
      $region48: #{rnn_model_forward.2} parent=43 // pred_fallthru
        _
      // Predicated region
      $region49: #{rnn_model_forward.2} parent=43 // pred_check
        %p321 = pneg %p65
      $region50: #{rnn_model_forward.2} parent=43 // pred_check_branch
        %323 = sbr.rel (%p321) target = $region52
      $region51: #{rnn_model_forward.2} parent=43 // pred_region
        %s324 = ssub.s32 1, %s17
        %s325 = smul.u32 8, %s324
        %p326 = scmp.lt.s32.totalorder %s325, 15
        %s327 = scalar_select %p326, %s325, 15
        %s328 = smul.addr %s327, 4
        %s329 = scalar_lea.vmem %s1, %s328
        %s330 = ssub.s32 1, %s17
        %s331 = smul.u32 8, %s330
      $region52: #{rnn_model_forward.2} parent=43 // pred_fallthru
        _
    $region44: #{rnn_model_forward.2} parent=5 // pred_fallthru
      _
    %p332 = scmp.le.s32.totalorder 1, %s17
    %p333 = scmp.lt.s32.totalorder %s17, 3
    %p334 = pnand %p332, %p333
    %p335 = pneg %p334
    // Predicated region
    $region53: #{rnn_model_forward.2} parent=5 // pred_check
      _
    $region54: #{rnn_model_forward.2} parent=5 // pred_check_branch
      %337 = sbr.rel (%p334) target = $region56
    $region55: #{rnn_model_forward.2} parent=5 // pred_region
      %s338 = ssub.s32 %s17, 1
      %s339 = smul.u32 8, %s22
      %p340 = scmp.lt.s32.totalorder %s339, 15
      %s341 = scalar_select %p340, %s339, 15
      %s342 = smul.addr %s341, 4
      %s343 = scalar_lea.vmem %s0, %s342
      %p344 = pneg %p43
      %p345 = pneg %p40
      %s346 = ssub.s32 1, %s22
      %s347 = smul.u32 8, %s346
      %p348 = scmp.lt.s32.totalorder %s347, 15
      %s349 = scalar_select %p348, %s347, 15
      %s350 = smul.addr %s349, 4
      %s351 = scalar_lea.vmem %s1, %s350
      %p352 = pneg %p71
      %p353 = pneg %p68
      %p354 = pneg %p92
      %p355 = pneg %p89
      %p356 = pneg %p113
      %p357 = pneg %p110
      %p358 = pneg %p134
      %p359 = pneg %p131
      %p360 = pneg %p155
      %p361 = pneg %p152
      %p362 = pneg %p176
      %p363 = pneg %p173
      %p364 = pneg %p197
      %p365 = pneg %p194
      %p366 = pneg %p218
      %p367 = pneg %p215
      %p368 = pneg %p244
      %p369 = pneg %p241
      %s370 = smul.u32 8, %s22
      %p371 = scmp.lt.s32.totalorder %s370, 15
      %s372 = scalar_select %p371, %s370, 15
      %s373 = smul.addr %s372, 4
      %s374 = scalar_lea.vmem %s9, %s373
      %p375 = pneg %p272
      %p376 = pneg %p269
      %s377 = ssub.s32 1, %s22
      %s378 = smul.u32 8, %s377
      %p379 = scmp.lt.s32.totalorder %s378, 15
      %s380 = scalar_select %p379, %s378, 15
      %s381 = smul.addr %s380, 4
      %s382 = scalar_lea.vmem %s10, %s381
      %s383 = smul.u32 8, %s22
      %p384 = scmp.lt.s32.totalorder %s383, 15
      %s385 = scalar_select %p384, %s383, 15
      %s386 = smul.addr %s385, 4
      %s387 = scalar_lea.vmem %s0, %s386
      %s388 = smul.u32 8, %s22
      %s389 = ssub.s32 1, %s22
      %s390 = smul.u32 8, %s389
      %p391 = scmp.lt.s32.totalorder %s390, 15
      %s392 = scalar_select %p391, %s390, 15
      %s393 = smul.addr %s392, 4
      %s394 = scalar_lea.vmem %s1, %s393
      %s395 = ssub.s32 1, %s22
      %s396 = smul.u32 8, %s395
      %s397 = smul.u32 8, %s22
      %p398 = scmp.lt.s32.totalorder %s397, 15
      %s399 = scalar_select %p398, %s397, 15
      %s400 = smul.addr %s399, 4
      %s401 = scalar_lea.vmem %s9, %s400
      %s402 = smul.u32 8, %s22
      %s403 = ssub.s32 1, %s22
      %s404 = smul.u32 8, %s403
      %p405 = scmp.lt.s32.totalorder %s404, 15
      %s406 = scalar_select %p405, %s404, 15
      %s407 = smul.addr %s406, 4
      %s408 = scalar_lea.vmem %s10, %s407
      %s409 = ssub.s32 1, %s22
      %s410 = smul.u32 8, %s409
      %p412 = scmp.eq.s32.totalorder %s22, 0
      // Predicated region
      $region57: #{rnn_model_forward.2} parent=55 // pred_check
        %p413 = pneg %p412
      $region58: #{rnn_model_forward.2} parent=55 // pred_check_branch
        %415 = sbr.rel (%p413) target = $region60
      $region59: #{rnn_model_forward.2} parent=55 // pred_region
        %416 = vst [vmem:[#allocation2] sm:$0xff] 0.0
        %417 = vst [vmem:[#allocation2 + $0x8] sm:$0xff] 0.0
        %418 = vst [vmem:[#allocation2 + $0x10] sm:$0xff] 0.0
        %419 = vst [vmem:[#allocation2 + $0x18] sm:$0xff] 0.0
      $region60: #{rnn_model_forward.2} parent=55 // pred_fallthru
        _
      %v420 = vld [vmem:[%s387] sm:$0xf]
      %v421 = vld [vmem:[%s387 + $0x4] sm:$0xf]
      %v422 = vld [vmem:[%s387 + $0x8] sm:$0xf]
      %v423 = vld [vmem:[%s387 + $0xc] sm:$0xf]
      %v424 = vld [vmem:[%s387 + $0x10] sm:$0xf]
      %v425 = vld [vmem:[%s387 + $0x14] sm:$0xf]
      %v426 = vld [vmem:[%s387 + $0x18] sm:$0xf]
      %v427 = vld [vmem:[%s387 + $0x1c] sm:$0xf]
      %v428 = vld [vmem:[%s2] sm:$0xff]
      %v429 = vld [vmem:[%s2 + $0x8] sm:$0xf]
      %v430 = vld [vmem:[%s2 + $0xc] sm:$0xff]
      %v431 = vld [vmem:[%s2 + $0x14] sm:$0xf]
      %v432 = vld [vmem:[%s2 + $0x18] sm:$0xff]
      %v433 = vld [vmem:[%s2 + $0x20] sm:$0xf]
      %v434 = vld [vmem:[%s2 + $0x24] sm:$0xff]
      %v435 = vld [vmem:[%s2 + $0x2c] sm:$0xf]
      %v436 = vld [vmem:[%s2 + $0x30] sm:$0xff]
      %v437 = vld [vmem:[%s2 + $0x38] sm:$0xf]
      %v438 = vld [vmem:[%s2 + $0x3c] sm:$0xff]
      %v439 = vld [vmem:[%s2 + $0x44] sm:$0xf]
      %v440 = vld [vmem:[%s2 + $0x48] sm:$0xff]
      %v441 = vld [vmem:[%s2 + $0x50] sm:$0xf]
      %v442 = vld [vmem:[%s2 + $0x54] sm:$0xff]
      %v443 = vld [vmem:[%s2 + $0x5c] sm:$0xf]
      %v444 = vld [vmem:[%s2 + $0x60] sm:$0xff]
      %v445 = vld [vmem:[%s2 + $0x68] sm:$0xf]
      %v446 = vld [vmem:[%s2 + $0x6c] sm:$0xff]
      %v447 = vld [vmem:[%s2 + $0x74] sm:$0xf]
      %v448 = vld [vmem:[%s2 + $0x78] sm:$0xff]
      %v449 = vld [vmem:[%s2 + $0x80] sm:$0xf]
      %v450 = vld [vmem:[%s2 + $0x84] sm:$0xff]
      %v451 = vld [vmem:[%s2 + $0x8c] sm:$0xf]
      %v452 = vld [vmem:[%s2 + $0x90] sm:$0xff]
      %v453 = vld [vmem:[%s2 + $0x98] sm:$0xf]
      %v454 = vld [vmem:[%s2 + $0x9c] sm:$0xff]
      %v455 = vld [vmem:[%s2 + $0xa4] sm:$0xf]
      %v456 = vld [vmem:[%s2 + $0xa8] sm:$0xff]
      %v457 = vld [vmem:[%s2 + $0xb0] sm:$0xf]
      %v458 = vld [vmem:[%s2 + $0xb4] sm:$0xff]
      %v459 = vld [vmem:[%s2 + $0xbc] sm:$0xf]
      %v460 = vld [vmem:[%s5] sm:$0x7]
      %v462 = vlaneseq
      %v463 = vshrl.u32 %v462, 7
      %v464 = vsub.s32 0, %v463
      %v465 = vrot.slane %v460, %v464
      %v466 = vlaneseq
      %v467 = vshrl.u32 %v466, 7
      %v468 = vsub.s32 1, %v467
      %v469 = vrot.slane %v460, %v468
      %v470 = vlaneseq
      %v471 = vshrl.u32 %v470, 7
      %v472 = vsub.s32 2, %v471
      %v473 = vrot.slane %v460, %v472
      %v485 = vunpack.c.l.b16 %v420
      %v486 = vunpack.c.l.b16 %v421
      %v487 = vunpack.c.l.b16 %v422
      %v488 = vunpack.c.l.b16 %v423
      %v489 = vunpack.c.l.b16 %v424
      %v490 = vunpack.c.l.b16 %v425
      %v491 = vunpack.c.l.b16 %v426
      %v492 = vunpack.c.l.b16 %v427
      %v493 = vpack.c.b16 %v486, %v485
      %v494 = vpack.c.b16 %v488, %v487
      %v495 = vpack.c.b16 %v490, %v489
      %v496 = vpack.c.b16 %v492, %v491
      %v533 = vunpack.c.l.b16 %v428
      %v534 = vunpack.c.h.b16 %v428
      %v535 = vunpack.c.l.b16 %v429
      %v536 = vunpack.c.l.b16 %v430
      %v537 = vunpack.c.h.b16 %v430
      %v538 = vunpack.c.l.b16 %v431
      %v539 = vunpack.c.l.b16 %v432
      %v540 = vunpack.c.h.b16 %v432
      %v541 = vunpack.c.l.b16 %v433
      %v542 = vunpack.c.l.b16 %v434
      %v543 = vunpack.c.h.b16 %v434
      %v544 = vunpack.c.l.b16 %v435
      %v545 = vunpack.c.l.b16 %v436
      %v546 = vunpack.c.h.b16 %v436
      %v547 = vunpack.c.l.b16 %v437
      %v548 = vunpack.c.l.b16 %v438
      %v549 = vunpack.c.h.b16 %v438
      %v550 = vunpack.c.l.b16 %v439
      %v551 = vunpack.c.l.b16 %v440
      %v552 = vunpack.c.h.b16 %v440
      %v553 = vunpack.c.l.b16 %v441
      %v554 = vunpack.c.l.b16 %v442
      %v555 = vunpack.c.h.b16 %v442
      %v556 = vunpack.c.l.b16 %v443
      %v557 = vunpack.c.l.b16 %v444
      %v558 = vunpack.c.h.b16 %v444
      %v559 = vunpack.c.l.b16 %v445
      %v560 = vunpack.c.l.b16 %v446
      %v561 = vunpack.c.h.b16 %v446
      %v562 = vunpack.c.l.b16 %v447
      %v563 = vunpack.c.l.b16 %v448
      %v564 = vunpack.c.h.b16 %v448
      %v565 = vunpack.c.l.b16 %v449
      %v566 = vunpack.c.l.b16 %v450
      %v567 = vunpack.c.h.b16 %v450
      %v568 = vunpack.c.l.b16 %v451
      %v569 = vunpack.c.l.b16 %v452
      %v570 = vunpack.c.h.b16 %v452
      %v571 = vunpack.c.l.b16 %v453
      %v572 = vunpack.c.l.b16 %v454
      %v573 = vunpack.c.h.b16 %v454
      %v574 = vunpack.c.l.b16 %v455
      %v575 = vunpack.c.l.b16 %v456
      %v576 = vunpack.c.h.b16 %v456
      %v577 = vunpack.c.l.b16 %v457
      %v578 = vunpack.c.l.b16 %v458
      %v579 = vunpack.c.h.b16 %v458
      %v580 = vunpack.c.l.b16 %v459
      %v581 = vpack.c.b16 %v536, %v533
      %v582 = vpack.c.b16 %v537, %v534
      %v583 = vpack.c.b16 %v538, %v535
      %v584 = vpack.c.b16 %v542, %v539
      %v585 = vpack.c.b16 %v543, %v540
      %v586 = vpack.c.b16 %v544, %v541
      %v587 = vpack.c.b16 %v548, %v545
      %v588 = vpack.c.b16 %v549, %v546
      %v589 = vpack.c.b16 %v550, %v547
      %v590 = vpack.c.b16 %v554, %v551
      %v591 = vpack.c.b16 %v555, %v552
      %v592 = vpack.c.b16 %v556, %v553
      %v593 = vpack.c.b16 %v560, %v557
      %v594 = vpack.c.b16 %v561, %v558
      %v595 = vpack.c.b16 %v562, %v559
      %v596 = vpack.c.b16 %v566, %v563
      %v597 = vpack.c.b16 %v567, %v564
      %v598 = vpack.c.b16 %v568, %v565
      %v599 = vpack.c.b16 %v572, %v569
      %v600 = vpack.c.b16 %v573, %v570
      %v601 = vpack.c.b16 %v574, %v571
      %v602 = vpack.c.b16 %v578, %v575
      %v603 = vpack.c.b16 %v579, %v576
      %v604 = vpack.c.b16 %v580, %v577
      %629 = vmatprep.subr.bf16.mxu0 %v582
      %630 = vmatpush1.bf16.msra.mxu0 %v581
      %631 = vmatprep.subr.bf16.mxu0 %v585
      %632 = vmatpush1.bf16.msra.mxu0 %v584
      %633 = vmatprep.subr.bf16.mxu0 %v588
      %634 = vmatpush1.bf16.msra.mxu0 %v587
      %635 = vmatprep.subr.bf16.mxu0 %v591
      %636 = vmatpush1.bf16.msra.mxu0 %v590
      %637 = vmatprep.subr.bf16.mxu0 %v594
      %638 = vmatpush1.bf16.msra.mxu0 %v593
      %639 = vmatprep.subr.bf16.mxu0 %v597
      %640 = vmatpush1.bf16.msra.mxu0 %v596
      %641 = vmatprep.subr.bf16.mxu0 %v600
      %642 = vmatpush1.bf16.msra.mxu0 %v599
      %643 = vmatprep.subr.bf16.mxu0 %v603
      %644 = vmatpush1.bf16.msra.mxu0 %v602
      %645 = vmatprep.subr.bf16.mxu0 0
      %646 = vmatpush1.bf16.msra.mxu0 0
      %647 = vmatprep.subr.bf16.mxu0 0
      %648 = vmatpush1.bf16.msra.mxu0 0
      %649 = vmatprep.subr.bf16.mxu0 0
      %650 = vmatpush1.bf16.msra.mxu0 0
      %651 = vmatprep.subr.bf16.mxu0 0
      %652 = vmatpush1.bf16.msra.mxu0 0
      %653 = vmatprep.subr.bf16.mxu0 0
      %654 = vmatpush1.bf16.msra.mxu0 0
      %655 = vmatprep.subr.bf16.mxu0 0
      %656 = vmatpush1.bf16.msra.mxu0 0
      %657 = vmatprep.subr.bf16.mxu0 0
      %658 = vmatpush1.bf16.msra.mxu0 0
      %659 = vmatprep.subr.bf16.mxu0 0
      %660 = vmatpush1.bf16.msra.mxu0 0
      %661 = vmatprep.mubr.bf16.mxu0 0
      %662 = vmatmul.mubr.bf16.gmra.mrb[0].mxu0 %v493
      %v663 = vpop.f32.mrb[0].mxu0
      %v664 = vadd.f32 %v465, %v663
      %v665 = vpop.f32.mrb[0].mxu0
      %v666 = vadd.f32 %v469, %v665
      %v667 = vpop.f32.mrb[0].mxu0
      %v668 = vadd.f32 %v465, %v667
      %v669 = vpop.f32.mrb[0].mxu0
      %v670 = vadd.f32 %v469, %v669
      %671 = vmatprep.mubr.bf16.mxu0 0
      %672 = vmatmul.mubr.bf16.gmra.mrb[0].mxu0 %v494
      %v673 = vpop.f32.mrb[0].mxu0
      %v674 = vadd.f32 %v465, %v673
      %v675 = vpop.f32.mrb[0].mxu0
      %v676 = vadd.f32 %v469, %v675
      %v677 = vpop.f32.mrb[0].mxu0
      %v678 = vadd.f32 %v465, %v677
      %v679 = vpop.f32.mrb[0].mxu0
      %v680 = vadd.f32 %v469, %v679
      %681 = vmatprep.mubr.bf16.mxu0 0
      %682 = vmatmul.mubr.bf16.gmra.mrb[0].mxu0 %v495
      %v683 = vpop.f32.mrb[0].mxu0
      %v684 = vadd.f32 %v465, %v683
      %v685 = vpop.f32.mrb[0].mxu0
      %v686 = vadd.f32 %v469, %v685
      %v687 = vpop.f32.mrb[0].mxu0
      %v688 = vadd.f32 %v465, %v687
      %v689 = vpop.f32.mrb[0].mxu0
      %v690 = vadd.f32 %v469, %v689
      %691 = vmatprep.mubr.bf16.mxu0 0
      %692 = vmatmul.mubr.bf16.gmra.mrb[0].mxu0 %v496
      %v693 = vpop.f32.mrb[0].mxu0
      %v694 = vadd.f32 %v465, %v693
      %v695 = vpop.f32.mrb[0].mxu0
      %v696 = vadd.f32 %v469, %v695
      %v697 = vpop.f32.mrb[0].mxu0
      %v698 = vadd.f32 %v465, %v697
      %v699 = vpop.f32.mrb[0].mxu0
      %v700 = vadd.f32 %v469, %v699
      %701 = vdwg.mxu0
      %702 = vmatprep.subr.bf16.mxu0 0
      %703 = vmatpush1.bf16.msra.mxu0 %v583
      %704 = vmatprep.subr.bf16.mxu0 0
      %705 = vmatpush1.bf16.msra.mxu0 %v586
      %706 = vmatprep.subr.bf16.mxu0 0
      %707 = vmatpush1.bf16.msra.mxu0 %v589
      %708 = vmatprep.subr.bf16.mxu0 0
      %709 = vmatpush1.bf16.msra.mxu0 %v592
      %710 = vmatprep.subr.bf16.mxu0 0
      %711 = vmatpush1.bf16.msra.mxu0 %v595
      %712 = vmatprep.subr.bf16.mxu0 0
      %713 = vmatpush1.bf16.msra.mxu0 %v598
      %714 = vmatprep.subr.bf16.mxu0 0
      %715 = vmatpush1.bf16.msra.mxu0 %v601
      %716 = vmatprep.subr.bf16.mxu0 0
      %717 = vmatpush1.bf16.msra.mxu0 %v604
      %718 = vmatprep.subr.bf16.mxu0 0
      %719 = vmatpush1.bf16.msra.mxu0 0
      %720 = vmatprep.subr.bf16.mxu0 0
      %721 = vmatpush1.bf16.msra.mxu0 0
      %722 = vmatprep.subr.bf16.mxu0 0
      %723 = vmatpush1.bf16.msra.mxu0 0
      %724 = vmatprep.subr.bf16.mxu0 0
      %725 = vmatpush1.bf16.msra.mxu0 0
      %726 = vmatprep.subr.bf16.mxu0 0
      %727 = vmatpush1.bf16.msra.mxu0 0
      %728 = vmatprep.subr.bf16.mxu0 0
      %729 = vmatpush1.bf16.msra.mxu0 0
      %730 = vmatprep.subr.bf16.mxu0 0
      %731 = vmatpush1.bf16.msra.mxu0 0
      %732 = vmatprep.subr.bf16.mxu0 0
      %733 = vmatpush1.bf16.msra.mxu0 0
      %734 = vmatprep.mubr.bf16.mxu0 0
      %735 = vmatmul.mubr.bf16.gmra.mrb[0].mxu0 %v493
      %v736 = vpop.f32.mrb[0].mxu0
      %v737 = vadd.f32 %v473, %v736
      %v738 = vpop.f32.mrb[0].mxu0
      %v739 = vpop.f32.mrb[0].mxu0
      %v740 = vadd.f32 %v473, %v739
      %v741 = vpop.f32.mrb[0].mxu0
      %742 = vmatprep.mubr.bf16.mxu0 0
      %743 = vmatmul.mubr.bf16.gmra.mrb[0].mxu0 %v494
      %v744 = vpop.f32.mrb[0].mxu0
      %v745 = vadd.f32 %v473, %v744
      %v746 = vpop.f32.mrb[0].mxu0
      %v747 = vpop.f32.mrb[0].mxu0
      %v748 = vadd.f32 %v473, %v747
      %v749 = vpop.f32.mrb[0].mxu0
      %750 = vmatprep.mubr.bf16.mxu0 0
      %751 = vmatmul.mubr.bf16.gmra.mrb[0].mxu0 %v495
      %v752 = vpop.f32.mrb[0].mxu0
      %v753 = vadd.f32 %v473, %v752
      %v754 = vpop.f32.mrb[0].mxu0
      %v755 = vpop.f32.mrb[0].mxu0
      %v756 = vadd.f32 %v473, %v755
      %v757 = vpop.f32.mrb[0].mxu0
      %758 = vmatprep.mubr.bf16.mxu0 0
      %759 = vmatmul.mubr.bf16.gmra.mrb[0].mxu0 %v496
      %v760 = vpop.f32.mrb[0].mxu0
      %v761 = vadd.f32 %v473, %v760
      %v762 = vpop.f32.mrb[0].mxu0
      %v763 = vpop.f32.mrb[0].mxu0
      %v764 = vadd.f32 %v473, %v763
      %v765 = vpop.f32.mrb[0].mxu0
      %766 = vdwg.mxu0
      %767 = vst [vmem:[#allocation3] sm:$0xff] %v664
      %768 = vst [vmem:[#allocation3 + $0x8] sm:$0xff] %v666
      %769 = vst [vmem:[#allocation3 + $0x10] sm:$0xff] %v737
      %770 = vst [vmem:[#allocation3 + $0x18] sm:$0xff] %v668
      %771 = vst [vmem:[#allocation3 + $0x20] sm:$0xff] %v670
      %772 = vst [vmem:[#allocation3 + $0x28] sm:$0xff] %v740
      %773 = vst [vmem:[#allocation3 + $0x30] sm:$0xff] %v674
      %774 = vst [vmem:[#allocation3 + $0x38] sm:$0xff] %v676
      %775 = vst [vmem:[#allocation3 + $0x40] sm:$0xff] %v745
      %776 = vst [vmem:[#allocation3 + $0x48] sm:$0xff] %v678
      %777 = vst [vmem:[#allocation3 + $0x50] sm:$0xff] %v680
      %778 = vst [vmem:[#allocation3 + $0x58] sm:$0xff] %v748
      %779 = vst [vmem:[#allocation3 + $0x60] sm:$0xff] %v684
      %780 = vst [vmem:[#allocation3 + $0x68] sm:$0xff] %v686
      %781 = vst [vmem:[#allocation3 + $0x70] sm:$0xff] %v753
      %782 = vst [vmem:[#allocation3 + $0x78] sm:$0xff] %v688
      %783 = vst [vmem:[#allocation3 + $0x80] sm:$0xff] %v690
      %784 = vst [vmem:[#allocation3 + $0x88] sm:$0xff] %v756
      %785 = vst [vmem:[#allocation3 + $0x90] sm:$0xff] %v694
      %786 = vst [vmem:[#allocation3 + $0x98] sm:$0xff] %v696
      %787 = vst [vmem:[#allocation3 + $0xa0] sm:$0xff] %v761
      %788 = vst [vmem:[#allocation3 + $0xa8] sm:$0xff] %v698
      %789 = vst [vmem:[#allocation3 + $0xb0] sm:$0xff] %v700
      %790 = vst [vmem:[#allocation3 + $0xb8] sm:$0xff] %v764
      %v791 = vld [vmem:[%s394] sm:$0xf]
      %v792 = vld [vmem:[%s394 + $0x4] sm:$0xf]
      %v793 = vld [vmem:[%s394 + $0x8] sm:$0xf]
      %v794 = vld [vmem:[%s394 + $0xc] sm:$0xf]
      %v795 = vld [vmem:[%s394 + $0x10] sm:$0xf]
      %v796 = vld [vmem:[%s394 + $0x14] sm:$0xf]
      %v797 = vld [vmem:[%s394 + $0x18] sm:$0xf]
      %v798 = vld [vmem:[%s394 + $0x1c] sm:$0xf]
      %v799 = vld [vmem:[%s3] sm:$0xff]
      %v800 = vld [vmem:[%s3 + $0x8] sm:$0xf]
      %v801 = vld [vmem:[%s3 + $0xc] sm:$0xff]
      %v802 = vld [vmem:[%s3 + $0x14] sm:$0xf]
      %v803 = vld [vmem:[%s3 + $0x18] sm:$0xff]
      %v804 = vld [vmem:[%s3 + $0x20] sm:$0xf]
      %v805 = vld [vmem:[%s3 + $0x24] sm:$0xff]
      %v806 = vld [vmem:[%s3 + $0x2c] sm:$0xf]
      %v807 = vld [vmem:[%s3 + $0x30] sm:$0xff]
      %v808 = vld [vmem:[%s3 + $0x38] sm:$0xf]
      %v809 = vld [vmem:[%s3 + $0x3c] sm:$0xff]
      %v810 = vld [vmem:[%s3 + $0x44] sm:$0xf]
      %v811 = vld [vmem:[%s3 + $0x48] sm:$0xff]
      %v812 = vld [vmem:[%s3 + $0x50] sm:$0xf]
      %v813 = vld [vmem:[%s3 + $0x54] sm:$0xff]
      %v814 = vld [vmem:[%s3 + $0x5c] sm:$0xf]
      %v815 = vld [vmem:[%s3 + $0x60] sm:$0xff]
      %v816 = vld [vmem:[%s3 + $0x68] sm:$0xf]
      %v817 = vld [vmem:[%s3 + $0x6c] sm:$0xff]
      %v818 = vld [vmem:[%s3 + $0x74] sm:$0xf]
      %v819 = vld [vmem:[%s3 + $0x78] sm:$0xff]
      %v820 = vld [vmem:[%s3 + $0x80] sm:$0xf]
      %v821 = vld [vmem:[%s3 + $0x84] sm:$0xff]
      %v822 = vld [vmem:[%s3 + $0x8c] sm:$0xf]
      %v823 = vld [vmem:[%s3 + $0x90] sm:$0xff]
      %v824 = vld [vmem:[%s3 + $0x98] sm:$0xf]
      %v825 = vld [vmem:[%s3 + $0x9c] sm:$0xff]
      %v826 = vld [vmem:[%s3 + $0xa4] sm:$0xf]
      %v827 = vld [vmem:[%s3 + $0xa8] sm:$0xff]
      %v828 = vld [vmem:[%s3 + $0xb0] sm:$0xf]
      %v829 = vld [vmem:[%s3 + $0xb4] sm:$0xff]
      %v830 = vld [vmem:[%s3 + $0xbc] sm:$0xf]
      %v831 = vld [vmem:[%s6] sm:$0x7]
      %v833 = vlaneseq
      %v834 = vshrl.u32 %v833, 7
      %v835 = vsub.s32 0, %v834
      %v836 = vrot.slane %v831, %v835
      %v837 = vlaneseq
      %v838 = vshrl.u32 %v837, 7
      %v839 = vsub.s32 1, %v838
      %v840 = vrot.slane %v831, %v839
      %v841 = vlaneseq
      %v842 = vshrl.u32 %v841, 7
      %v843 = vsub.s32 2, %v842
      %v844 = vrot.slane %v831, %v843
      %v856 = vunpack.c.l.b16 %v791
      %v857 = vunpack.c.l.b16 %v792
      %v858 = vunpack.c.l.b16 %v793
      %v859 = vunpack.c.l.b16 %v794
      %v860 = vunpack.c.l.b16 %v795
      %v861 = vunpack.c.l.b16 %v796
      %v862 = vunpack.c.l.b16 %v797
      %v863 = vunpack.c.l.b16 %v798
      %v864 = vpack.c.b16 %v857, %v856
      %v865 = vpack.c.b16 %v859, %v858
      %v866 = vpack.c.b16 %v861, %v860
      %v867 = vpack.c.b16 %v863, %v862
      %v904 = vunpack.c.l.b16 %v799
      %v905 = vunpack.c.h.b16 %v799
      %v906 = vunpack.c.l.b16 %v800
      %v907 = vunpack.c.l.b16 %v801
      %v908 = vunpack.c.h.b16 %v801
      %v909 = vunpack.c.l.b16 %v802
      %v910 = vunpack.c.l.b16 %v803
      %v911 = vunpack.c.h.b16 %v803
      %v912 = vunpack.c.l.b16 %v804
      %v913 = vunpack.c.l.b16 %v805
      %v914 = vunpack.c.h.b16 %v805
      %v915 = vunpack.c.l.b16 %v806
      %v916 = vunpack.c.l.b16 %v807
      %v917 = vunpack.c.h.b16 %v807
      %v918 = vunpack.c.l.b16 %v808
      %v919 = vunpack.c.l.b16 %v809
      %v920 = vunpack.c.h.b16 %v809
      %v921 = vunpack.c.l.b16 %v810
      %v922 = vunpack.c.l.b16 %v811
      %v923 = vunpack.c.h.b16 %v811
      %v924 = vunpack.c.l.b16 %v812
      %v925 = vunpack.c.l.b16 %v813
      %v926 = vunpack.c.h.b16 %v813
      %v927 = vunpack.c.l.b16 %v814
      %v928 = vunpack.c.l.b16 %v815
      %v929 = vunpack.c.h.b16 %v815
      %v930 = vunpack.c.l.b16 %v816
      %v931 = vunpack.c.l.b16 %v817
      %v932 = vunpack.c.h.b16 %v817
      %v933 = vunpack.c.l.b16 %v818
      %v934 = vunpack.c.l.b16 %v819
      %v935 = vunpack.c.h.b16 %v819
      %v936 = vunpack.c.l.b16 %v820
      %v937 = vunpack.c.l.b16 %v821
      %v938 = vunpack.c.h.b16 %v821
      %v939 = vunpack.c.l.b16 %v822
      %v940 = vunpack.c.l.b16 %v823
      %v941 = vunpack.c.h.b16 %v823
      %v942 = vunpack.c.l.b16 %v824
      %v943 = vunpack.c.l.b16 %v825
      %v944 = vunpack.c.h.b16 %v825
      %v945 = vunpack.c.l.b16 %v826
      %v946 = vunpack.c.l.b16 %v827
      %v947 = vunpack.c.h.b16 %v827
      %v948 = vunpack.c.l.b16 %v828
      %v949 = vunpack.c.l.b16 %v829
      %v950 = vunpack.c.h.b16 %v829
      %v951 = vunpack.c.l.b16 %v830
      %v952 = vpack.c.b16 %v907, %v904
      %v953 = vpack.c.b16 %v908, %v905
      %v954 = vpack.c.b16 %v909, %v906
      %v955 = vpack.c.b16 %v913, %v910
      %v956 = vpack.c.b16 %v914, %v911
      %v957 = vpack.c.b16 %v915, %v912
      %v958 = vpack.c.b16 %v919, %v916
      %v959 = vpack.c.b16 %v920, %v917
      %v960 = vpack.c.b16 %v921, %v918
      %v961 = vpack.c.b16 %v925, %v922
      %v962 = vpack.c.b16 %v926, %v923
      %v963 = vpack.c.b16 %v927, %v924
      %v964 = vpack.c.b16 %v931, %v928
      %v965 = vpack.c.b16 %v932, %v929
      %v966 = vpack.c.b16 %v933, %v930
      %v967 = vpack.c.b16 %v937, %v934
      %v968 = vpack.c.b16 %v938, %v935
      %v969 = vpack.c.b16 %v939, %v936
      %v970 = vpack.c.b16 %v943, %v940
      %v971 = vpack.c.b16 %v944, %v941
      %v972 = vpack.c.b16 %v945, %v942
      %v973 = vpack.c.b16 %v949, %v946
      %v974 = vpack.c.b16 %v950, %v947
      %v975 = vpack.c.b16 %v951, %v948
      %1000 = vmatprep.subr.bf16.mxu0 %v953
      %1001 = vmatpush1.bf16.msra.mxu0 %v952
      %1002 = vmatprep.subr.bf16.mxu0 %v956
      %1003 = vmatpush1.bf16.msra.mxu0 %v955
      %1004 = vmatprep.subr.bf16.mxu0 %v959
      %1005 = vmatpush1.bf16.msra.mxu0 %v958
      %1006 = vmatprep.subr.bf16.mxu0 %v962
      %1007 = vmatpush1.bf16.msra.mxu0 %v961
      %1008 = vmatprep.subr.bf16.mxu0 %v965
      %1009 = vmatpush1.bf16.msra.mxu0 %v964
      %1010 = vmatprep.subr.bf16.mxu0 %v968
      %1011 = vmatpush1.bf16.msra.mxu0 %v967
      %1012 = vmatprep.subr.bf16.mxu0 %v971
      %1013 = vmatpush1.bf16.msra.mxu0 %v970
      %1014 = vmatprep.subr.bf16.mxu0 %v974
      %1015 = vmatpush1.bf16.msra.mxu0 %v973
      %1016 = vmatprep.subr.bf16.mxu0 0
      %1017 = vmatpush1.bf16.msra.mxu0 0
      %1018 = vmatprep.subr.bf16.mxu0 0
      %1019 = vmatpush1.bf16.msra.mxu0 0
      %1020 = vmatprep.subr.bf16.mxu0 0
      %1021 = vmatpush1.bf16.msra.mxu0 0
      %1022 = vmatprep.subr.bf16.mxu0 0
      %1023 = vmatpush1.bf16.msra.mxu0 0
      %1024 = vmatprep.subr.bf16.mxu0 0
      %1025 = vmatpush1.bf16.msra.mxu0 0
      %1026 = vmatprep.subr.bf16.mxu0 0
      %1027 = vmatpush1.bf16.msra.mxu0 0
      %1028 = vmatprep.subr.bf16.mxu0 0
      %1029 = vmatpush1.bf16.msra.mxu0 0
      %1030 = vmatprep.subr.bf16.mxu0 0
      %1031 = vmatpush1.bf16.msra.mxu0 0
      %1032 = vmatprep.mubr.bf16.mxu0 0
      %1033 = vmatmul.mubr.bf16.gmra.mrb[0].mxu0 %v864
      %v1034 = vpop.f32.mrb[0].mxu0
      %v1035 = vadd.f32 %v836, %v1034
      %v1036 = vpop.f32.mrb[0].mxu0
      %v1037 = vadd.f32 %v840, %v1036
      %v1038 = vpop.f32.mrb[0].mxu0
      %v1039 = vadd.f32 %v836, %v1038
      %v1040 = vpop.f32.mrb[0].mxu0
      %v1041 = vadd.f32 %v840, %v1040
      %1042 = vmatprep.mubr.bf16.mxu0 0
      %1043 = vmatmul.mubr.bf16.gmra.mrb[0].mxu0 %v865
      %v1044 = vpop.f32.mrb[0].mxu0
      %v1045 = vadd.f32 %v836, %v1044
      %v1046 = vpop.f32.mrb[0].mxu0
      %v1047 = vadd.f32 %v840, %v1046
      %v1048 = vpop.f32.mrb[0].mxu0
      %v1049 = vadd.f32 %v836, %v1048
      %v1050 = vpop.f32.mrb[0].mxu0
      %v1051 = vadd.f32 %v840, %v1050
      %1052 = vmatprep.mubr.bf16.mxu0 0
      %1053 = vmatmul.mubr.bf16.gmra.mrb[0].mxu0 %v866
      %v1054 = vpop.f32.mrb[0].mxu0
      %v1055 = vadd.f32 %v836, %v1054
      %v1056 = vpop.f32.mrb[0].mxu0
      %v1057 = vadd.f32 %v840, %v1056
      %v1058 = vpop.f32.mrb[0].mxu0
      %v1059 = vadd.f32 %v836, %v1058
      %v1060 = vpop.f32.mrb[0].mxu0
      %v1061 = vadd.f32 %v840, %v1060
      %1062 = vmatprep.mubr.bf16.mxu0 0
      %1063 = vmatmul.mubr.bf16.gmra.mrb[0].mxu0 %v867
      %v1064 = vpop.f32.mrb[0].mxu0
      %v1065 = vadd.f32 %v836, %v1064
      %v1066 = vpop.f32.mrb[0].mxu0
      %v1067 = vadd.f32 %v840, %v1066
      %v1068 = vpop.f32.mrb[0].mxu0
      %v1069 = vadd.f32 %v836, %v1068
      %v1070 = vpop.f32.mrb[0].mxu0
      %v1071 = vadd.f32 %v840, %v1070
      %1072 = vdwg.mxu0
      %1073 = vmatprep.subr.bf16.mxu0 0
      %1074 = vmatpush1.bf16.msra.mxu0 %v954
      %1075 = vmatprep.subr.bf16.mxu0 0
      %1076 = vmatpush1.bf16.msra.mxu0 %v957
      %1077 = vmatprep.subr.bf16.mxu0 0
      %1078 = vmatpush1.bf16.msra.mxu0 %v960
      %1079 = vmatprep.subr.bf16.mxu0 0
      %1080 = vmatpush1.bf16.msra.mxu0 %v963
      %1081 = vmatprep.subr.bf16.mxu0 0
      %1082 = vmatpush1.bf16.msra.mxu0 %v966
      %1083 = vmatprep.subr.bf16.mxu0 0
      %1084 = vmatpush1.bf16.msra.mxu0 %v969
      %1085 = vmatprep.subr.bf16.mxu0 0
      %1086 = vmatpush1.bf16.msra.mxu0 %v972
      %1087 = vmatprep.subr.bf16.mxu0 0
      %1088 = vmatpush1.bf16.msra.mxu0 %v975
      %1089 = vmatprep.subr.bf16.mxu0 0
      %1090 = vmatpush1.bf16.msra.mxu0 0
      %1091 = vmatprep.subr.bf16.mxu0 0
      %1092 = vmatpush1.bf16.msra.mxu0 0
      %1093 = vmatprep.subr.bf16.mxu0 0
      %1094 = vmatpush1.bf16.msra.mxu0 0
      %1095 = vmatprep.subr.bf16.mxu0 0
      %1096 = vmatpush1.bf16.msra.mxu0 0
      %1097 = vmatprep.subr.bf16.mxu0 0
      %1098 = vmatpush1.bf16.msra.mxu0 0
      %1099 = vmatprep.subr.bf16.mxu0 0
      %1100 = vmatpush1.bf16.msra.mxu0 0
      %1101 = vmatprep.subr.bf16.mxu0 0
      %1102 = vmatpush1.bf16.msra.mxu0 0
      %1103 = vmatprep.subr.bf16.mxu0 0
      %1104 = vmatpush1.bf16.msra.mxu0 0
      %1105 = vmatprep.mubr.bf16.mxu0 0
      %1106 = vmatmul.mubr.bf16.gmra.mrb[0].mxu0 %v864
      %v1107 = vpop.f32.mrb[0].mxu0
      %v1108 = vadd.f32 %v844, %v1107
      %v1109 = vpop.f32.mrb[0].mxu0
      %v1110 = vpop.f32.mrb[0].mxu0
      %v1111 = vadd.f32 %v844, %v1110
      %v1112 = vpop.f32.mrb[0].mxu0
      %1113 = vmatprep.mubr.bf16.mxu0 0
      %1114 = vmatmul.mubr.bf16.gmra.mrb[0].mxu0 %v865
      %v1115 = vpop.f32.mrb[0].mxu0
      %v1116 = vadd.f32 %v844, %v1115
      %v1117 = vpop.f32.mrb[0].mxu0
      %v1118 = vpop.f32.mrb[0].mxu0
      %v1119 = vadd.f32 %v844, %v1118
      %v1120 = vpop.f32.mrb[0].mxu0
      %1121 = vmatprep.mubr.bf16.mxu0 0
      %1122 = vmatmul.mubr.bf16.gmra.mrb[0].mxu0 %v866
      %v1123 = vpop.f32.mrb[0].mxu0
      %v1124 = vadd.f32 %v844, %v1123
      %v1125 = vpop.f32.mrb[0].mxu0
      %v1126 = vpop.f32.mrb[0].mxu0
      %v1127 = vadd.f32 %v844, %v1126
      %v1128 = vpop.f32.mrb[0].mxu0
      %1129 = vmatprep.mubr.bf16.mxu0 0
      %1130 = vmatmul.mubr.bf16.gmra.mrb[0].mxu0 %v867
      %v1131 = vpop.f32.mrb[0].mxu0
      %v1132 = vadd.f32 %v844, %v1131
      %v1133 = vpop.f32.mrb[0].mxu0
      %v1134 = vpop.f32.mrb[0].mxu0
      %v1135 = vadd.f32 %v844, %v1134
      %v1136 = vpop.f32.mrb[0].mxu0
      %1137 = vdwg.mxu0
      %1138 = vst [vmem:[#allocation4] sm:$0xff] %v1035
      %1139 = vst [vmem:[#allocation4 + $0x8] sm:$0xff] %v1037
      %1140 = vst [vmem:[#allocation4 + $0x10] sm:$0xff] %v1108
      %1141 = vst [vmem:[#allocation4 + $0x18] sm:$0xff] %v1039
      %1142 = vst [vmem:[#allocation4 + $0x20] sm:$0xff] %v1041
      %1143 = vst [vmem:[#allocation4 + $0x28] sm:$0xff] %v1111
      %1144 = vst [vmem:[#allocation4 + $0x30] sm:$0xff] %v1045
      %1145 = vst [vmem:[#allocation4 + $0x38] sm:$0xff] %v1047
      %1146 = vst [vmem:[#allocation4 + $0x40] sm:$0xff] %v1116
      %1147 = vst [vmem:[#allocation4 + $0x48] sm:$0xff] %v1049
      %1148 = vst [vmem:[#allocation4 + $0x50] sm:$0xff] %v1051
      %1149 = vst [vmem:[#allocation4 + $0x58] sm:$0xff] %v1119
      %1150 = vst [vmem:[#allocation4 + $0x60] sm:$0xff] %v1055
      %1151 = vst [vmem:[#allocation4 + $0x68] sm:$0xff] %v1057
      %1152 = vst [vmem:[#allocation4 + $0x70] sm:$0xff] %v1124
      %1153 = vst [vmem:[#allocation4 + $0x78] sm:$0xff] %v1059
      %1154 = vst [vmem:[#allocation4 + $0x80] sm:$0xff] %v1061
      %1155 = vst [vmem:[#allocation4 + $0x88] sm:$0xff] %v1127
      %1156 = vst [vmem:[#allocation4 + $0x90] sm:$0xff] %v1065
      %1157 = vst [vmem:[#allocation4 + $0x98] sm:$0xff] %v1067
      %1158 = vst [vmem:[#allocation4 + $0xa0] sm:$0xff] %v1132
      %1159 = vst [vmem:[#allocation4 + $0xa8] sm:$0xff] %v1069
      %1160 = vst [vmem:[#allocation4 + $0xb0] sm:$0xff] %v1071
      %1161 = vst [vmem:[#allocation4 + $0xb8] sm:$0xff] %v1135
      %v1162 = vld [vmem:[%s4] sm:$0xff]
      %v1163 = vld [vmem:[%s4 + $0x8] sm:$0xff]
      %v1164 = vld [vmem:[%s4 + $0x10] sm:$0xff]
      %v1165 = vld [vmem:[%s4 + $0x18] sm:$0xff]
      %v1166 = vld [vmem:[%s4 + $0x20] sm:$0xff]
      %v1167 = vld [vmem:[%s4 + $0x28] sm:$0xff]
      %v1168 = vld [vmem:[%s4 + $0x30] sm:$0xff]
      %v1169 = vld [vmem:[%s4 + $0x38] sm:$0xff]
      %v1170 = vld [vmem:[%s4 + $0x40] sm:$0xff]
      %v1171 = vld [vmem:[%s4 + $0x48] sm:$0xff]
      %v1172 = vld [vmem:[%s4 + $0x50] sm:$0xff]
      %v1173 = vld [vmem:[%s4 + $0x58] sm:$0xff]
      %v1174 = vld [vmem:[%s4 + $0x60] sm:$0xff]
      %v1175 = vld [vmem:[%s4 + $0x68] sm:$0xff]
      %v1176 = vld [vmem:[%s4 + $0x70] sm:$0xff]
      %v1177 = vld [vmem:[%s4 + $0x78] sm:$0xff]
      %v1178 = vld [vmem:[%s4 + $0x80] sm:$0xff]
      %v1179 = vld [vmem:[%s4 + $0x88] sm:$0xff]
      %v1180 = vld [vmem:[%s4 + $0x90] sm:$0xff]
      %v1181 = vld [vmem:[%s4 + $0x98] sm:$0xff]
      %v1182 = vld [vmem:[%s4 + $0xa0] sm:$0xff]
      %v1183 = vld [vmem:[%s4 + $0xa8] sm:$0xff]
      %v1184 = vld [vmem:[%s4 + $0xb0] sm:$0xff]
      %v1185 = vld [vmem:[%s4 + $0xb8] sm:$0xff]
      %v1186 = vld [vmem:[%s4 + $0xc0] sm:$0xff]
      %v1187 = vld [vmem:[%s4 + $0xc8] sm:$0xff]
      %v1188 = vld [vmem:[%s4 + $0xd0] sm:$0xff]
      %v1189 = vld [vmem:[%s4 + $0xd8] sm:$0xff]
      %v1190 = vld [vmem:[%s4 + $0xe0] sm:$0xff]
      %v1191 = vld [vmem:[%s4 + $0xe8] sm:$0xff]
      %v1192 = vld [vmem:[%s4 + $0xf0] sm:$0xff]
      %v1193 = vld [vmem:[%s4 + $0xf8] sm:$0xff]
      %v1194 = vld [vmem:[%s4 + $0x100] sm:$0xff]
      %v1195 = vld [vmem:[%s4 + $0x108] sm:$0xff]
      %v1196 = vld [vmem:[%s4 + $0x110] sm:$0xff]
      %v1197 = vld [vmem:[%s4 + $0x118] sm:$0xff]
      %v1198 = vld [vmem:[%s4 + $0x120] sm:$0xff]
      %v1199 = vld [vmem:[%s4 + $0x128] sm:$0xff]
      %v1200 = vld [vmem:[%s4 + $0x130] sm:$0xff]
      %v1201 = vld [vmem:[%s4 + $0x138] sm:$0xff]
      %v1202 = vld [vmem:[%s4 + $0x140] sm:$0xff]
      %v1203 = vld [vmem:[%s4 + $0x148] sm:$0xff]
      %v1204 = vld [vmem:[%s4 + $0x150] sm:$0xff]
      %v1205 = vld [vmem:[%s4 + $0x158] sm:$0xff]
      %v1206 = vld [vmem:[%s4 + $0x160] sm:$0xff]
      %v1207 = vld [vmem:[%s4 + $0x168] sm:$0xff]
      %v1208 = vld [vmem:[%s4 + $0x170] sm:$0xff]
      %v1209 = vld [vmem:[%s4 + $0x178] sm:$0xff]
      %v1210 = vld [vmem:[%s4 + $0x180] sm:$0xff]
      %v1211 = vld [vmem:[%s4 + $0x188] sm:$0xff]
      %v1212 = vld [vmem:[%s4 + $0x190] sm:$0xff]
      %v1213 = vld [vmem:[%s4 + $0x198] sm:$0xff]
      %v1214 = vld [vmem:[%s4 + $0x1a0] sm:$0xff]
      %v1215 = vld [vmem:[%s4 + $0x1a8] sm:$0xff]
      %v1216 = vld [vmem:[%s4 + $0x1b0] sm:$0xff]
      %v1217 = vld [vmem:[%s4 + $0x1b8] sm:$0xff]
      %v1218 = vld [vmem:[%s4 + $0x1c0] sm:$0xff]
      %v1219 = vld [vmem:[%s4 + $0x1c8] sm:$0xff]
      %v1220 = vld [vmem:[%s4 + $0x1d0] sm:$0xff]
      %v1221 = vld [vmem:[%s4 + $0x1d8] sm:$0xff]
      %v1222 = vld [vmem:[%s4 + $0x1e0] sm:$0xff]
      %v1223 = vld [vmem:[%s4 + $0x1e8] sm:$0xff]
      %v1224 = vld [vmem:[%s4 + $0x1f0] sm:$0xff]
      %v1225 = vld [vmem:[%s4 + $0x1f8] sm:$0xff]
      %v1226 = vld [vmem:[%s4 + $0x200] sm:$0xff]
      %v1227 = vld [vmem:[%s4 + $0x208] sm:$0xff]
      %v1228 = vld [vmem:[%s4 + $0x210] sm:$0xff]
      %v1229 = vld [vmem:[%s4 + $0x218] sm:$0xff]
      %v1230 = vld [vmem:[%s4 + $0x220] sm:$0xff]
      %v1231 = vld [vmem:[%s4 + $0x228] sm:$0xff]
      %v1232 = vld [vmem:[%s4 + $0x230] sm:$0xff]
      %v1233 = vld [vmem:[%s4 + $0x238] sm:$0xff]
      %v1234 = vld [vmem:[%s4 + $0x240] sm:$0xff]
      %v1235 = vld [vmem:[%s4 + $0x248] sm:$0xff]
      %v1236 = vld [vmem:[%s4 + $0x250] sm:$0xff]
      %v1237 = vld [vmem:[%s4 + $0x258] sm:$0xff]
      %v1238 = vld [vmem:[%s4 + $0x260] sm:$0xff]
      %v1239 = vld [vmem:[%s4 + $0x268] sm:$0xff]
      %v1240 = vld [vmem:[%s4 + $0x270] sm:$0xff]
      %v1241 = vld [vmem:[%s4 + $0x278] sm:$0xff]
      %v1242 = vld [vmem:[%s4 + $0x280] sm:$0xff]
      %v1243 = vld [vmem:[%s4 + $0x288] sm:$0xff]
      %v1244 = vld [vmem:[%s4 + $0x290] sm:$0xff]
      %v1245 = vld [vmem:[%s4 + $0x298] sm:$0xff]
      %v1246 = vld [vmem:[%s4 + $0x2a0] sm:$0xff]
      %v1247 = vld [vmem:[%s4 + $0x2a8] sm:$0xff]
      %v1248 = vld [vmem:[%s4 + $0x2b0] sm:$0xff]
      %v1249 = vld [vmem:[%s4 + $0x2b8] sm:$0xff]
      %v1250 = vld [vmem:[%s4 + $0x2c0] sm:$0xff]
      %v1251 = vld [vmem:[%s4 + $0x2c8] sm:$0xff]
      %v1252 = vld [vmem:[%s4 + $0x2d0] sm:$0xff]
      %v1253 = vld [vmem:[%s4 + $0x2d8] sm:$0xff]
      %v1254 = vld [vmem:[%s4 + $0x2e0] sm:$0xff]
      %v1255 = vld [vmem:[%s4 + $0x2e8] sm:$0xff]
      %v1256 = vld [vmem:[%s4 + $0x2f0] sm:$0xff]
      %v1257 = vld [vmem:[%s4 + $0x2f8] sm:$0xff]
      %v1258 = vld [vmem:[%s7] sm:$0x1]
      %v1260 = vlaneseq
      %v1261 = vshrl.u32 %v1260, 7
      %v1262 = vsub.s32 0, %v1261
      %v1263 = vrot.slane %v1258, %v1262
      %v1265 = vld [vmem:[%s8] sm:$0x1]
      %v1267 = vlaneseq
      %v1268 = vshrl.u32 %v1267, 7
      %v1269 = vsub.s32 0, %v1268
      %v1270 = vrot.slane %v1265, %v1269
      %v1272 = vld [vmem:[#allocation2] sm:$0xff]
      %v1273 = vld [vmem:[#allocation2 + $0x8] sm:$0xff]
      %v1274 = vld [vmem:[#allocation2 + $0x10] sm:$0xff]
      %v1275 = vld [vmem:[#allocation2 + $0x18] sm:$0xff]
      %v1276 = vpack.c.bf16 %v1274, %v1272
      %v1277 = vpack.c.bf16 %v1275, %v1273
      %v1374 = vunpack.c.l.b16 %v1162
      %v1375 = vunpack.c.h.b16 %v1162
      %v1376 = vunpack.c.l.b16 %v1163
      %v1377 = vunpack.c.h.b16 %v1163
      %v1378 = vunpack.c.l.b16 %v1164
      %v1379 = vunpack.c.h.b16 %v1164
      %v1380 = vunpack.c.l.b16 %v1165
      %v1381 = vunpack.c.h.b16 %v1165
      %v1382 = vunpack.c.l.b16 %v1166
      %v1383 = vunpack.c.h.b16 %v1166
      %v1384 = vunpack.c.l.b16 %v1167
      %v1385 = vunpack.c.h.b16 %v1167
      %v1386 = vunpack.c.l.b16 %v1168
      %v1387 = vunpack.c.h.b16 %v1168
      %v1388 = vunpack.c.l.b16 %v1169
      %v1389 = vunpack.c.h.b16 %v1169
      %v1390 = vunpack.c.l.b16 %v1170
      %v1391 = vunpack.c.h.b16 %v1170
      %v1392 = vunpack.c.l.b16 %v1171
      %v1393 = vunpack.c.h.b16 %v1171
      %v1394 = vunpack.c.l.b16 %v1172
      %v1395 = vunpack.c.h.b16 %v1172
      %v1396 = vunpack.c.l.b16 %v1173
      %v1397 = vunpack.c.h.b16 %v1173
      %v1398 = vunpack.c.l.b16 %v1174
      %v1399 = vunpack.c.h.b16 %v1174
      %v1400 = vunpack.c.l.b16 %v1175
      %v1401 = vunpack.c.h.b16 %v1175
      %v1402 = vunpack.c.l.b16 %v1176
      %v1403 = vunpack.c.h.b16 %v1176
      %v1404 = vunpack.c.l.b16 %v1177
      %v1405 = vunpack.c.h.b16 %v1177
      %v1406 = vunpack.c.l.b16 %v1178
      %v1407 = vunpack.c.h.b16 %v1178
      %v1408 = vunpack.c.l.b16 %v1179
      %v1409 = vunpack.c.h.b16 %v1179
      %v1410 = vunpack.c.l.b16 %v1180
      %v1411 = vunpack.c.h.b16 %v1180
      %v1412 = vunpack.c.l.b16 %v1181
      %v1413 = vunpack.c.h.b16 %v1181
      %v1414 = vunpack.c.l.b16 %v1182
      %v1415 = vunpack.c.h.b16 %v1182
      %v1416 = vunpack.c.l.b16 %v1183
      %v1417 = vunpack.c.h.b16 %v1183
      %v1418 = vunpack.c.l.b16 %v1184
      %v1419 = vunpack.c.h.b16 %v1184
      %v1420 = vunpack.c.l.b16 %v1185
      %v1421 = vunpack.c.h.b16 %v1185
      %v1422 = vunpack.c.l.b16 %v1186
      %v1423 = vunpack.c.h.b16 %v1186
      %v1424 = vunpack.c.l.b16 %v1187
      %v1425 = vunpack.c.h.b16 %v1187
      %v1426 = vunpack.c.l.b16 %v1188
      %v1427 = vunpack.c.h.b16 %v1188
      %v1428 = vunpack.c.l.b16 %v1189
      %v1429 = vunpack.c.h.b16 %v1189
      %v1430 = vunpack.c.l.b16 %v1190
      %v1431 = vunpack.c.h.b16 %v1190
      %v1432 = vunpack.c.l.b16 %v1191
      %v1433 = vunpack.c.h.b16 %v1191
      %v1434 = vunpack.c.l.b16 %v1192
      %v1435 = vunpack.c.h.b16 %v1192
      %v1436 = vunpack.c.l.b16 %v1193
      %v1437 = vunpack.c.h.b16 %v1193
      %v1438 = vunpack.c.l.b16 %v1194
      %v1439 = vunpack.c.h.b16 %v1194
      %v1440 = vunpack.c.l.b16 %v1195
      %v1441 = vunpack.c.h.b16 %v1195
      %v1442 = vunpack.c.l.b16 %v1196
      %v1443 = vunpack.c.h.b16 %v1196
      %v1444 = vunpack.c.l.b16 %v1197
      %v1445 = vunpack.c.h.b16 %v1197
      %v1446 = vunpack.c.l.b16 %v1198
      %v1447 = vunpack.c.h.b16 %v1198
      %v1448 = vunpack.c.l.b16 %v1199
      %v1449 = vunpack.c.h.b16 %v1199
      %v1450 = vunpack.c.l.b16 %v1200
      %v1451 = vunpack.c.h.b16 %v1200
      %v1452 = vunpack.c.l.b16 %v1201
      %v1453 = vunpack.c.h.b16 %v1201
      %v1454 = vunpack.c.l.b16 %v1202
      %v1455 = vunpack.c.h.b16 %v1202
      %v1456 = vunpack.c.l.b16 %v1203
      %v1457 = vunpack.c.h.b16 %v1203
      %v1458 = vunpack.c.l.b16 %v1204
      %v1459 = vunpack.c.h.b16 %v1204
      %v1460 = vunpack.c.l.b16 %v1205
      %v1461 = vunpack.c.h.b16 %v1205
      %v1462 = vunpack.c.l.b16 %v1206
      %v1463 = vunpack.c.h.b16 %v1206
      %v1464 = vunpack.c.l.b16 %v1207
      %v1465 = vunpack.c.h.b16 %v1207
      %v1466 = vunpack.c.l.b16 %v1208
      %v1467 = vunpack.c.h.b16 %v1208
      %v1468 = vunpack.c.l.b16 %v1209
      %v1469 = vunpack.c.h.b16 %v1209
      %v1470 = vunpack.c.l.b16 %v1210
      %v1471 = vunpack.c.h.b16 %v1210
      %v1472 = vunpack.c.l.b16 %v1211
      %v1473 = vunpack.c.h.b16 %v1211
      %v1474 = vunpack.c.l.b16 %v1212
      %v1475 = vunpack.c.h.b16 %v1212
      %v1476 = vunpack.c.l.b16 %v1213
      %v1477 = vunpack.c.h.b16 %v1213
      %v1478 = vunpack.c.l.b16 %v1214
      %v1479 = vunpack.c.h.b16 %v1214
      %v1480 = vunpack.c.l.b16 %v1215
      %v1481 = vunpack.c.h.b16 %v1215
      %v1482 = vunpack.c.l.b16 %v1216
      %v1483 = vunpack.c.h.b16 %v1216
      %v1484 = vunpack.c.l.b16 %v1217
      %v1485 = vunpack.c.h.b16 %v1217
      %v1486 = vunpack.c.l.b16 %v1218
      %v1487 = vunpack.c.h.b16 %v1218
      %v1488 = vunpack.c.l.b16 %v1219
      %v1489 = vunpack.c.h.b16 %v1219
      %v1490 = vunpack.c.l.b16 %v1220
      %v1491 = vunpack.c.h.b16 %v1220
      %v1492 = vunpack.c.l.b16 %v1221
      %v1493 = vunpack.c.h.b16 %v1221
      %v1494 = vunpack.c.l.b16 %v1222
      %v1495 = vunpack.c.h.b16 %v1222
      %v1496 = vunpack.c.l.b16 %v1223
      %v1497 = vunpack.c.h.b16 %v1223
      %v1498 = vunpack.c.l.b16 %v1224
      %v1499 = vunpack.c.h.b16 %v1224
      %v1500 = vunpack.c.l.b16 %v1225
      %v1501 = vunpack.c.h.b16 %v1225
      %v1502 = vunpack.c.l.b16 %v1226
      %v1503 = vunpack.c.h.b16 %v1226
      %v1504 = vunpack.c.l.b16 %v1227
      %v1505 = vunpack.c.h.b16 %v1227
      %v1506 = vunpack.c.l.b16 %v1228
      %v1507 = vunpack.c.h.b16 %v1228
      %v1508 = vunpack.c.l.b16 %v1229
      %v1509 = vunpack.c.h.b16 %v1229
      %v1510 = vunpack.c.l.b16 %v1230
      %v1511 = vunpack.c.h.b16 %v1230
      %v1512 = vunpack.c.l.b16 %v1231
      %v1513 = vunpack.c.h.b16 %v1231
      %v1514 = vunpack.c.l.b16 %v1232
      %v1515 = vunpack.c.h.b16 %v1232
      %v1516 = vunpack.c.l.b16 %v1233
      %v1517 = vunpack.c.h.b16 %v1233
      %v1518 = vunpack.c.l.b16 %v1234
      %v1519 = vunpack.c.h.b16 %v1234
      %v1520 = vunpack.c.l.b16 %v1235
      %v1521 = vunpack.c.h.b16 %v1235
      %v1522 = vunpack.c.l.b16 %v1236
      %v1523 = vunpack.c.h.b16 %v1236
      %v1524 = vunpack.c.l.b16 %v1237
      %v1525 = vunpack.c.h.b16 %v1237
      %v1526 = vunpack.c.l.b16 %v1238
      %v1527 = vunpack.c.h.b16 %v1238
      %v1528 = vunpack.c.l.b16 %v1239
      %v1529 = vunpack.c.h.b16 %v1239
      %v1530 = vunpack.c.l.b16 %v1240
      %v1531 = vunpack.c.h.b16 %v1240
      %v1532 = vunpack.c.l.b16 %v1241
      %v1533 = vunpack.c.h.b16 %v1241
      %v1534 = vunpack.c.l.b16 %v1242
      %v1535 = vunpack.c.h.b16 %v1242
      %v1536 = vunpack.c.l.b16 %v1243
      %v1537 = vunpack.c.h.b16 %v1243
      %v1538 = vunpack.c.l.b16 %v1244
      %v1539 = vunpack.c.h.b16 %v1244
      %v1540 = vunpack.c.l.b16 %v1245
      %v1541 = vunpack.c.h.b16 %v1245
      %v1542 = vunpack.c.l.b16 %v1246
      %v1543 = vunpack.c.h.b16 %v1246
      %v1544 = vunpack.c.l.b16 %v1247
      %v1545 = vunpack.c.h.b16 %v1247
      %v1546 = vunpack.c.l.b16 %v1248
      %v1547 = vunpack.c.h.b16 %v1248
      %v1548 = vunpack.c.l.b16 %v1249
      %v1549 = vunpack.c.h.b16 %v1249
      %v1550 = vunpack.c.l.b16 %v1250
      %v1551 = vunpack.c.h.b16 %v1250
      %v1552 = vunpack.c.l.b16 %v1251
      %v1553 = vunpack.c.h.b16 %v1251
      %v1554 = vunpack.c.l.b16 %v1252
      %v1555 = vunpack.c.h.b16 %v1252
      %v1556 = vunpack.c.l.b16 %v1253
      %v1557 = vunpack.c.h.b16 %v1253
      %v1558 = vunpack.c.l.b16 %v1254
      %v1559 = vunpack.c.h.b16 %v1254
      %v1560 = vunpack.c.l.b16 %v1255
      %v1561 = vunpack.c.h.b16 %v1255
      %v1562 = vunpack.c.l.b16 %v1256
      %v1563 = vunpack.c.h.b16 %v1256
      %v1564 = vunpack.c.l.b16 %v1257
      %v1565 = vunpack.c.h.b16 %v1257
      %v1566 = vpack.c.b16 %v1380, %v1374
      %v1567 = vpack.c.b16 %v1381, %v1375
      %v1568 = vpack.c.b16 %v1382, %v1376
      %v1569 = vpack.c.b16 %v1383, %v1377
      %v1570 = vpack.c.b16 %v1384, %v1378
      %v1571 = vpack.c.b16 %v1385, %v1379
      %v1572 = vpack.c.b16 %v1392, %v1386
      %v1573 = vpack.c.b16 %v1393, %v1387
      %v1574 = vpack.c.b16 %v1394, %v1388
      %v1575 = vpack.c.b16 %v1395, %v1389
      %v1576 = vpack.c.b16 %v1396, %v1390
      %v1577 = vpack.c.b16 %v1397, %v1391
      %v1578 = vpack.c.b16 %v1404, %v1398
      %v1579 = vpack.c.b16 %v1405, %v1399
      %v1580 = vpack.c.b16 %v1406, %v1400
      %v1581 = vpack.c.b16 %v1407, %v1401
      %v1582 = vpack.c.b16 %v1408, %v1402
      %v1583 = vpack.c.b16 %v1409, %v1403
      %v1584 = vpack.c.b16 %v1416, %v1410
      %v1585 = vpack.c.b16 %v1417, %v1411
      %v1586 = vpack.c.b16 %v1418, %v1412
      %v1587 = vpack.c.b16 %v1419, %v1413
      %v1588 = vpack.c.b16 %v1420, %v1414
      %v1589 = vpack.c.b16 %v1421, %v1415
      %v1590 = vpack.c.b16 %v1428, %v1422
      %v1591 = vpack.c.b16 %v1429, %v1423
      %v1592 = vpack.c.b16 %v1430, %v1424
      %v1593 = vpack.c.b16 %v1431, %v1425
      %v1594 = vpack.c.b16 %v1432, %v1426
      %v1595 = vpack.c.b16 %v1433, %v1427
      %v1596 = vpack.c.b16 %v1440, %v1434
      %v1597 = vpack.c.b16 %v1441, %v1435
      %v1598 = vpack.c.b16 %v1442, %v1436
      %v1599 = vpack.c.b16 %v1443, %v1437
      %v1600 = vpack.c.b16 %v1444, %v1438
      %v1601 = vpack.c.b16 %v1445, %v1439
      %v1602 = vpack.c.b16 %v1452, %v1446
      %v1603 = vpack.c.b16 %v1453, %v1447
      %v1604 = vpack.c.b16 %v1454, %v1448
      %v1605 = vpack.c.b16 %v1455, %v1449
      %v1606 = vpack.c.b16 %v1456, %v1450
      %v1607 = vpack.c.b16 %v1457, %v1451
      %v1608 = vpack.c.b16 %v1464, %v1458
      %v1609 = vpack.c.b16 %v1465, %v1459
      %v1610 = vpack.c.b16 %v1466, %v1460
      %v1611 = vpack.c.b16 %v1467, %v1461
      %v1612 = vpack.c.b16 %v1468, %v1462
      %v1613 = vpack.c.b16 %v1469, %v1463
      %v1614 = vpack.c.b16 %v1476, %v1470
      %v1615 = vpack.c.b16 %v1477, %v1471
      %v1616 = vpack.c.b16 %v1478, %v1472
      %v1617 = vpack.c.b16 %v1479, %v1473
      %v1618 = vpack.c.b16 %v1480, %v1474
      %v1619 = vpack.c.b16 %v1481, %v1475
      %v1620 = vpack.c.b16 %v1488, %v1482
      %v1621 = vpack.c.b16 %v1489, %v1483
      %v1622 = vpack.c.b16 %v1490, %v1484
      %v1623 = vpack.c.b16 %v1491, %v1485
      %v1624 = vpack.c.b16 %v1492, %v1486
      %v1625 = vpack.c.b16 %v1493, %v1487
      %v1626 = vpack.c.b16 %v1500, %v1494
      %v1627 = vpack.c.b16 %v1501, %v1495
      %v1628 = vpack.c.b16 %v1502, %v1496
      %v1629 = vpack.c.b16 %v1503, %v1497
      %v1630 = vpack.c.b16 %v1504, %v1498
      %v1631 = vpack.c.b16 %v1505, %v1499
      %v1632 = vpack.c.b16 %v1512, %v1506
      %v1633 = vpack.c.b16 %v1513, %v1507
      %v1634 = vpack.c.b16 %v1514, %v1508
      %v1635 = vpack.c.b16 %v1515, %v1509
      %v1636 = vpack.c.b16 %v1516, %v1510
      %v1637 = vpack.c.b16 %v1517, %v1511
      %v1638 = vpack.c.b16 %v1524, %v1518
      %v1639 = vpack.c.b16 %v1525, %v1519
      %v1640 = vpack.c.b16 %v1526, %v1520
      %v1641 = vpack.c.b16 %v1527, %v1521
      %v1642 = vpack.c.b16 %v1528, %v1522
      %v1643 = vpack.c.b16 %v1529, %v1523
      %v1644 = vpack.c.b16 %v1536, %v1530
      %v1645 = vpack.c.b16 %v1537, %v1531
      %v1646 = vpack.c.b16 %v1538, %v1532
      %v1647 = vpack.c.b16 %v1539, %v1533
      %v1648 = vpack.c.b16 %v1540, %v1534
      %v1649 = vpack.c.b16 %v1541, %v1535
      %v1650 = vpack.c.b16 %v1548, %v1542
      %v1651 = vpack.c.b16 %v1549, %v1543
      %v1652 = vpack.c.b16 %v1550, %v1544
      %v1653 = vpack.c.b16 %v1551, %v1545
      %v1654 = vpack.c.b16 %v1552, %v1546
      %v1655 = vpack.c.b16 %v1553, %v1547
      %v1656 = vpack.c.b16 %v1560, %v1554
      %v1657 = vpack.c.b16 %v1561, %v1555
      %v1658 = vpack.c.b16 %v1562, %v1556
      %v1659 = vpack.c.b16 %v1563, %v1557
      %v1660 = vpack.c.b16 %v1564, %v1558
      %v1661 = vpack.c.b16 %v1565, %v1559
      %1758 = vmatprep.subr.bf16.mxu0 %v1567
      %1759 = vmatpush1.bf16.msra.mxu0 %v1566
      %1760 = vmatprep.subr.bf16.mxu0 %v1573
      %1761 = vmatpush1.bf16.msra.mxu0 %v1572
      %1762 = vmatprep.subr.bf16.mxu0 %v1579
      %1763 = vmatpush1.bf16.msra.mxu0 %v1578
      %1764 = vmatprep.subr.bf16.mxu0 %v1585
      %1765 = vmatpush1.bf16.msra.mxu0 %v1584
      %1766 = vmatprep.subr.bf16.mxu0 %v1591
      %1767 = vmatpush1.bf16.msra.mxu0 %v1590
      %1768 = vmatprep.subr.bf16.mxu0 %v1597
      %1769 = vmatpush1.bf16.msra.mxu0 %v1596
      %1770 = vmatprep.subr.bf16.mxu0 %v1603
      %1771 = vmatpush1.bf16.msra.mxu0 %v1602
      %1772 = vmatprep.subr.bf16.mxu0 %v1609
      %1773 = vmatpush1.bf16.msra.mxu0 %v1608
      %1774 = vmatprep.subr.bf16.mxu0 %v1615
      %1775 = vmatpush1.bf16.msra.mxu0 %v1614
      %1776 = vmatprep.subr.bf16.mxu0 %v1621
      %1777 = vmatpush1.bf16.msra.mxu0 %v1620
      %1778 = vmatprep.subr.bf16.mxu0 %v1627
      %1779 = vmatpush1.bf16.msra.mxu0 %v1626
      %1780 = vmatprep.subr.bf16.mxu0 %v1633
      %1781 = vmatpush1.bf16.msra.mxu0 %v1632
      %1782 = vmatprep.subr.bf16.mxu0 %v1639
      %1783 = vmatpush1.bf16.msra.mxu0 %v1638
      %1784 = vmatprep.subr.bf16.mxu0 %v1645
      %1785 = vmatpush1.bf16.msra.mxu0 %v1644
      %1786 = vmatprep.subr.bf16.mxu0 %v1651
      %1787 = vmatpush1.bf16.msra.mxu0 %v1650
      %1788 = vmatprep.subr.bf16.mxu0 %v1657
      %1789 = vmatpush1.bf16.msra.mxu0 %v1656
      %1790 = vmatprep.mubr.bf16.mxu0 %v1277
      %1791 = vmatmul.mubr.bf16.gmra.mrb[0].mxu0 %v1276
      %v1792 = vpop.f32.mrb[0].mxu0
      %v1793 = vadd.f32 0.0, %v1792
      %v1794 = vpop.f32.mrb[0].mxu0
      %v1795 = vadd.f32 0.0, %v1794
      %v1796 = vpop.f32.mrb[0].mxu0
      %v1797 = vadd.f32 0.0, %v1796
      %v1798 = vpop.f32.mrb[0].mxu0
      %v1799 = vadd.f32 0.0, %v1798
      %1800 = vdwg.mxu0
      %1801 = vmatprep.subr.bf16.mxu0 %v1569
      %1802 = vmatpush1.bf16.msra.mxu0 %v1568
      %1803 = vmatprep.subr.bf16.mxu0 %v1575
      %1804 = vmatpush1.bf16.msra.mxu0 %v1574
      %1805 = vmatprep.subr.bf16.mxu0 %v1581
      %1806 = vmatpush1.bf16.msra.mxu0 %v1580
      %1807 = vmatprep.subr.bf16.mxu0 %v1587
      %1808 = vmatpush1.bf16.msra.mxu0 %v1586
      %1809 = vmatprep.subr.bf16.mxu0 %v1593
      %1810 = vmatpush1.bf16.msra.mxu0 %v1592
      %1811 = vmatprep.subr.bf16.mxu0 %v1599
      %1812 = vmatpush1.bf16.msra.mxu0 %v1598
      %1813 = vmatprep.subr.bf16.mxu0 %v1605
      %1814 = vmatpush1.bf16.msra.mxu0 %v1604
      %1815 = vmatprep.subr.bf16.mxu0 %v1611
      %1816 = vmatpush1.bf16.msra.mxu0 %v1610
      %1817 = vmatprep.subr.bf16.mxu0 %v1617
      %1818 = vmatpush1.bf16.msra.mxu0 %v1616
      %1819 = vmatprep.subr.bf16.mxu0 %v1623
      %1820 = vmatpush1.bf16.msra.mxu0 %v1622
      %1821 = vmatprep.subr.bf16.mxu0 %v1629
      %1822 = vmatpush1.bf16.msra.mxu0 %v1628
      %1823 = vmatprep.subr.bf16.mxu0 %v1635
      %1824 = vmatpush1.bf16.msra.mxu0 %v1634
      %1825 = vmatprep.subr.bf16.mxu0 %v1641
      %1826 = vmatpush1.bf16.msra.mxu0 %v1640
      %1827 = vmatprep.subr.bf16.mxu0 %v1647
      %1828 = vmatpush1.bf16.msra.mxu0 %v1646
      %1829 = vmatprep.subr.bf16.mxu0 %v1653
      %1830 = vmatpush1.bf16.msra.mxu0 %v1652
      %1831 = vmatprep.subr.bf16.mxu0 %v1659
      %1832 = vmatpush1.bf16.msra.mxu0 %v1658
      %1833 = vmatprep.mubr.bf16.mxu0 %v1277
      %1834 = vmatmul.mubr.bf16.gmra.mrb[0].mxu0 %v1276
      %v1835 = vpop.f32.mrb[0].mxu0
      %v1836 = vadd.f32 0.0, %v1835
      %v1837 = vpop.f32.mrb[0].mxu0
      %v1838 = vadd.f32 0.0, %v1837
      %v1839 = vpop.f32.mrb[0].mxu0
      %v1840 = vadd.f32 0.0, %v1839
      %v1841 = vpop.f32.mrb[0].mxu0
      %v1842 = vadd.f32 0.0, %v1841
      %1843 = vdwg.mxu0
      %1844 = vmatprep.subr.bf16.mxu0 %v1571
      %1845 = vmatpush1.bf16.msra.mxu0 %v1570
      %1846 = vmatprep.subr.bf16.mxu0 %v1577
      %1847 = vmatpush1.bf16.msra.mxu0 %v1576
      %1848 = vmatprep.subr.bf16.mxu0 %v1583
      %1849 = vmatpush1.bf16.msra.mxu0 %v1582
      %1850 = vmatprep.subr.bf16.mxu0 %v1589
      %1851 = vmatpush1.bf16.msra.mxu0 %v1588
      %1852 = vmatprep.subr.bf16.mxu0 %v1595
      %1853 = vmatpush1.bf16.msra.mxu0 %v1594
      %1854 = vmatprep.subr.bf16.mxu0 %v1601
      %1855 = vmatpush1.bf16.msra.mxu0 %v1600
      %1856 = vmatprep.subr.bf16.mxu0 %v1607
      %1857 = vmatpush1.bf16.msra.mxu0 %v1606
      %1858 = vmatprep.subr.bf16.mxu0 %v1613
      %1859 = vmatpush1.bf16.msra.mxu0 %v1612
      %1860 = vmatprep.subr.bf16.mxu0 %v1619
      %1861 = vmatpush1.bf16.msra.mxu0 %v1618
      %1862 = vmatprep.subr.bf16.mxu0 %v1625
      %1863 = vmatpush1.bf16.msra.mxu0 %v1624
      %1864 = vmatprep.subr.bf16.mxu0 %v1631
      %1865 = vmatpush1.bf16.msra.mxu0 %v1630
      %1866 = vmatprep.subr.bf16.mxu0 %v1637
      %1867 = vmatpush1.bf16.msra.mxu0 %v1636
      %1868 = vmatprep.subr.bf16.mxu0 %v1643
      %1869 = vmatpush1.bf16.msra.mxu0 %v1642
      %1870 = vmatprep.subr.bf16.mxu0 %v1649
      %1871 = vmatpush1.bf16.msra.mxu0 %v1648
      %1872 = vmatprep.subr.bf16.mxu0 %v1655
      %1873 = vmatpush1.bf16.msra.mxu0 %v1654
      %1874 = vmatprep.subr.bf16.mxu0 %v1661
      %1875 = vmatpush1.bf16.msra.mxu0 %v1660
      %1876 = vmatprep.mubr.bf16.mxu0 %v1277
      %1877 = vmatmul.mubr.bf16.gmra.mrb[0].mxu0 %v1276
      %v1878 = vpop.f32.mrb[0].mxu0
      %v1879 = vadd.f32 0.0, %v1878
      %v1880 = vpop.f32.mrb[0].mxu0
      %v1881 = vadd.f32 0.0, %v1880
      %v1882 = vpop.f32.mrb[0].mxu0
      %v1883 = vadd.f32 0.0, %v1882
      %v1884 = vpop.f32.mrb[0].mxu0
      %v1885 = vadd.f32 0.0, %v1884
      %1886 = vdwg.mxu0
      %s1887 = smul.u32 0, 3
      %s1888 = smul.addr %s1887, 8
      %s1889 = scalar_lea.vmem [#allocation3], %s1888
      %v1890 = vld [vmem:[%s1889] sm:$0xff]
      %v1891 = vld [vmem:[%s1889 + $0x8] sm:$0xff]
      %v1892 = vld [vmem:[%s1889 + $0x10] sm:$0xff]
      %v1893 = vld [vmem:[%s1889 + $0x18] sm:$0xff]
      %v1894 = vld [vmem:[%s1889 + $0x20] sm:$0xff]
      %v1895 = vld [vmem:[%s1889 + $0x28] sm:$0xff]
      %v1896 = vadd.f32 %v1890, %v1793
      %v1897 = vadd.f32 %v1893, %v1797
      %v1898 = vxor.u32 %v1896, 2147483648
      %v1899 = vxor.u32 %v1897, 2147483648
      %v1900 = vmul.f32 %v1898, 1.442695
      %v1901 = vpow.pop %v1900
      %v1902 = vmul.f32 %v1899, 1.442695
      %v1903 = vpow.pop %v1902
      %v1904 = vadd.f32 %v1901, 1.0
      %v1905 = vadd.f32 %v1903, 1.0
      %v1906 = vrcp.pop %v1904
      %v1907 = vmul.f32 1.0, %v1906
      %v1908 = vrcp.pop %v1905
      %v1909 = vmul.f32 1.0, %v1908
      %v1910 = vadd.f32 %v1891, %v1795
      %v1911 = vadd.f32 %v1894, %v1799
      %v1912 = vxor.u32 %v1910, 2147483648
      %v1913 = vxor.u32 %v1911, 2147483648
      %v1914 = vmul.f32 %v1912, 1.442695
      %v1915 = vpow.pop %v1914
      %v1916 = vmul.f32 %v1913, 1.442695
      %v1917 = vpow.pop %v1916
      %v1918 = vadd.f32 %v1915, 1.0
      %v1919 = vadd.f32 %v1917, 1.0
      %v1920 = vrcp.pop %v1918
      %v1921 = vmul.f32 1.0, %v1920
      %v1922 = vrcp.pop %v1919
      %v1923 = vmul.f32 1.0, %v1922
      %v1924 = vadd.f32 %v1836, %v1263
      %v1925 = vadd.f32 %v1840, %v1263
      %v1926 = vmul.f32 %v1907, %v1924
      %v1927 = vmul.f32 %v1909, %v1925
      %v1928 = vadd.f32 %v1892, %v1926
      %v1929 = vadd.f32 %v1895, %v1927
      %v1930 = vtanh.pop %v1928
      %v1931 = vtanh.pop %v1929
      %v1932 = vsub.f32 %v1272, %v1930
      %v1933 = vsub.f32 %v1274, %v1931
      %v1934 = vmul.f32 %v1921, %v1932
      %v1935 = vmul.f32 %v1923, %v1933
      %v1936 = vadd.f32 %v1930, %v1934
      %v1937 = vadd.f32 %v1931, %v1935
      %s1938 = smul.u32 6, 3
      %s1939 = smul.addr %s1938, 8
      %s1940 = scalar_lea.vmem [#allocation4], %s1939
      %v1941 = vld [vmem:[%s1940] sm:$0xff]
      %v1942 = vld [vmem:[%s1940 + $0x8] sm:$0xff]
      %v1943 = vld [vmem:[%s1940 + $0x10] sm:$0xff]
      %v1944 = vld [vmem:[%s1940 + $0x18] sm:$0xff]
      %v1945 = vld [vmem:[%s1940 + $0x20] sm:$0xff]
      %v1946 = vld [vmem:[%s1940 + $0x28] sm:$0xff]
      %v1947 = vadd.f32 %v1941, %v1838
      %v1948 = vadd.f32 %v1944, %v1842
      %v1949 = vxor.u32 %v1947, 2147483648
      %v1950 = vxor.u32 %v1948, 2147483648
      %v1951 = vmul.f32 %v1949, 1.442695
      %v1952 = vpow.pop %v1951
      %v1953 = vmul.f32 %v1950, 1.442695
      %v1954 = vpow.pop %v1953
      %v1955 = vadd.f32 %v1952, 1.0
      %v1956 = vadd.f32 %v1954, 1.0
      %v1957 = vrcp.pop %v1955
      %v1958 = vmul.f32 1.0, %v1957
      %v1959 = vrcp.pop %v1956
      %v1960 = vmul.f32 1.0, %v1959
      %v1961 = vadd.f32 %v1942, %v1879
      %v1962 = vadd.f32 %v1945, %v1883
      %v1963 = vxor.u32 %v1961, 2147483648
      %v1964 = vxor.u32 %v1962, 2147483648
      %v1965 = vmul.f32 %v1963, 1.442695
      %v1966 = vpow.pop %v1965
      %v1967 = vmul.f32 %v1964, 1.442695
      %v1968 = vpow.pop %v1967
      %v1969 = vadd.f32 %v1966, 1.0
      %v1970 = vadd.f32 %v1968, 1.0
      %v1971 = vrcp.pop %v1969
      %v1972 = vmul.f32 1.0, %v1971
      %v1973 = vrcp.pop %v1970
      %v1974 = vmul.f32 1.0, %v1973
      %v1975 = vadd.f32 %v1881, %v1270
      %v1976 = vadd.f32 %v1885, %v1270
      %v1977 = vmul.f32 %v1958, %v1975
      %v1978 = vmul.f32 %v1960, %v1976
      %v1979 = vadd.f32 %v1943, %v1977
      %v1980 = vadd.f32 %v1946, %v1978
      %v1981 = vtanh.pop %v1979
      %v1982 = vtanh.pop %v1980
      %v1983 = vsub.f32 %v1273, %v1981
      %v1984 = vsub.f32 %v1275, %v1982
      %v1985 = vmul.f32 %v1972, %v1983
      %v1986 = vmul.f32 %v1974, %v1984
      %v1987 = vadd.f32 %v1981, %v1985
      %v1988 = vadd.f32 %v1982, %v1986
      %v1989 = vpack.c.bf16 %v1937, %v1936
      %v1991 = vunpack.c.l.b16 %v1989
      %v1992 = vunpack.c.h.b16 %v1989
      %v1993 = vpack.c.b16 %v1991, %v1991
      %v1994 = vpack.c.b16 %v1992, %v1992
      %1997 = vst [vmem:[%s401] sm:$0xf] %v1993
      %1998 = vst [vmem:[%s401 + $0x4] sm:$0xf] %v1994
      %v1999 = vpack.c.bf16 %v1988, %v1987
      %v2001 = vunpack.c.l.b16 %v1999
      %v2002 = vunpack.c.h.b16 %v1999
      %v2003 = vpack.c.b16 %v2001, %v2001
      %v2004 = vpack.c.b16 %v2002, %v2002
      %s2007 = scalar_lea.vmem %s408, 24
      %2008 = vst [vmem:[%s2007] sm:$0xf] %v2003
      %2009 = vst [vmem:[%s2007 + $0x4] sm:$0xf] %v2004
      %2010 = vmatprep.subr.bf16.mxu0 %v1567
      %2011 = vmatpush1.bf16.msra.mxu0 %v1566
      %2012 = vmatprep.subr.bf16.mxu0 %v1573
      %2013 = vmatpush1.bf16.msra.mxu0 %v1572
      %2014 = vmatprep.subr.bf16.mxu0 %v1579
      %2015 = vmatpush1.bf16.msra.mxu0 %v1578
      %2016 = vmatprep.subr.bf16.mxu0 %v1585
      %2017 = vmatpush1.bf16.msra.mxu0 %v1584
      %2018 = vmatprep.subr.bf16.mxu0 %v1591
      %2019 = vmatpush1.bf16.msra.mxu0 %v1590
      %2020 = vmatprep.subr.bf16.mxu0 %v1597
      %2021 = vmatpush1.bf16.msra.mxu0 %v1596
      %2022 = vmatprep.subr.bf16.mxu0 %v1603
      %2023 = vmatpush1.bf16.msra.mxu0 %v1602
      %2024 = vmatprep.subr.bf16.mxu0 %v1609
      %2025 = vmatpush1.bf16.msra.mxu0 %v1608
      %2026 = vmatprep.subr.bf16.mxu0 %v1615
      %2027 = vmatpush1.bf16.msra.mxu0 %v1614
      %2028 = vmatprep.subr.bf16.mxu0 %v1621
      %2029 = vmatpush1.bf16.msra.mxu0 %v1620
      %2030 = vmatprep.subr.bf16.mxu0 %v1627
      %2031 = vmatpush1.bf16.msra.mxu0 %v1626
      %2032 = vmatprep.subr.bf16.mxu0 %v1633
      %2033 = vmatpush1.bf16.msra.mxu0 %v1632
      %2034 = vmatprep.subr.bf16.mxu0 %v1639
      %2035 = vmatpush1.bf16.msra.mxu0 %v1638
      %2036 = vmatprep.subr.bf16.mxu0 %v1645
      %2037 = vmatpush1.bf16.msra.mxu0 %v1644
      %2038 = vmatprep.subr.bf16.mxu0 %v1651
      %2039 = vmatpush1.bf16.msra.mxu0 %v1650
      %2040 = vmatprep.subr.bf16.mxu0 %v1657
      %2041 = vmatpush1.bf16.msra.mxu0 %v1656
      %2042 = vmatprep.mubr.bf16.mxu0 %v1999
      %2043 = vmatmul.mubr.bf16.gmra.mrb[0].mxu0 %v1989
      %v2044 = vpop.f32.mrb[0].mxu0
      %v2045 = vadd.f32 0.0, %v2044
      %v2046 = vpop.f32.mrb[0].mxu0
      %v2047 = vadd.f32 0.0, %v2046
      %v2048 = vpop.f32.mrb[0].mxu0
      %v2049 = vadd.f32 0.0, %v2048
      %v2050 = vpop.f32.mrb[0].mxu0
      %v2051 = vadd.f32 0.0, %v2050
      %2052 = vdwg.mxu0
      %2053 = vmatprep.subr.bf16.mxu0 %v1569
      %2054 = vmatpush1.bf16.msra.mxu0 %v1568
      %2055 = vmatprep.subr.bf16.mxu0 %v1575
      %2056 = vmatpush1.bf16.msra.mxu0 %v1574
      %2057 = vmatprep.subr.bf16.mxu0 %v1581
      %2058 = vmatpush1.bf16.msra.mxu0 %v1580
      %2059 = vmatprep.subr.bf16.mxu0 %v1587
      %2060 = vmatpush1.bf16.msra.mxu0 %v1586
      %2061 = vmatprep.subr.bf16.mxu0 %v1593
      %2062 = vmatpush1.bf16.msra.mxu0 %v1592
      %2063 = vmatprep.subr.bf16.mxu0 %v1599
      %2064 = vmatpush1.bf16.msra.mxu0 %v1598
      %2065 = vmatprep.subr.bf16.mxu0 %v1605
      %2066 = vmatpush1.bf16.msra.mxu0 %v1604
      %2067 = vmatprep.subr.bf16.mxu0 %v1611
      %2068 = vmatpush1.bf16.msra.mxu0 %v1610
      %2069 = vmatprep.subr.bf16.mxu0 %v1617
      %2070 = vmatpush1.bf16.msra.mxu0 %v1616
      %2071 = vmatprep.subr.bf16.mxu0 %v1623
      %2072 = vmatpush1.bf16.msra.mxu0 %v1622
      %2073 = vmatprep.subr.bf16.mxu0 %v1629
      %2074 = vmatpush1.bf16.msra.mxu0 %v1628
      %2075 = vmatprep.subr.bf16.mxu0 %v1635
      %2076 = vmatpush1.bf16.msra.mxu0 %v1634
      %2077 = vmatprep.subr.bf16.mxu0 %v1641
      %2078 = vmatpush1.bf16.msra.mxu0 %v1640
      %2079 = vmatprep.subr.bf16.mxu0 %v1647
      %2080 = vmatpush1.bf16.msra.mxu0 %v1646
      %2081 = vmatprep.subr.bf16.mxu0 %v1653
      %2082 = vmatpush1.bf16.msra.mxu0 %v1652
      %2083 = vmatprep.subr.bf16.mxu0 %v1659
      %2084 = vmatpush1.bf16.msra.mxu0 %v1658
      %2085 = vmatprep.mubr.bf16.mxu0 %v1999
      %2086 = vmatmul.mubr.bf16.gmra.mrb[0].mxu0 %v1989
      %v2087 = vpop.f32.mrb[0].mxu0
      %v2088 = vadd.f32 0.0, %v2087
      %v2089 = vpop.f32.mrb[0].mxu0
      %v2090 = vadd.f32 0.0, %v2089
      %v2091 = vpop.f32.mrb[0].mxu0
      %v2092 = vadd.f32 0.0, %v2091
      %v2093 = vpop.f32.mrb[0].mxu0
      %v2094 = vadd.f32 0.0, %v2093
      %2095 = vdwg.mxu0
      %2096 = vmatprep.subr.bf16.mxu0 %v1571
      %2097 = vmatpush1.bf16.msra.mxu0 %v1570
      %2098 = vmatprep.subr.bf16.mxu0 %v1577
      %2099 = vmatpush1.bf16.msra.mxu0 %v1576
      %2100 = vmatprep.subr.bf16.mxu0 %v1583
      %2101 = vmatpush1.bf16.msra.mxu0 %v1582
      %2102 = vmatprep.subr.bf16.mxu0 %v1589
      %2103 = vmatpush1.bf16.msra.mxu0 %v1588
      %2104 = vmatprep.subr.bf16.mxu0 %v1595
      %2105 = vmatpush1.bf16.msra.mxu0 %v1594
      %2106 = vmatprep.subr.bf16.mxu0 %v1601
      %2107 = vmatpush1.bf16.msra.mxu0 %v1600
      %2108 = vmatprep.subr.bf16.mxu0 %v1607
      %2109 = vmatpush1.bf16.msra.mxu0 %v1606
      %2110 = vmatprep.subr.bf16.mxu0 %v1613
      %2111 = vmatpush1.bf16.msra.mxu0 %v1612
      %2112 = vmatprep.subr.bf16.mxu0 %v1619
      %2113 = vmatpush1.bf16.msra.mxu0 %v1618
      %2114 = vmatprep.subr.bf16.mxu0 %v1625
      %2115 = vmatpush1.bf16.msra.mxu0 %v1624
      %2116 = vmatprep.subr.bf16.mxu0 %v1631
      %2117 = vmatpush1.bf16.msra.mxu0 %v1630
      %2118 = vmatprep.subr.bf16.mxu0 %v1637
      %2119 = vmatpush1.bf16.msra.mxu0 %v1636
      %2120 = vmatprep.subr.bf16.mxu0 %v1643
      %2121 = vmatpush1.bf16.msra.mxu0 %v1642
      %2122 = vmatprep.subr.bf16.mxu0 %v1649
      %2123 = vmatpush1.bf16.msra.mxu0 %v1648
      %2124 = vmatprep.subr.bf16.mxu0 %v1655
      %2125 = vmatpush1.bf16.msra.mxu0 %v1654
      %2126 = vmatprep.subr.bf16.mxu0 %v1661
      %2127 = vmatpush1.bf16.msra.mxu0 %v1660
      %2128 = vmatprep.mubr.bf16.mxu0 %v1999
      %2129 = vmatmul.mubr.bf16.gmra.mrb[0].mxu0 %v1989
      %v2130 = vpop.f32.mrb[0].mxu0
      %v2131 = vadd.f32 0.0, %v2130
      %v2132 = vpop.f32.mrb[0].mxu0
      %v2133 = vadd.f32 0.0, %v2132
      %v2134 = vpop.f32.mrb[0].mxu0
      %v2135 = vadd.f32 0.0, %v2134
      %v2136 = vpop.f32.mrb[0].mxu0
      %v2137 = vadd.f32 0.0, %v2136
      %2138 = vdwg.mxu0
      %s2139 = smul.u32 2, 3
      %s2140 = smul.addr %s2139, 8
      %s2141 = scalar_lea.vmem [#allocation3], %s2140
      %v2142 = vld [vmem:[%s2141] sm:$0xff]
      %v2143 = vld [vmem:[%s2141 + $0x8] sm:$0xff]
      %v2144 = vld [vmem:[%s2141 + $0x10] sm:$0xff]
      %v2145 = vld [vmem:[%s2141 + $0x18] sm:$0xff]
      %v2146 = vld [vmem:[%s2141 + $0x20] sm:$0xff]
      %v2147 = vld [vmem:[%s2141 + $0x28] sm:$0xff]
      %v2148 = vadd.f32 %v2142, %v2045
      %v2149 = vadd.f32 %v2145, %v2049
      %v2150 = vxor.u32 %v2148, 2147483648
      %v2151 = vxor.u32 %v2149, 2147483648
      %v2152 = vmul.f32 %v2150, 1.442695
      %v2153 = vpow.pop %v2152
      %v2154 = vmul.f32 %v2151, 1.442695
      %v2155 = vpow.pop %v2154
      %v2156 = vadd.f32 %v2153, 1.0
      %v2157 = vadd.f32 %v2155, 1.0
      %v2158 = vrcp.pop %v2156
      %v2159 = vmul.f32 1.0, %v2158
      %v2160 = vrcp.pop %v2157
      %v2161 = vmul.f32 1.0, %v2160
      %v2162 = vadd.f32 %v2143, %v2047
      %v2163 = vadd.f32 %v2146, %v2051
      %v2164 = vxor.u32 %v2162, 2147483648
      %v2165 = vxor.u32 %v2163, 2147483648
      %v2166 = vmul.f32 %v2164, 1.442695
      %v2167 = vpow.pop %v2166
      %v2168 = vmul.f32 %v2165, 1.442695
      %v2169 = vpow.pop %v2168
      %v2170 = vadd.f32 %v2167, 1.0
      %v2171 = vadd.f32 %v2169, 1.0
      %v2172 = vrcp.pop %v2170
      %v2173 = vmul.f32 1.0, %v2172
      %v2174 = vrcp.pop %v2171
      %v2175 = vmul.f32 1.0, %v2174
      %v2176 = vadd.f32 %v2088, %v1263
      %v2177 = vadd.f32 %v2092, %v1263
      %v2178 = vmul.f32 %v2159, %v2176
      %v2179 = vmul.f32 %v2161, %v2177
      %v2180 = vadd.f32 %v2144, %v2178
      %v2181 = vadd.f32 %v2147, %v2179
      %v2182 = vtanh.pop %v2180
      %v2183 = vtanh.pop %v2181
      %v2184 = vsub.f32 %v1936, %v2182
      %v2185 = vsub.f32 %v1937, %v2183
      %v2186 = vmul.f32 %v2173, %v2184
      %v2187 = vmul.f32 %v2175, %v2185
      %v2188 = vadd.f32 %v2182, %v2186
      %v2189 = vadd.f32 %v2183, %v2187
      %s2190 = smul.u32 4, 3
      %s2191 = smul.addr %s2190, 8
      %s2192 = scalar_lea.vmem [#allocation4], %s2191
      %v2193 = vld [vmem:[%s2192] sm:$0xff]
      %v2194 = vld [vmem:[%s2192 + $0x8] sm:$0xff]
      %v2195 = vld [vmem:[%s2192 + $0x10] sm:$0xff]
      %v2196 = vld [vmem:[%s2192 + $0x18] sm:$0xff]
      %v2197 = vld [vmem:[%s2192 + $0x20] sm:$0xff]
      %v2198 = vld [vmem:[%s2192 + $0x28] sm:$0xff]
      %v2199 = vadd.f32 %v2193, %v2090
      %v2200 = vadd.f32 %v2196, %v2094
      %v2201 = vxor.u32 %v2199, 2147483648
      %v2202 = vxor.u32 %v2200, 2147483648
      %v2203 = vmul.f32 %v2201, 1.442695
      %v2204 = vpow.pop %v2203
      %v2205 = vmul.f32 %v2202, 1.442695
      %v2206 = vpow.pop %v2205
      %v2207 = vadd.f32 %v2204, 1.0
      %v2208 = vadd.f32 %v2206, 1.0
      %v2209 = vrcp.pop %v2207
      %v2210 = vmul.f32 1.0, %v2209
      %v2211 = vrcp.pop %v2208
      %v2212 = vmul.f32 1.0, %v2211
      %v2213 = vadd.f32 %v2194, %v2131
      %v2214 = vadd.f32 %v2197, %v2135
      %v2215 = vxor.u32 %v2213, 2147483648
      %v2216 = vxor.u32 %v2214, 2147483648
      %v2217 = vmul.f32 %v2215, 1.442695
      %v2218 = vpow.pop %v2217
      %v2219 = vmul.f32 %v2216, 1.442695
      %v2220 = vpow.pop %v2219
      %v2221 = vadd.f32 %v2218, 1.0
      %v2222 = vadd.f32 %v2220, 1.0
      %v2223 = vrcp.pop %v2221
      %v2224 = vmul.f32 1.0, %v2223
      %v2225 = vrcp.pop %v2222
      %v2226 = vmul.f32 1.0, %v2225
      %v2227 = vadd.f32 %v2133, %v1270
      %v2228 = vadd.f32 %v2137, %v1270
      %v2229 = vmul.f32 %v2210, %v2227
      %v2230 = vmul.f32 %v2212, %v2228
      %v2231 = vadd.f32 %v2195, %v2229
      %v2232 = vadd.f32 %v2198, %v2230
      %v2233 = vtanh.pop %v2231
      %v2234 = vtanh.pop %v2232
      %v2235 = vsub.f32 %v1987, %v2233
      %v2236 = vsub.f32 %v1988, %v2234
      %v2237 = vmul.f32 %v2224, %v2235
      %v2238 = vmul.f32 %v2226, %v2236
      %v2239 = vadd.f32 %v2233, %v2237
      %v2240 = vadd.f32 %v2234, %v2238
      %v2241 = vpack.c.bf16 %v2189, %v2188
      %v2243 = vunpack.c.l.b16 %v2241
      %v2244 = vunpack.c.h.b16 %v2241
      %v2245 = vpack.c.b16 %v2243, %v2243
      %v2246 = vpack.c.b16 %v2244, %v2244
      %s2249 = scalar_lea.vmem %s401, 8
      %2250 = vst [vmem:[%s2249] sm:$0xf] %v2245
      %2251 = vst [vmem:[%s2249 + $0x4] sm:$0xf] %v2246
      %v2252 = vpack.c.bf16 %v2240, %v2239
      %v2254 = vunpack.c.l.b16 %v2252
      %v2255 = vunpack.c.h.b16 %v2252
      %v2256 = vpack.c.b16 %v2254, %v2254
      %v2257 = vpack.c.b16 %v2255, %v2255
      %s2260 = scalar_lea.vmem %s408, 16
      %2261 = vst [vmem:[%s2260] sm:$0xf] %v2256
      %2262 = vst [vmem:[%s2260 + $0x4] sm:$0xf] %v2257
      %2263 = vmatprep.subr.bf16.mxu0 %v1567
      %2264 = vmatpush1.bf16.msra.mxu0 %v1566
      %2265 = vmatprep.subr.bf16.mxu0 %v1573
      %2266 = vmatpush1.bf16.msra.mxu0 %v1572
      %2267 = vmatprep.subr.bf16.mxu0 %v1579
      %2268 = vmatpush1.bf16.msra.mxu0 %v1578
      %2269 = vmatprep.subr.bf16.mxu0 %v1585
      %2270 = vmatpush1.bf16.msra.mxu0 %v1584
      %2271 = vmatprep.subr.bf16.mxu0 %v1591
      %2272 = vmatpush1.bf16.msra.mxu0 %v1590
      %2273 = vmatprep.subr.bf16.mxu0 %v1597
      %2274 = vmatpush1.bf16.msra.mxu0 %v1596
      %2275 = vmatprep.subr.bf16.mxu0 %v1603
      %2276 = vmatpush1.bf16.msra.mxu0 %v1602
      %2277 = vmatprep.subr.bf16.mxu0 %v1609
      %2278 = vmatpush1.bf16.msra.mxu0 %v1608
      %2279 = vmatprep.subr.bf16.mxu0 %v1615
      %2280 = vmatpush1.bf16.msra.mxu0 %v1614
      %2281 = vmatprep.subr.bf16.mxu0 %v1621
      %2282 = vmatpush1.bf16.msra.mxu0 %v1620
      %2283 = vmatprep.subr.bf16.mxu0 %v1627
      %2284 = vmatpush1.bf16.msra.mxu0 %v1626
      %2285 = vmatprep.subr.bf16.mxu0 %v1633
      %2286 = vmatpush1.bf16.msra.mxu0 %v1632
      %2287 = vmatprep.subr.bf16.mxu0 %v1639
      %2288 = vmatpush1.bf16.msra.mxu0 %v1638
      %2289 = vmatprep.subr.bf16.mxu0 %v1645
      %2290 = vmatpush1.bf16.msra.mxu0 %v1644
      %2291 = vmatprep.subr.bf16.mxu0 %v1651
      %2292 = vmatpush1.bf16.msra.mxu0 %v1650
      %2293 = vmatprep.subr.bf16.mxu0 %v1657
      %2294 = vmatpush1.bf16.msra.mxu0 %v1656
      %2295 = vmatprep.mubr.bf16.mxu0 %v2252
      %2296 = vmatmul.mubr.bf16.gmra.mrb[0].mxu0 %v2241
      %v2297 = vpop.f32.mrb[0].mxu0
      %v2298 = vadd.f32 0.0, %v2297
      %v2299 = vpop.f32.mrb[0].mxu0
      %v2300 = vadd.f32 0.0, %v2299
      %v2301 = vpop.f32.mrb[0].mxu0
      %v2302 = vadd.f32 0.0, %v2301
      %v2303 = vpop.f32.mrb[0].mxu0
      %v2304 = vadd.f32 0.0, %v2303
      %2305 = vdwg.mxu0
      %2306 = vmatprep.subr.bf16.mxu0 %v1569
      %2307 = vmatpush1.bf16.msra.mxu0 %v1568
      %2308 = vmatprep.subr.bf16.mxu0 %v1575
      %2309 = vmatpush1.bf16.msra.mxu0 %v1574
      %2310 = vmatprep.subr.bf16.mxu0 %v1581
      %2311 = vmatpush1.bf16.msra.mxu0 %v1580
      %2312 = vmatprep.subr.bf16.mxu0 %v1587
      %2313 = vmatpush1.bf16.msra.mxu0 %v1586
      %2314 = vmatprep.subr.bf16.mxu0 %v1593
      %2315 = vmatpush1.bf16.msra.mxu0 %v1592
      %2316 = vmatprep.subr.bf16.mxu0 %v1599
      %2317 = vmatpush1.bf16.msra.mxu0 %v1598
      %2318 = vmatprep.subr.bf16.mxu0 %v1605
      %2319 = vmatpush1.bf16.msra.mxu0 %v1604
      %2320 = vmatprep.subr.bf16.mxu0 %v1611
      %2321 = vmatpush1.bf16.msra.mxu0 %v1610
      %2322 = vmatprep.subr.bf16.mxu0 %v1617
      %2323 = vmatpush1.bf16.msra.mxu0 %v1616
      %2324 = vmatprep.subr.bf16.mxu0 %v1623
      %2325 = vmatpush1.bf16.msra.mxu0 %v1622
      %2326 = vmatprep.subr.bf16.mxu0 %v1629
      %2327 = vmatpush1.bf16.msra.mxu0 %v1628
      %2328 = vmatprep.subr.bf16.mxu0 %v1635
      %2329 = vmatpush1.bf16.msra.mxu0 %v1634
      %2330 = vmatprep.subr.bf16.mxu0 %v1641
      %2331 = vmatpush1.bf16.msra.mxu0 %v1640
      %2332 = vmatprep.subr.bf16.mxu0 %v1647
      %2333 = vmatpush1.bf16.msra.mxu0 %v1646
      %2334 = vmatprep.subr.bf16.mxu0 %v1653
      %2335 = vmatpush1.bf16.msra.mxu0 %v1652
      %2336 = vmatprep.subr.bf16.mxu0 %v1659
      %2337 = vmatpush1.bf16.msra.mxu0 %v1658
      %2338 = vmatprep.mubr.bf16.mxu0 %v2252
      %2339 = vmatmul.mubr.bf16.gmra.mrb[0].mxu0 %v2241
      %v2340 = vpop.f32.mrb[0].mxu0
      %v2341 = vadd.f32 0.0, %v2340
      %v2342 = vpop.f32.mrb[0].mxu0
      %v2343 = vadd.f32 0.0, %v2342
      %v2344 = vpop.f32.mrb[0].mxu0
      %v2345 = vadd.f32 0.0, %v2344
      %v2346 = vpop.f32.mrb[0].mxu0
      %v2347 = vadd.f32 0.0, %v2346
      %2348 = vdwg.mxu0
      %2349 = vmatprep.subr.bf16.mxu0 %v1571
      %2350 = vmatpush1.bf16.msra.mxu0 %v1570
      %2351 = vmatprep.subr.bf16.mxu0 %v1577
      %2352 = vmatpush1.bf16.msra.mxu0 %v1576
      %2353 = vmatprep.subr.bf16.mxu0 %v1583
      %2354 = vmatpush1.bf16.msra.mxu0 %v1582
      %2355 = vmatprep.subr.bf16.mxu0 %v1589
      %2356 = vmatpush1.bf16.msra.mxu0 %v1588
      %2357 = vmatprep.subr.bf16.mxu0 %v1595
      %2358 = vmatpush1.bf16.msra.mxu0 %v1594
      %2359 = vmatprep.subr.bf16.mxu0 %v1601
      %2360 = vmatpush1.bf16.msra.mxu0 %v1600
      %2361 = vmatprep.subr.bf16.mxu0 %v1607
      %2362 = vmatpush1.bf16.msra.mxu0 %v1606
      %2363 = vmatprep.subr.bf16.mxu0 %v1613
      %2364 = vmatpush1.bf16.msra.mxu0 %v1612
      %2365 = vmatprep.subr.bf16.mxu0 %v1619
      %2366 = vmatpush1.bf16.msra.mxu0 %v1618
      %2367 = vmatprep.subr.bf16.mxu0 %v1625
      %2368 = vmatpush1.bf16.msra.mxu0 %v1624
      %2369 = vmatprep.subr.bf16.mxu0 %v1631
      %2370 = vmatpush1.bf16.msra.mxu0 %v1630
      %2371 = vmatprep.subr.bf16.mxu0 %v1637
      %2372 = vmatpush1.bf16.msra.mxu0 %v1636
      %2373 = vmatprep.subr.bf16.mxu0 %v1643
      %2374 = vmatpush1.bf16.msra.mxu0 %v1642
      %2375 = vmatprep.subr.bf16.mxu0 %v1649
      %2376 = vmatpush1.bf16.msra.mxu0 %v1648
      %2377 = vmatprep.subr.bf16.mxu0 %v1655
      %2378 = vmatpush1.bf16.msra.mxu0 %v1654
      %2379 = vmatprep.subr.bf16.mxu0 %v1661
      %2380 = vmatpush1.bf16.msra.mxu0 %v1660
      %2381 = vmatprep.mubr.bf16.mxu0 %v2252
      %2382 = vmatmul.mubr.bf16.gmra.mrb[0].mxu0 %v2241
      %v2383 = vpop.f32.mrb[0].mxu0
      %v2384 = vadd.f32 0.0, %v2383
      %v2385 = vpop.f32.mrb[0].mxu0
      %v2386 = vadd.f32 0.0, %v2385
      %v2387 = vpop.f32.mrb[0].mxu0
      %v2388 = vadd.f32 0.0, %v2387
      %v2389 = vpop.f32.mrb[0].mxu0
      %v2390 = vadd.f32 0.0, %v2389
      %2391 = vdwg.mxu0
      %s2392 = smul.addr %s2190, 8
      %s2393 = scalar_lea.vmem [#allocation3], %s2392
      %v2394 = vld [vmem:[%s2393] sm:$0xff]
      %v2395 = vld [vmem:[%s2393 + $0x8] sm:$0xff]
      %v2396 = vld [vmem:[%s2393 + $0x10] sm:$0xff]
      %v2397 = vld [vmem:[%s2393 + $0x18] sm:$0xff]
      %v2398 = vld [vmem:[%s2393 + $0x20] sm:$0xff]
      %v2399 = vld [vmem:[%s2393 + $0x28] sm:$0xff]
      %v2400 = vadd.f32 %v2394, %v2298
      %v2401 = vadd.f32 %v2397, %v2302
      %v2402 = vxor.u32 %v2400, 2147483648
      %v2403 = vxor.u32 %v2401, 2147483648
      %v2404 = vmul.f32 %v2402, 1.442695
      %v2405 = vpow.pop %v2404
      %v2406 = vmul.f32 %v2403, 1.442695
      %v2407 = vpow.pop %v2406
      %v2408 = vadd.f32 %v2405, 1.0
      %v2409 = vadd.f32 %v2407, 1.0
      %v2410 = vrcp.pop %v2408
      %v2411 = vmul.f32 1.0, %v2410
      %v2412 = vrcp.pop %v2409
      %v2413 = vmul.f32 1.0, %v2412
      %v2414 = vadd.f32 %v2395, %v2300
      %v2415 = vadd.f32 %v2398, %v2304
      %v2416 = vxor.u32 %v2414, 2147483648
      %v2417 = vxor.u32 %v2415, 2147483648
      %v2418 = vmul.f32 %v2416, 1.442695
      %v2419 = vpow.pop %v2418
      %v2420 = vmul.f32 %v2417, 1.442695
      %v2421 = vpow.pop %v2420
      %v2422 = vadd.f32 %v2419, 1.0
      %v2423 = vadd.f32 %v2421, 1.0
      %v2424 = vrcp.pop %v2422
      %v2425 = vmul.f32 1.0, %v2424
      %v2426 = vrcp.pop %v2423
      %v2427 = vmul.f32 1.0, %v2426
      %v2428 = vadd.f32 %v2341, %v1263
      %v2429 = vadd.f32 %v2345, %v1263
      %v2430 = vmul.f32 %v2411, %v2428
      %v2431 = vmul.f32 %v2413, %v2429
      %v2432 = vadd.f32 %v2396, %v2430
      %v2433 = vadd.f32 %v2399, %v2431
      %v2434 = vtanh.pop %v2432
      %v2435 = vtanh.pop %v2433
      %v2436 = vsub.f32 %v2188, %v2434
      %v2437 = vsub.f32 %v2189, %v2435
      %v2438 = vmul.f32 %v2425, %v2436
      %v2439 = vmul.f32 %v2427, %v2437
      %v2440 = vadd.f32 %v2434, %v2438
      %v2441 = vadd.f32 %v2435, %v2439
      %s2442 = smul.addr %s2139, 8
      %s2443 = scalar_lea.vmem [#allocation4], %s2442
      %v2444 = vld [vmem:[%s2443] sm:$0xff]
      %v2445 = vld [vmem:[%s2443 + $0x8] sm:$0xff]
      %v2446 = vld [vmem:[%s2443 + $0x10] sm:$0xff]
      %v2447 = vld [vmem:[%s2443 + $0x18] sm:$0xff]
      %v2448 = vld [vmem:[%s2443 + $0x20] sm:$0xff]
      %v2449 = vld [vmem:[%s2443 + $0x28] sm:$0xff]
      %v2450 = vadd.f32 %v2444, %v2343
      %v2451 = vadd.f32 %v2447, %v2347
      %v2452 = vxor.u32 %v2450, 2147483648
      %v2453 = vxor.u32 %v2451, 2147483648
      %v2454 = vmul.f32 %v2452, 1.442695
      %v2455 = vpow.pop %v2454
      %v2456 = vmul.f32 %v2453, 1.442695
      %v2457 = vpow.pop %v2456
      %v2458 = vadd.f32 %v2455, 1.0
      %v2459 = vadd.f32 %v2457, 1.0
      %v2460 = vrcp.pop %v2458
      %v2461 = vmul.f32 1.0, %v2460
      %v2462 = vrcp.pop %v2459
      %v2463 = vmul.f32 1.0, %v2462
      %v2464 = vadd.f32 %v2445, %v2384
      %v2465 = vadd.f32 %v2448, %v2388
      %v2466 = vxor.u32 %v2464, 2147483648
      %v2467 = vxor.u32 %v2465, 2147483648
      %v2468 = vmul.f32 %v2466, 1.442695
      %v2469 = vpow.pop %v2468
      %v2470 = vmul.f32 %v2467, 1.442695
      %v2471 = vpow.pop %v2470
      %v2472 = vadd.f32 %v2469, 1.0
      %v2473 = vadd.f32 %v2471, 1.0
      %v2474 = vrcp.pop %v2472
      %v2475 = vmul.f32 1.0, %v2474
      %v2476 = vrcp.pop %v2473
      %v2477 = vmul.f32 1.0, %v2476
      %v2478 = vadd.f32 %v2386, %v1270
      %v2479 = vadd.f32 %v2390, %v1270
      %v2480 = vmul.f32 %v2461, %v2478
      %v2481 = vmul.f32 %v2463, %v2479
      %v2482 = vadd.f32 %v2446, %v2480
      %v2483 = vadd.f32 %v2449, %v2481
      %v2484 = vtanh.pop %v2482
      %v2485 = vtanh.pop %v2483
      %v2486 = vsub.f32 %v2239, %v2484
      %v2487 = vsub.f32 %v2240, %v2485
      %v2488 = vmul.f32 %v2475, %v2486
      %v2489 = vmul.f32 %v2477, %v2487
      %v2490 = vadd.f32 %v2484, %v2488
      %v2491 = vadd.f32 %v2485, %v2489
      %v2492 = vpack.c.bf16 %v2441, %v2440
      %v2494 = vunpack.c.l.b16 %v2492
      %v2495 = vunpack.c.h.b16 %v2492
      %v2496 = vpack.c.b16 %v2494, %v2494
      %v2497 = vpack.c.b16 %v2495, %v2495
      %s2500 = scalar_lea.vmem %s401, 16
      %2501 = vst [vmem:[%s2500] sm:$0xf] %v2496
      %2502 = vst [vmem:[%s2500 + $0x4] sm:$0xf] %v2497
      %v2503 = vpack.c.bf16 %v2491, %v2490
      %v2505 = vunpack.c.l.b16 %v2503
      %v2506 = vunpack.c.h.b16 %v2503
      %v2507 = vpack.c.b16 %v2505, %v2505
      %v2508 = vpack.c.b16 %v2506, %v2506
      %s2511 = scalar_lea.vmem %s408, 8
      %2512 = vst [vmem:[%s2511] sm:$0xf] %v2507
      %2513 = vst [vmem:[%s2511 + $0x4] sm:$0xf] %v2508
      %2514 = vmatprep.subr.bf16.mxu0 %v1567
      %2515 = vmatpush1.bf16.msra.mxu0 %v1566
      %2516 = vmatprep.subr.bf16.mxu0 %v1573
      %2517 = vmatpush1.bf16.msra.mxu0 %v1572
      %2518 = vmatprep.subr.bf16.mxu0 %v1579
      %2519 = vmatpush1.bf16.msra.mxu0 %v1578
      %2520 = vmatprep.subr.bf16.mxu0 %v1585
      %2521 = vmatpush1.bf16.msra.mxu0 %v1584
      %2522 = vmatprep.subr.bf16.mxu0 %v1591
      %2523 = vmatpush1.bf16.msra.mxu0 %v1590
      %2524 = vmatprep.subr.bf16.mxu0 %v1597
      %2525 = vmatpush1.bf16.msra.mxu0 %v1596
      %2526 = vmatprep.subr.bf16.mxu0 %v1603
      %2527 = vmatpush1.bf16.msra.mxu0 %v1602
      %2528 = vmatprep.subr.bf16.mxu0 %v1609
      %2529 = vmatpush1.bf16.msra.mxu0 %v1608
      %2530 = vmatprep.subr.bf16.mxu0 %v1615
      %2531 = vmatpush1.bf16.msra.mxu0 %v1614
      %2532 = vmatprep.subr.bf16.mxu0 %v1621
      %2533 = vmatpush1.bf16.msra.mxu0 %v1620
      %2534 = vmatprep.subr.bf16.mxu0 %v1627
      %2535 = vmatpush1.bf16.msra.mxu0 %v1626
      %2536 = vmatprep.subr.bf16.mxu0 %v1633
      %2537 = vmatpush1.bf16.msra.mxu0 %v1632
      %2538 = vmatprep.subr.bf16.mxu0 %v1639
      %2539 = vmatpush1.bf16.msra.mxu0 %v1638
      %2540 = vmatprep.subr.bf16.mxu0 %v1645
      %2541 = vmatpush1.bf16.msra.mxu0 %v1644
      %2542 = vmatprep.subr.bf16.mxu0 %v1651
      %2543 = vmatpush1.bf16.msra.mxu0 %v1650
      %2544 = vmatprep.subr.bf16.mxu0 %v1657
      %2545 = vmatpush1.bf16.msra.mxu0 %v1656
      %2546 = vmatprep.mubr.bf16.mxu0 %v2503
      %2547 = vmatmul.mubr.bf16.gmra.mrb[0].mxu0 %v2492
      %v2548 = vpop.f32.mrb[0].mxu0
      %v2549 = vadd.f32 0.0, %v2548
      %v2550 = vpop.f32.mrb[0].mxu0
      %v2551 = vadd.f32 0.0, %v2550
      %v2552 = vpop.f32.mrb[0].mxu0
      %v2553 = vadd.f32 0.0, %v2552
      %v2554 = vpop.f32.mrb[0].mxu0
      %v2555 = vadd.f32 0.0, %v2554
      %2556 = vdwg.mxu0
      %2557 = vmatprep.subr.bf16.mxu0 %v1569
      %2558 = vmatpush1.bf16.msra.mxu0 %v1568
      %2559 = vmatprep.subr.bf16.mxu0 %v1575
      %2560 = vmatpush1.bf16.msra.mxu0 %v1574
      %2561 = vmatprep.subr.bf16.mxu0 %v1581
      %2562 = vmatpush1.bf16.msra.mxu0 %v1580
      %2563 = vmatprep.subr.bf16.mxu0 %v1587
      %2564 = vmatpush1.bf16.msra.mxu0 %v1586
      %2565 = vmatprep.subr.bf16.mxu0 %v1593
      %2566 = vmatpush1.bf16.msra.mxu0 %v1592
      %2567 = vmatprep.subr.bf16.mxu0 %v1599
      %2568 = vmatpush1.bf16.msra.mxu0 %v1598
      %2569 = vmatprep.subr.bf16.mxu0 %v1605
      %2570 = vmatpush1.bf16.msra.mxu0 %v1604
      %2571 = vmatprep.subr.bf16.mxu0 %v1611
      %2572 = vmatpush1.bf16.msra.mxu0 %v1610
      %2573 = vmatprep.subr.bf16.mxu0 %v1617
      %2574 = vmatpush1.bf16.msra.mxu0 %v1616
      %2575 = vmatprep.subr.bf16.mxu0 %v1623
      %2576 = vmatpush1.bf16.msra.mxu0 %v1622
      %2577 = vmatprep.subr.bf16.mxu0 %v1629
      %2578 = vmatpush1.bf16.msra.mxu0 %v1628
      %2579 = vmatprep.subr.bf16.mxu0 %v1635
      %2580 = vmatpush1.bf16.msra.mxu0 %v1634
      %2581 = vmatprep.subr.bf16.mxu0 %v1641
      %2582 = vmatpush1.bf16.msra.mxu0 %v1640
      %2583 = vmatprep.subr.bf16.mxu0 %v1647
      %2584 = vmatpush1.bf16.msra.mxu0 %v1646
      %2585 = vmatprep.subr.bf16.mxu0 %v1653
      %2586 = vmatpush1.bf16.msra.mxu0 %v1652
      %2587 = vmatprep.subr.bf16.mxu0 %v1659
      %2588 = vmatpush1.bf16.msra.mxu0 %v1658
      %2589 = vmatprep.mubr.bf16.mxu0 %v2503
      %2590 = vmatmul.mubr.bf16.gmra.mrb[0].mxu0 %v2492
      %v2591 = vpop.f32.mrb[0].mxu0
      %v2592 = vadd.f32 0.0, %v2591
      %v2593 = vpop.f32.mrb[0].mxu0
      %v2594 = vadd.f32 0.0, %v2593
      %v2595 = vpop.f32.mrb[0].mxu0
      %v2596 = vadd.f32 0.0, %v2595
      %v2597 = vpop.f32.mrb[0].mxu0
      %v2598 = vadd.f32 0.0, %v2597
      %2599 = vdwg.mxu0
      %2600 = vmatprep.subr.bf16.mxu0 %v1571
      %2601 = vmatpush1.bf16.msra.mxu0 %v1570
      %2602 = vmatprep.subr.bf16.mxu0 %v1577
      %2603 = vmatpush1.bf16.msra.mxu0 %v1576
      %2604 = vmatprep.subr.bf16.mxu0 %v1583
      %2605 = vmatpush1.bf16.msra.mxu0 %v1582
      %2606 = vmatprep.subr.bf16.mxu0 %v1589
      %2607 = vmatpush1.bf16.msra.mxu0 %v1588
      %2608 = vmatprep.subr.bf16.mxu0 %v1595
      %2609 = vmatpush1.bf16.msra.mxu0 %v1594
      %2610 = vmatprep.subr.bf16.mxu0 %v1601
      %2611 = vmatpush1.bf16.msra.mxu0 %v1600
      %2612 = vmatprep.subr.bf16.mxu0 %v1607
      %2613 = vmatpush1.bf16.msra.mxu0 %v1606
      %2614 = vmatprep.subr.bf16.mxu0 %v1613
      %2615 = vmatpush1.bf16.msra.mxu0 %v1612
      %2616 = vmatprep.subr.bf16.mxu0 %v1619
      %2617 = vmatpush1.bf16.msra.mxu0 %v1618
      %2618 = vmatprep.subr.bf16.mxu0 %v1625
      %2619 = vmatpush1.bf16.msra.mxu0 %v1624
      %2620 = vmatprep.subr.bf16.mxu0 %v1631
      %2621 = vmatpush1.bf16.msra.mxu0 %v1630
      %2622 = vmatprep.subr.bf16.mxu0 %v1637
      %2623 = vmatpush1.bf16.msra.mxu0 %v1636
      %2624 = vmatprep.subr.bf16.mxu0 %v1643
      %2625 = vmatpush1.bf16.msra.mxu0 %v1642
      %2626 = vmatprep.subr.bf16.mxu0 %v1649
      %2627 = vmatpush1.bf16.msra.mxu0 %v1648
      %2628 = vmatprep.subr.bf16.mxu0 %v1655
      %2629 = vmatpush1.bf16.msra.mxu0 %v1654
      %2630 = vmatprep.subr.bf16.mxu0 %v1661
      %2631 = vmatpush1.bf16.msra.mxu0 %v1660
      %2632 = vmatprep.mubr.bf16.mxu0 %v2503
      %2633 = vmatmul.mubr.bf16.gmra.mrb[0].mxu0 %v2492
      %v2634 = vpop.f32.mrb[0].mxu0
      %v2635 = vadd.f32 0.0, %v2634
      %v2636 = vpop.f32.mrb[0].mxu0
      %v2637 = vadd.f32 0.0, %v2636
      %v2638 = vpop.f32.mrb[0].mxu0
      %v2639 = vadd.f32 0.0, %v2638
      %v2640 = vpop.f32.mrb[0].mxu0
      %v2641 = vadd.f32 0.0, %v2640
      %2642 = vdwg.mxu0
      %s2643 = smul.addr %s1938, 8
      %s2644 = scalar_lea.vmem [#allocation3], %s2643
      %v2645 = vld [vmem:[%s2644] sm:$0xff]
      %v2646 = vld [vmem:[%s2644 + $0x8] sm:$0xff]
      %v2647 = vld [vmem:[%s2644 + $0x10] sm:$0xff]
      %v2648 = vld [vmem:[%s2644 + $0x18] sm:$0xff]
      %v2649 = vld [vmem:[%s2644 + $0x20] sm:$0xff]
      %v2650 = vld [vmem:[%s2644 + $0x28] sm:$0xff]
      %v2651 = vadd.f32 %v2645, %v2549
      %v2652 = vadd.f32 %v2648, %v2553
      %v2653 = vxor.u32 %v2651, 2147483648
      %v2654 = vxor.u32 %v2652, 2147483648
      %v2655 = vmul.f32 %v2653, 1.442695
      %v2656 = vpow.pop %v2655
      %v2657 = vmul.f32 %v2654, 1.442695
      %v2658 = vpow.pop %v2657
      %v2659 = vadd.f32 %v2656, 1.0
      %v2660 = vadd.f32 %v2658, 1.0
      %v2661 = vrcp.pop %v2659
      %v2662 = vmul.f32 1.0, %v2661
      %v2663 = vrcp.pop %v2660
      %v2664 = vmul.f32 1.0, %v2663
      %v2665 = vadd.f32 %v2646, %v2551
      %v2666 = vadd.f32 %v2649, %v2555
      %v2667 = vxor.u32 %v2665, 2147483648
      %v2668 = vxor.u32 %v2666, 2147483648
      %v2669 = vmul.f32 %v2667, 1.442695
      %v2670 = vpow.pop %v2669
      %v2671 = vmul.f32 %v2668, 1.442695
      %v2672 = vpow.pop %v2671
      %v2673 = vadd.f32 %v2670, 1.0
      %v2674 = vadd.f32 %v2672, 1.0
      %v2675 = vrcp.pop %v2673
      %v2676 = vmul.f32 1.0, %v2675
      %v2677 = vrcp.pop %v2674
      %v2678 = vmul.f32 1.0, %v2677
      %v2679 = vadd.f32 %v2592, %v1263
      %v2680 = vadd.f32 %v2596, %v1263
      %v2681 = vmul.f32 %v2662, %v2679
      %v2682 = vmul.f32 %v2664, %v2680
      %v2683 = vadd.f32 %v2647, %v2681
      %v2684 = vadd.f32 %v2650, %v2682
      %v2685 = vtanh.pop %v2683
      %v2686 = vtanh.pop %v2684
      %v2687 = vsub.f32 %v2440, %v2685
      %v2688 = vsub.f32 %v2441, %v2686
      %v2689 = vmul.f32 %v2676, %v2687
      %v2690 = vmul.f32 %v2678, %v2688
      %v2691 = vadd.f32 %v2685, %v2689
      %v2692 = vadd.f32 %v2686, %v2690
      %s2693 = smul.addr %s1887, 8
      %s2694 = scalar_lea.vmem [#allocation4], %s2693
      %v2695 = vld [vmem:[%s2694] sm:$0xff]
      %v2696 = vld [vmem:[%s2694 + $0x8] sm:$0xff]
      %v2697 = vld [vmem:[%s2694 + $0x10] sm:$0xff]
      %v2698 = vld [vmem:[%s2694 + $0x18] sm:$0xff]
      %v2699 = vld [vmem:[%s2694 + $0x20] sm:$0xff]
      %v2700 = vld [vmem:[%s2694 + $0x28] sm:$0xff]
      %v2701 = vadd.f32 %v2695, %v2594
      %v2702 = vadd.f32 %v2698, %v2598
      %v2703 = vxor.u32 %v2701, 2147483648
      %v2704 = vxor.u32 %v2702, 2147483648
      %v2705 = vmul.f32 %v2703, 1.442695
      %v2706 = vpow.pop %v2705
      %v2707 = vmul.f32 %v2704, 1.442695
      %v2708 = vpow.pop %v2707
      %v2709 = vadd.f32 %v2706, 1.0
      %v2710 = vadd.f32 %v2708, 1.0
      %v2711 = vrcp.pop %v2709
      %v2712 = vmul.f32 1.0, %v2711
      %v2713 = vrcp.pop %v2710
      %v2714 = vmul.f32 1.0, %v2713
      %v2715 = vadd.f32 %v2696, %v2635
      %v2716 = vadd.f32 %v2699, %v2639
      %v2717 = vxor.u32 %v2715, 2147483648
      %v2718 = vxor.u32 %v2716, 2147483648
      %v2719 = vmul.f32 %v2717, 1.442695
      %v2720 = vpow.pop %v2719
      %v2721 = vmul.f32 %v2718, 1.442695
      %v2722 = vpow.pop %v2721
      %v2723 = vadd.f32 %v2720, 1.0
      %v2724 = vadd.f32 %v2722, 1.0
      %v2725 = vrcp.pop %v2723
      %v2726 = vmul.f32 1.0, %v2725
      %v2727 = vrcp.pop %v2724
      %v2728 = vmul.f32 1.0, %v2727
      %v2729 = vadd.f32 %v2637, %v1270
      %v2730 = vadd.f32 %v2641, %v1270
      %v2731 = vmul.f32 %v2712, %v2729
      %v2732 = vmul.f32 %v2714, %v2730
      %v2733 = vadd.f32 %v2697, %v2731
      %v2734 = vadd.f32 %v2700, %v2732
      %v2735 = vtanh.pop %v2733
      %v2736 = vtanh.pop %v2734
      %v2737 = vsub.f32 %v2490, %v2735
      %v2738 = vsub.f32 %v2491, %v2736
      %v2739 = vmul.f32 %v2726, %v2737
      %v2740 = vmul.f32 %v2728, %v2738
      %v2741 = vadd.f32 %v2735, %v2739
      %v2742 = vadd.f32 %v2736, %v2740
      %v2743 = vpack.c.bf16 %v2692, %v2691
      %v2745 = vunpack.c.l.b16 %v2743
      %v2746 = vunpack.c.h.b16 %v2743
      %v2747 = vpack.c.b16 %v2745, %v2745
      %v2748 = vpack.c.b16 %v2746, %v2746
      %s2751 = scalar_lea.vmem %s401, 24
      %2752 = vst [vmem:[%s2751] sm:$0xf] %v2747
      %2753 = vst [vmem:[%s2751 + $0x4] sm:$0xf] %v2748
      %v2754 = vpack.c.bf16 %v2742, %v2741
      %v2756 = vunpack.c.l.b16 %v2754
      %v2757 = vunpack.c.h.b16 %v2754
      %v2758 = vpack.c.b16 %v2756, %v2756
      %v2759 = vpack.c.b16 %v2757, %v2757
      %2762 = vst [vmem:[%s408] sm:$0xf] %v2758
      %2763 = vst [vmem:[%s408 + $0x4] sm:$0xf] %v2759
      %2764 = vst [vmem:[#allocation2] sm:$0xff] %v2691
      %2765 = vst [vmem:[#allocation2 + $0x8] sm:$0xff] %v2741
      %2766 = vst [vmem:[#allocation2 + $0x10] sm:$0xff] %v2692
      %2767 = vst [vmem:[#allocation2 + $0x18] sm:$0xff] %v2742
      %s2768 = smul.u32 8, %s22
      %p2769 = scmp.lt.s32.totalorder %s2768, 15
      %s2770 = scalar_select %p2769, %s2768, 15
      %s2771 = smul.addr %s2770, 4
      %s2772 = scalar_lea.vmem %s9, %s2771
      %s2773 = ssub.s32 1, %s22
      %s2774 = smul.u32 8, %s2773
      %p2775 = scmp.lt.s32.totalorder %s2774, 15
      %s2776 = scalar_select %p2775, %s2774, 15
      %s2777 = smul.addr %s2776, 4
      %s2778 = scalar_lea.vmem %s10, %s2777
      // Predicated region
      $region61: #{rnn_model_forward.2} parent=55 // pred_check
        %p2779 = pneg %p241
      $region62: #{rnn_model_forward.2} parent=55 // pred_check_branch
        %2781 = sbr.rel (%p2779) target = $region64
      $region63: #{rnn_model_forward.2} parent=55 // pred_region
        %s2782 = smul.u32 8, %s22
      $region64: #{rnn_model_forward.2} parent=55 // pred_fallthru
        _
      // Predicated region
      $region65: #{rnn_model_forward.2} parent=55 // pred_check
        %p2783 = pneg %p269
      $region66: #{rnn_model_forward.2} parent=55 // pred_check_branch
        %2785 = sbr.rel (%p2783) target = $region68
      $region67: #{rnn_model_forward.2} parent=55 // pred_region
        %s2786 = ssub.s32 1, %s22
        %s2787 = smul.u32 8, %s2786
      $region68: #{rnn_model_forward.2} parent=55 // pred_fallthru
        _
    $region56: #{rnn_model_forward.2} parent=5 // pred_fallthru
      _
    %p2788 = scmp.le.s32.totalorder 2, %s17
    // Predicated region
    $region69: #{rnn_model_forward.2} parent=5 // pred_check
      %p2789 = pneg %p2788
    $region70: #{rnn_model_forward.2} parent=5 // pred_check_branch
      %2791 = sbr.rel (%p2789) target = $region72
    $region71: #{rnn_model_forward.2} parent=5 // pred_region
      %s2792 = ssub.s32 %s17, 2
      // Predicated region
      $region73: #{rnn_model_forward.2} parent=71 // pred_check
        %p2793 = pneg %p247
      $region74: #{rnn_model_forward.2} parent=71 // pred_check_branch
        %2795 = sbr.rel (%p2793) target = $region76
      $region75: #{rnn_model_forward.2} parent=71 // pred_region
        %s2796 = smul.u32 8, %s23
        %p2797 = scmp.lt.s32.totalorder %s2796, 15
        %s2798 = scalar_select %p2797, %s2796, 15
        %s2799 = smul.addr %s2798, 4
        %s2800 = scalar_lea.vmem %s9, %s2799
      $region76: #{rnn_model_forward.2} parent=71 // pred_fallthru
        _
      // Predicated region
      $region77: #{rnn_model_forward.2} parent=71 // pred_check
        %p2801 = pneg %p275
      $region78: #{rnn_model_forward.2} parent=71 // pred_check_branch
        %2803 = sbr.rel (%p2801) target = $region80
      $region79: #{rnn_model_forward.2} parent=71 // pred_region
        %s2804 = ssub.s32 1, %s23
        %s2805 = smul.u32 8, %s2804
        %p2806 = scmp.lt.s32.totalorder %s2805, 15
        %s2807 = scalar_select %p2806, %s2805, 15
        %s2808 = smul.addr %s2807, 4
        %s2809 = scalar_lea.vmem %s10, %s2808
      $region80: #{rnn_model_forward.2} parent=71 // pred_fallthru
        _
    $region72: #{rnn_model_forward.2} parent=5 // pred_fallthru
      _
  $region6: #{rnn_model_forward.2} parent=0 // loop_footer
    %s21 = sadd.s32 1, %s17
  $region7: #{rnn_model_forward.2} parent=0 // loop_footer_branch
    %16 = sbr.rel target = $region3
  $region8: #{rnn_model_forward.2} parent=0 // loop_exit
    _

</llo_original>
